<compile_context>
chip_gen: v7x
topology: tpu7x:2x2x1
jax: 0.10.0
libtpu: 0.0.40
codegen_flags: <defaults>
</compile_context>

<pallas_src>
import jax
import jax.numpy as jnp
from jax import lax
from jax.experimental import pallas as pl
from jax.experimental.pallas import tpu as pltpu


def _round_up(x, m):
    return ((x + m - 1) // m) * m


def make_bottleneck_kernel(H, W, Cin, Cmid, Cout, top):
    """Build the per-image kernel. x_ref: (H*W, Cin) bf16, o_ref: (H*W, Cout) bf16."""
    HW = H * W

    def kernel(x_ref, w1_ref, b1_ref, w2_ref, b2_ref, w3_ref, b3_ref,
               o_ref, pad_ref):
        # --- conv1 (1x1) == channel matmul (bf16 MXU, f32 acc), folded bn1, relu
        h1 = jnp.dot(x_ref[...], w1_ref[...],
                     preferred_element_type=jnp.float32)
        h1 = jnp.maximum(h1 + b1_ref[...], 0.0)

        # Stage h1 (bf16) into the flat zero-padded scratch.  The halo is just
        # two contiguous row blocks; re-zero it every step (cheap, and correct
        # on megacore where each core owns a private scratch).
        pad_ref[0:top, :] = jnp.zeros((top, Cmid), pad_ref.dtype)
        pad_ref[top + HW:top + HW + W + 1, :] = jnp.zeros((W + 1, Cmid),
                                                          pad_ref.dtype)
        pad_ref[top:top + HW, :] = h1.astype(pad_ref.dtype)

        # Column-validity masks for the kw = +/-1 taps (flat-layout wraparound
        # at row boundaries).
        col = lax.broadcasted_iota(jnp.int32, (HW, 1), 0) % W
        not_first = col != 0          # valid positions for kw = -1
        not_last = col != (W - 1)     # valid positions for kw = +1

        # --- conv2 (3x3, stride=1, pad=1): nine accumulating MXU dots over
        #     shifted row views of the staged h1 slab.
        h2 = jnp.zeros((HW, Cmid), jnp.float32)
        for t in range(9):
            kh = t // 3 - 1
            kw = t % 3 - 1
            start = top + kh * W + kw          # static per tap
            slab = pad_ref[pl.ds(start, HW), :]
            if kw == 1:
                slab = jnp.where(not_last, slab, jnp.zeros_like(slab))
            elif kw == -1:
                slab = jnp.where(not_first, slab, jnp.zeros_like(slab))
            h2 = h2 + jnp.dot(slab, w2_ref[t],
                              preferred_element_type=jnp.float32)
        h2 = jnp.maximum(h2 + b2_ref[...], 0.0)

        # --- conv3 (1x1), folded bn3 bias, residual (re-read resident x), relu
        h3 = jnp.dot(h2.astype(jnp.bfloat16), w3_ref[...],
                     preferred_element_type=jnp.float32)
        h3 = h3 + b3_ref[...] + x_ref[...].astype(jnp.float32)
        o_ref[...] = jnp.maximum(h3, 0.0).astype(o_ref.dtype)

    return kernel


def bottleneck_forward(x_nhwc, params, *, vmem_limit_bytes=None):
    """x_nhwc: (N, H, W, Cin) float32 (NHWC end-to-end). Returns bf16 NHWC output.

    vmem_limit_bytes: leave None (32 MiB scoped default) for these tile sizes.
    """
    (w1, b1, w2, b2, w3, b3) = params
    N, H, W, Cin = x_nhwc.shape
    Cmid = w1.shape[1]
    Cout = w3.shape[1]
    assert Cin == Cout, (
        "identity residual requires in_channel == 4*out_channel "
        "(downsample path not implemented)")
    HW = H * W
    # h1 region starts at a (bf16-)sublane-aligned offset; halo needs >= W+1 rows.
    top = _round_up(W + 1, 16)

    # bf16 at the HBM boundary; free reshape keeps channels on the lane axis.
    x2 = x_nhwc.astype(jnp.bfloat16).reshape(N, HW, Cin)

    def full_spec(shape):
        nd = len(shape)
        return pl.BlockSpec(shape, lambda n, _nd=nd: (0,) * _nd)

    kernel = make_bottleneck_kernel(H, W, Cin, Cmid, Cout, top)

    out2 = pl.pallas_call(
        kernel,
        out_shape=jax.ShapeDtypeStruct((N, HW, Cout), jnp.bfloat16),
        grid=(N,),
        in_specs=[
            pl.BlockSpec((None, HW, Cin), lambda n: (n, 0, 0)),   # x (per image)
            full_spec(w1.shape), full_spec(b1.shape),
            full_spec(w2.shape), full_spec(b2.shape),
            full_spec(w3.shape), full_spec(b3.shape),
        ],
        out_specs=pl.BlockSpec((None, HW, Cout), lambda n: (n, 0, 0)),
        scratch_shapes=[
            pltpu.VMEM((top + HW + W + 1, Cmid), jnp.bfloat16),   # flat padded h1
        ],
        compiler_params=pltpu.CompilerParams(
            dimension_semantics=("parallel",),
            vmem_limit_bytes=vmem_limit_bytes),
    )(x2, w1, b1, w2, b2, w3, b3)

    return out2.reshape(N, H, W, Cout)


def make_params(key, in_channel, out_channel, expansion=4):
    """Deterministic synthetic parameters (PyTorch conv layouts), eval-mode BN
    folded into per-channel scale/bias; BN scales folded into the bf16 kernel
    weights so the kernel epilogues are bias + ReLU only."""
    Cin, Cmid, Cout = in_channel, out_channel, out_channel * expansion
    ks = jax.random.split(key, 15)
    eps = 1e-5

    # PyTorch-layout conv weights (OIHW), no bias.
    w1_t = jax.random.normal(ks[0], (Cmid, Cin, 1, 1), jnp.float32) * 0.2
    w2_t = jax.random.normal(ks[1], (Cmid, Cmid, 3, 3), jnp.float32) * 0.2
    w3_t = jax.random.normal(ks[2], (Cout, Cmid, 1, 1), jnp.float32) * 0.2

    def bn_params(kg, kb, km, kv, c):
        gamma = 1.0 + 0.1 * jax.random.normal(kg, (c,), jnp.float32)
        beta = 0.1 * jax.random.normal(kb, (c,), jnp.float32)
        mean = 0.1 * jax.random.normal(km, (c,), jnp.float32)
        var = jnp.abs(jax.random.normal(kv, (c,), jnp.float32)) + 0.5
        scale = gamma / jnp.sqrt(var + eps)
        bias = beta - mean * scale
        return scale, bias

    s1, b1 = bn_params(ks[3], ks[4], ks[5], ks[6], Cmid)
    s2, b2 = bn_params(ks[7], ks[8], ks[9], ks[10], Cmid)
    s3, b3 = bn_params(ks[11], ks[12], ks[13], ks[14], Cout)

    # Kernel-layout weights with BN scale folded in (per output channel), bf16.
    w1_k = (w1_t[:, :, 0, 0].T * s1[None, :]).astype(jnp.bfloat16)        # (Cin, Cmid)
    w2_hwio = jnp.transpose(w2_t, (2, 3, 1, 0))                           # (3,3,in,out)
    w2_k = (w2_hwio * s2[None, None, None, :]).reshape(
        9, Cmid, Cmid).astype(jnp.bfloat16)                               # (9, in, out)
    w3_k = (w3_t[:, :, 0, 0].T * s3[None, :]).astype(jnp.bfloat16)        # (Cmid, Cout)

    torch_like = (w1_t, w2_t, w3_t, s1, b1, s2, b2, s3, b3)
    kernel_params = (w1_k, b1.reshape(1, -1),
                     w2_k, b2.reshape(1, -1),
                     w3_k, b3.reshape(1, -1))
    return torch_like, kernel_params


def bottleneck_reference(x_nhwc, torch_like):
    """Pure-JAX f32 reference mirroring the PyTorch forward (eval-mode BN)."""
    (w1_t, w2_t, w3_t, s1, b1, s2, b2, s3, b3) = torch_like

    def conv(x, w_oihw, pad):
        w = jnp.transpose(w_oihw, (2, 3, 1, 0))   # OIHW -> HWIO
        return lax.conv_general_dilated(
            x, w, (1, 1), pad, dimension_numbers=("NHWC", "HWIO", "NHWC"))

    def bn(x, s, b):
        return x * s + b

    h = jax.nn.relu(bn(conv(x_nhwc, w1_t, "VALID"), s1, b1))
    h = jax.nn.relu(bn(conv(h, w2_t, [(1, 1), (1, 1)]), s2, b2))
    h = bn(conv(h, w3_t, "VALID"), s3, b3)
    return jax.nn.relu(h + x_nhwc)


if __name__ == "__main__":
    key = jax.random.PRNGKey(0)
    k_x, k_p = jax.random.split(key)

    in_channel = 16     # must equal out_channel * expansion for the identity add
    out_channel = 4
    N, H, W = 2, 16, 16

    x = jax.random.normal(k_x, (N, H, W, in_channel), jnp.float32)   # NHWC
    torch_like, kernel_params = make_params(k_p, in_channel, out_channel)

    out = jax.block_until_ready(bottleneck_forward(x, kernel_params))
    ref = jax.block_until_ready(bottleneck_reference(x, torch_like))

    assert out.shape == ref.shape == (N, H, W, out_channel * 4)
    out_f32 = out.astype(jnp.float32)
    max_err = float(jnp.max(jnp.abs(out_f32 - ref)))
    # bf16 I/O + bf16 intermediates + scale-folded bf16 weights (f32 MXU
    # accumulation, f32 epilogues) vs. the all-f32 reference: inference-grade
    # quantization, hence the loose tolerance.
    assert jnp.allclose(out_f32, ref, atol=2e-1, rtol=2e-1), \
        f"max abs err {max_err}"

    print("KERNEL_OK")
</pallas_src>

<mosaic_0001>
module attributes {stable_mosaic.version = 11 : i64} {
  func.func @kernel(%arg0: i32, %arg1: memref<1x256x16xbf16, #tpu.memory_space<vmem>>, %arg2: memref<16x4xbf16, #tpu.memory_space<vmem>>, %arg3: memref<1x4xf32, #tpu.memory_space<vmem>>, %arg4: memref<9x4x4xbf16, #tpu.memory_space<vmem>>, %arg5: memref<1x4xf32, #tpu.memory_space<vmem>>, %arg6: memref<4x16xbf16, #tpu.memory_space<vmem>>, %arg7: memref<1x16xf32, #tpu.memory_space<vmem>>, %arg8: memref<1x256x16xbf16, #tpu.memory_space<vmem>>, %arg9: memref<305x4xbf16, #tpu.memory_space<vmem>>) attributes {dimension_semantics = [#tpu.dimension_semantics<parallel>], iteration_bounds = array<i64: 2>, scalar_prefetch = 0 : i64, scratch_operands = 1 : i64, tpu.core_type = #tpu.core_type<tc>, window_params = [{transform_indices = @transform_0, window_bounds = array<i64: 1, 256, 16>}, {pipeline_mode = #tpu.pipeline_mode<synchronous>, transform_indices = @transform_1, window_bounds = array<i64: 16, 4>}, {pipeline_mode = #tpu.pipeline_mode<synchronous>, transform_indices = @transform_2, window_bounds = array<i64: 1, 4>}, {pipeline_mode = #tpu.pipeline_mode<synchronous>, transform_indices = @transform_3, window_bounds = array<i64: 9, 4, 4>}, {pipeline_mode = #tpu.pipeline_mode<synchronous>, transform_indices = @transform_4, window_bounds = array<i64: 1, 4>}, {pipeline_mode = #tpu.pipeline_mode<synchronous>, transform_indices = @transform_5, window_bounds = array<i64: 4, 16>}, {pipeline_mode = #tpu.pipeline_mode<synchronous>, transform_indices = @transform_6, window_bounds = array<i64: 1, 16>}, {transform_indices = @transform_7, window_bounds = array<i64: 1, 256, 16>}]} {
    %c0 = arith.constant 0 : index
    %c0_0 = arith.constant 0 : index
    %c0_1 = arith.constant 0 : index
    %0 = vector.load %arg1[%c0, %c0_0, %c0_1] : memref<1x256x16xbf16, #tpu.memory_space<vmem>>, vector<1x256x16xbf16>
    %1 = vector.shape_cast %0 : vector<1x256x16xbf16> to vector<256x16xbf16>
    %c0_2 = arith.constant 0 : index
    %c0_3 = arith.constant 0 : index
    %2 = vector.load %arg2[%c0_2, %c0_3] : memref<16x4xbf16, #tpu.memory_space<vmem>>, vector<16x4xbf16>
    %cst = arith.constant dense<0.000000e+00> : vector<256x4xf32>
    %3 = tpu.matmul %1, %2, %cst {dimension_numbers = #tpu.dot_dimension_numbers<[1], [0], [0], [1], [0, 0, 1, 1], [], []>} : vector<256x16xbf16>, vector<16x4xbf16>, vector<256x4xf32> -> vector<256x4xf32>
    %c0_4 = arith.constant 0 : index
    %c0_5 = arith.constant 0 : index
    %4 = vector.load %arg3[%c0_4, %c0_5] : memref<1x4xf32, #tpu.memory_space<vmem>>, vector<1x4xf32>
    %5 = vector.broadcast %4 : vector<1x4xf32> to vector<256x4xf32>
    %6 = arith.addf %3, %5 : vector<256x4xf32>
    %cst_6 = arith.constant 0.000000e+00 : f32
    %7 = vector.broadcast %cst_6 : f32 to vector<256x4xf32>
    %8 = arith.maximumf %6, %7 : vector<256x4xf32>
    %cst_7 = arith.constant 0.000000e+00 : bf16
    %9 = vector.broadcast %cst_7 : bf16 to vector<32x4xbf16>
    %c0_8 = arith.constant 0 : index
    %c0_9 = arith.constant 0 : index
    %10 = vector.load %arg9[%c0_8, %c0_9] : memref<305x4xbf16, #tpu.memory_space<vmem>>, vector<32x4xbf16>
    tpu.vector_store %arg9[%c0_8, %c0_9], %9 {strides = array<i32>} : memref<305x4xbf16, #tpu.memory_space<vmem>>, vector<32x4xbf16>,
    %cst_10 = arith.constant 0.000000e+00 : bf16
    %11 = vector.broadcast %cst_10 : bf16 to vector<17x4xbf16>
    %c288 = arith.constant 288 : index
    %c0_11 = arith.constant 0 : index
    %12 = vector.load %arg9[%c288, %c0_11] : memref<305x4xbf16, #tpu.memory_space<vmem>>, vector<17x4xbf16>
    tpu.vector_store %arg9[%c288, %c0_11], %11 {strides = array<i32>} : memref<305x4xbf16, #tpu.memory_space<vmem>>, vector<17x4xbf16>,
    %13 = arith.truncf %8 : vector<256x4xf32> to vector<256x4xbf16>
    %c32 = arith.constant 32 : index
    %c0_12 = arith.constant 0 : index
    %14 = vector.load %arg9[%c32, %c0_12] : memref<305x4xbf16, #tpu.memory_space<vmem>>, vector<256x4xbf16>
    tpu.vector_store %arg9[%c32, %c0_12], %13 {strides = array<i32>} : memref<305x4xbf16, #tpu.memory_space<vmem>>, vector<256x4xbf16>,
    %15 = tpu.iota {dimensions = array<i32: 0>} : vector<256x1xi32>
    %c16_i32 = arith.constant 16 : i32
    %c0_i32 = arith.constant 0 : i32
    %16 = arith.cmpi eq, %c16_i32, %c0_i32 : i32
    %c1_i32 = arith.constant 1 : i32
    %17 = arith.select %16, %c1_i32, %c16_i32 : i32
    %18 = vector.broadcast %17 : i32 to vector<256x1xi32>
    %19 = arith.remsi %15, %18 : vector<256x1xi32>
    %c0_i32_13 = arith.constant 0 : i32
    %20 = vector.broadcast %c0_i32_13 : i32 to vector<256x1xi32>
    %21 = arith.cmpi ne, %19, %20 : vector<256x1xi32>
    %c0_i32_14 = arith.constant 0 : i32
    %22 = vector.broadcast %c0_i32_14 : i32 to vector<256x1xi32>
    %23 = arith.cmpi slt, %19, %22 : vector<256x1xi32>
    %c0_i32_15 = arith.constant 0 : i32
    %24 = arith.cmpi slt, %17, %c0_i32_15 : i32
    %25 = vector.broadcast %24 : i1 to vector<256x1xi1>
    %26 = vector.broadcast %25 : vector<256x1xi1> to vector<256x1xi1>
    %27 = arith.xori %23, %26 : vector<256x1xi1>
    %28 = arith.andi %27, %21 : vector<256x1xi1>
    %29 = vector.broadcast %17 : i32 to vector<256x1xi32>
    %30 = arith.addi %19, %29 : vector<256x1xi32>
    %31 = arith.select %28, %30, %19 : vector<256x1xi1>, vector<256x1xi32>
    %c0_i32_16 = arith.constant 0 : i32
    %32 = vector.broadcast %c0_i32_16 : i32 to vector<256x1xi32>
    %33 = arith.cmpi ne, %31, %32 : vector<256x1xi32>
    %c15_i32 = arith.constant 15 : i32
    %34 = vector.broadcast %c15_i32 : i32 to vector<256x1xi32>
    %35 = arith.cmpi ne, %31, %34 : vector<256x1xi32>
    %cst_17 = arith.constant 0.000000e+00 : f32
    %36 = vector.broadcast %cst_17 : f32 to vector<256x4xf32>
    %c15 = arith.constant 15 : index
    %c0_18 = arith.constant 0 : index
    %37 = vector.load %arg9[%c15, %c0_18] : memref<305x4xbf16, #tpu.memory_space<vmem>>, vector<256x4xbf16>
    %cst_19 = arith.constant 0.000000e+00 : bf16
    %38 = vector.broadcast %cst_19 : bf16 to vector<256x4xbf16>
    %39 = vector.shape_cast %33 : vector<256x1xi1> to vector<256x1xi1>
    %40 = vector.broadcast %39 : vector<256x1xi1> to vector<256x4xi1>
    %41 = arith.select %40, %37, %38 : vector<256x4xi1>, vector<256x4xbf16>
    %c0_20 = arith.constant 0 : index
    %c0_21 = arith.constant 0 : index
    %c0_22 = arith.constant 0 : index
    %42 = vector.load %arg4[%c0_20, %c0_21, %c0_22] : memref<9x4x4xbf16, #tpu.memory_space<vmem>>, vector<1x4x4xbf16>
    %43 = vector.shape_cast %42 : vector<1x4x4xbf16> to vector<4x4xbf16>
    %cst_23 = arith.constant dense<0.000000e+00> : vector<256x4xf32>
    %44 = tpu.matmul %41, %43, %cst_23 {dimension_numbers = #tpu.dot_dimension_numbers<[1], [0], [0], [1], [0, 0, 1, 1], [], []>} : vector<256x4xbf16>, vector<4x4xbf16>, vector<256x4xf32> -> vector<256x4xf32>
    %45 = arith.addf %36, %44 : vector<256x4xf32>
    %c16 = arith.constant 16 : index
    %c0_24 = arith.constant 0 : index
    %46 = vector.load %arg9[%c16, %c0_24] : memref<305x4xbf16, #tpu.memory_space<vmem>>, vector<256x4xbf16>
    %c1 = arith.constant 1 : index
    %c0_25 = arith.constant 0 : index
    %c0_26 = arith.constant 0 : index
    %47 = vector.load %arg4[%c1, %c0_25, %c0_26] : memref<9x4x4xbf16, #tpu.memory_space<vmem>>, vector<1x4x4xbf16>
    %48 = vector.shape_cast %47 : vector<1x4x4xbf16> to vector<4x4xbf16>
    %cst_27 = arith.constant dense<0.000000e+00> : vector<256x4xf32>
    %49 = tpu.matmul %46, %48, %cst_27 {dimension_numbers = #tpu.dot_dimension_numbers<[1], [0], [0], [1], [0, 0, 1, 1], [], []>} : vector<256x4xbf16>, vector<4x4xbf16>, vector<256x4xf32> -> vector<256x4xf32>
    %50 = arith.addf %45, %49 : vector<256x4xf32>
    %c17 = arith.constant 17 : index
    %c0_28 = arith.constant 0 : index
    %51 = vector.load %arg9[%c17, %c0_28] : memref<305x4xbf16, #tpu.memory_space<vmem>>, vector<256x4xbf16>
    %cst_29 = arith.constant 0.000000e+00 : bf16
    %52 = vector.broadcast %cst_29 : bf16 to vector<256x4xbf16>
    %53 = vector.shape_cast %35 : vector<256x1xi1> to vector<256x1xi1>
    %54 = vector.broadcast %53 : vector<256x1xi1> to vector<256x4xi1>
    %55 = arith.select %54, %51, %52 : vector<256x4xi1>, vector<256x4xbf16>
    %c2 = arith.constant 2 : index
    %c0_30 = arith.constant 0 : index
    %c0_31 = arith.constant 0 : index
    %56 = vector.load %arg4[%c2, %c0_30, %c0_31] : memref<9x4x4xbf16, #tpu.memory_space<vmem>>, vector<1x4x4xbf16>
    %57 = vector.shape_cast %56 : vector<1x4x4xbf16> to vector<4x4xbf16>
    %cst_32 = arith.constant dense<0.000000e+00> : vector<256x4xf32>
    %58 = tpu.matmul %55, %57, %cst_32 {dimension_numbers = #tpu.dot_dimension_numbers<[1], [0], [0], [1], [0, 0, 1, 1], [], []>} : vector<256x4xbf16>, vector<4x4xbf16>, vector<256x4xf32> -> vector<256x4xf32>
    %59 = arith.addf %50, %58 : vector<256x4xf32>
    %c31 = arith.constant 31 : index
    %c0_33 = arith.constant 0 : index
    %60 = vector.load %arg9[%c31, %c0_33] : memref<305x4xbf16, #tpu.memory_space<vmem>>, vector<256x4xbf16>
    %cst_34 = arith.constant 0.000000e+00 : bf16
    %61 = vector.broadcast %cst_34 : bf16 to vector<256x4xbf16>
    %62 = vector.shape_cast %33 : vector<256x1xi1> to vector<256x1xi1>
    %63 = vector.broadcast %62 : vector<256x1xi1> to vector<256x4xi1>
    %64 = arith.select %63, %60, %61 : vector<256x4xi1>, vector<256x4xbf16>
    %c3 = arith.constant 3 : index
    %c0_35 = arith.constant 0 : index
    %c0_36 = arith.constant 0 : index
    %65 = vector.load %arg4[%c3, %c0_35, %c0_36] : memref<9x4x4xbf16, #tpu.memory_space<vmem>>, vector<1x4x4xbf16>
    %66 = vector.shape_cast %65 : vector<1x4x4xbf16> to vector<4x4xbf16>
    %cst_37 = arith.constant dense<0.000000e+00> : vector<256x4xf32>
    %67 = tpu.matmul %64, %66, %cst_37 {dimension_numbers = #tpu.dot_dimension_numbers<[1], [0], [0], [1], [0, 0, 1, 1], [], []>} : vector<256x4xbf16>, vector<4x4xbf16>, vector<256x4xf32> -> vector<256x4xf32>
    %68 = arith.addf %59, %67 : vector<256x4xf32>
    %c32_38 = arith.constant 32 : index
    %c0_39 = arith.constant 0 : index
    %69 = vector.load %arg9[%c32_38, %c0_39] : memref<305x4xbf16, #tpu.memory_space<vmem>>, vector<256x4xbf16>
    %c4 = arith.constant 4 : index
    %c0_40 = arith.constant 0 : index
    %c0_41 = arith.constant 0 : index
    %70 = vector.load %arg4[%c4, %c0_40, %c0_41] : memref<9x4x4xbf16, #tpu.memory_space<vmem>>, vector<1x4x4xbf16>
    %71 = vector.shape_cast %70 : vector<1x4x4xbf16> to vector<4x4xbf16>
    %cst_42 = arith.constant dense<0.000000e+00> : vector<256x4xf32>
    %72 = tpu.matmul %69, %71, %cst_42 {dimension_numbers = #tpu.dot_dimension_numbers<[1], [0], [0], [1], [0, 0, 1, 1], [], []>} : vector<256x4xbf16>, vector<4x4xbf16>, vector<256x4xf32> -> vector<256x4xf32>
    %73 = arith.addf %68, %72 : vector<256x4xf32>
    %c33 = arith.constant 33 : index
    %c0_43 = arith.constant 0 : index
    %74 = vector.load %arg9[%c33, %c0_43] : memref<305x4xbf16, #tpu.memory_space<vmem>>, vector<256x4xbf16>
    %cst_44 = arith.constant 0.000000e+00 : bf16
    %75 = vector.broadcast %cst_44 : bf16 to vector<256x4xbf16>
    %76 = vector.shape_cast %35 : vector<256x1xi1> to vector<256x1xi1>
    %77 = vector.broadcast %76 : vector<256x1xi1> to vector<256x4xi1>
    %78 = arith.select %77, %74, %75 : vector<256x4xi1>, vector<256x4xbf16>
    %c5 = arith.constant 5 : index
    %c0_45 = arith.constant 0 : index
    %c0_46 = arith.constant 0 : index
    %79 = vector.load %arg4[%c5, %c0_45, %c0_46] : memref<9x4x4xbf16, #tpu.memory_space<vmem>>, vector<1x4x4xbf16>
    %80 = vector.shape_cast %79 : vector<1x4x4xbf16> to vector<4x4xbf16>
    %cst_47 = arith.constant dense<0.000000e+00> : vector<256x4xf32>
    %81 = tpu.matmul %78, %80, %cst_47 {dimension_numbers = #tpu.dot_dimension_numbers<[1], [0], [0], [1], [0, 0, 1, 1], [], []>} : vector<256x4xbf16>, vector<4x4xbf16>, vector<256x4xf32> -> vector<256x4xf32>
    %82 = arith.addf %73, %81 : vector<256x4xf32>
    %c47 = arith.constant 47 : index
    %c0_48 = arith.constant 0 : index
    %83 = vector.load %arg9[%c47, %c0_48] : memref<305x4xbf16, #tpu.memory_space<vmem>>, vector<256x4xbf16>
    %cst_49 = arith.constant 0.000000e+00 : bf16
    %84 = vector.broadcast %cst_49 : bf16 to vector<256x4xbf16>
    %85 = vector.shape_cast %33 : vector<256x1xi1> to vector<256x1xi1>
    %86 = vector.broadcast %85 : vector<256x1xi1> to vector<256x4xi1>
    %87 = arith.select %86, %83, %84 : vector<256x4xi1>, vector<256x4xbf16>
    %c6 = arith.constant 6 : index
    %c0_50 = arith.constant 0 : index
    %c0_51 = arith.constant 0 : index
    %88 = vector.load %arg4[%c6, %c0_50, %c0_51] : memref<9x4x4xbf16, #tpu.memory_space<vmem>>, vector<1x4x4xbf16>
    %89 = vector.shape_cast %88 : vector<1x4x4xbf16> to vector<4x4xbf16>
    %cst_52 = arith.constant dense<0.000000e+00> : vector<256x4xf32>
    %90 = tpu.matmul %87, %89, %cst_52 {dimension_numbers = #tpu.dot_dimension_numbers<[1], [0], [0], [1], [0, 0, 1, 1], [], []>} : vector<256x4xbf16>, vector<4x4xbf16>, vector<256x4xf32> -> vector<256x4xf32>
    %91 = arith.addf %82, %90 : vector<256x4xf32>
    %c48 = arith.constant 48 : index
    %c0_53 = arith.constant 0 : index
    %92 = vector.load %arg9[%c48, %c0_53] : memref<305x4xbf16, #tpu.memory_space<vmem>>, vector<256x4xbf16>
    %c7 = arith.constant 7 : index
    %c0_54 = arith.constant 0 : index
    %c0_55 = arith.constant 0 : index
    %93 = vector.load %arg4[%c7, %c0_54, %c0_55] : memref<9x4x4xbf16, #tpu.memory_space<vmem>>, vector<1x4x4xbf16>
    %94 = vector.shape_cast %93 : vector<1x4x4xbf16> to vector<4x4xbf16>
    %cst_56 = arith.constant dense<0.000000e+00> : vector<256x4xf32>
    %95 = tpu.matmul %92, %94, %cst_56 {dimension_numbers = #tpu.dot_dimension_numbers<[1], [0], [0], [1], [0, 0, 1, 1], [], []>} : vector<256x4xbf16>, vector<4x4xbf16>, vector<256x4xf32> -> vector<256x4xf32>
    %96 = arith.addf %91, %95 : vector<256x4xf32>
    %c49 = arith.constant 49 : index
    %c0_57 = arith.constant 0 : index
    %97 = vector.load %arg9[%c49, %c0_57] : memref<305x4xbf16, #tpu.memory_space<vmem>>, vector<256x4xbf16>
    %cst_58 = arith.constant 0.000000e+00 : bf16
    %98 = vector.broadcast %cst_58 : bf16 to vector<256x4xbf16>
    %99 = vector.shape_cast %35 : vector<256x1xi1> to vector<256x1xi1>
    %100 = vector.broadcast %99 : vector<256x1xi1> to vector<256x4xi1>
    %101 = arith.select %100, %97, %98 : vector<256x4xi1>, vector<256x4xbf16>
    %c8 = arith.constant 8 : index
    %c0_59 = arith.constant 0 : index
    %c0_60 = arith.constant 0 : index
    %102 = vector.load %arg4[%c8, %c0_59, %c0_60] : memref<9x4x4xbf16, #tpu.memory_space<vmem>>, vector<1x4x4xbf16>
    %103 = vector.shape_cast %102 : vector<1x4x4xbf16> to vector<4x4xbf16>
    %cst_61 = arith.constant dense<0.000000e+00> : vector<256x4xf32>
    %104 = tpu.matmul %101, %103, %cst_61 {dimension_numbers = #tpu.dot_dimension_numbers<[1], [0], [0], [1], [0, 0, 1, 1], [], []>} : vector<256x4xbf16>, vector<4x4xbf16>, vector<256x4xf32> -> vector<256x4xf32>
    %105 = arith.addf %96, %104 : vector<256x4xf32>
    %c0_62 = arith.constant 0 : index
    %c0_63 = arith.constant 0 : index
    %106 = vector.load %arg5[%c0_62, %c0_63] : memref<1x4xf32, #tpu.memory_space<vmem>>, vector<1x4xf32>
    %107 = vector.broadcast %106 : vector<1x4xf32> to vector<256x4xf32>
    %108 = arith.addf %105, %107 : vector<256x4xf32>
    %cst_64 = arith.constant 0.000000e+00 : f32
    %109 = vector.broadcast %cst_64 : f32 to vector<256x4xf32>
    %110 = arith.maximumf %108, %109 : vector<256x4xf32>
    %111 = arith.truncf %110 : vector<256x4xf32> to vector<256x4xbf16>
    %c0_65 = arith.constant 0 : index
    %c0_66 = arith.constant 0 : index
    %112 = vector.load %arg6[%c0_65, %c0_66] : memref<4x16xbf16, #tpu.memory_space<vmem>>, vector<4x16xbf16>
    %cst_67 = arith.constant dense<0.000000e+00> : vector<256x16xf32>
    %113 = tpu.matmul %111, %112, %cst_67 {dimension_numbers = #tpu.dot_dimension_numbers<[1], [0], [0], [1], [0, 0, 1, 1], [], []>} : vector<256x4xbf16>, vector<4x16xbf16>, vector<256x16xf32> -> vector<256x16xf32>
    %c0_68 = arith.constant 0 : index
    %c0_69 = arith.constant 0 : index
    %114 = vector.load %arg7[%c0_68, %c0_69] : memref<1x16xf32, #tpu.memory_space<vmem>>, vector<1x16xf32>
    %115 = vector.broadcast %114 : vector<1x16xf32> to vector<256x16xf32>
    %116 = arith.addf %113, %115 : vector<256x16xf32>
    %c0_70 = arith.constant 0 : index
    %c0_71 = arith.constant 0 : index
    %c0_72 = arith.constant 0 : index
    %117 = vector.load %arg1[%c0_70, %c0_71, %c0_72] : memref<1x256x16xbf16, #tpu.memory_space<vmem>>, vector<1x256x16xbf16>
    %118 = vector.shape_cast %117 : vector<1x256x16xbf16> to vector<256x16xbf16>
    %119 = arith.extf %118 : vector<256x16xbf16> to vector<256x16xf32>
    %120 = arith.addf %116, %119 : vector<256x16xf32>
    %cst_73 = arith.constant 0.000000e+00 : f32
    %121 = vector.broadcast %cst_73 : f32 to vector<256x16xf32>
    %122 = arith.maximumf %120, %121 : vector<256x16xf32>
    %123 = arith.truncf %122 : vector<256x16xf32> to vector<256x16xbf16>
    %c0_74 = arith.constant 0 : index
    %c0_75 = arith.constant 0 : index
    %c0_76 = arith.constant 0 : index
    %124 = vector.load %arg8[%c0_74, %c0_75, %c0_76] : memref<1x256x16xbf16, #tpu.memory_space<vmem>>, vector<1x256x16xbf16>
    %125 = vector.shape_cast %124 : vector<1x256x16xbf16> to vector<256x16xbf16>
    %126 = vector.shape_cast %123 : vector<256x16xbf16> to vector<1x256x16xbf16>
    tpu.vector_store %arg8[%c0_74, %c0_75, %c0_76], %126 {strides = array<i32>} : memref<1x256x16xbf16, #tpu.memory_space<vmem>>, vector<1x256x16xbf16>,
    return
  }
  func.func @transform_0(%arg0: i32) -> (i32, i32, i32) {
    %c0_i32 = arith.constant 0 : i32
    %c0_i32_0 = arith.constant 0 : i32
    %c0_i32_1 = arith.constant 0 : i32
    return %arg0, %c0_i32, %c0_i32_0 : i32, i32, i32
  }
  func.func @transform_1(%arg0: i32) -> (i32, i32) {
    %c0_i32 = arith.constant 0 : i32
    %c0_i32_0 = arith.constant 0 : i32
    %c0_i32_1 = arith.constant 0 : i32
    return %c0_i32, %c0_i32_0 : i32, i32
  }
  func.func @transform_2(%arg0: i32) -> (i32, i32) {
    %c0_i32 = arith.constant 0 : i32
    %c0_i32_0 = arith.constant 0 : i32
    %c0_i32_1 = arith.constant 0 : i32
    return %c0_i32, %c0_i32_0 : i32, i32
  }
  func.func @transform_3(%arg0: i32) -> (i32, i32, i32) {
    %c0_i32 = arith.constant 0 : i32
    %c0_i32_0 = arith.constant 0 : i32
    %c0_i32_1 = arith.constant 0 : i32
    %c0_i32_2 = arith.constant 0 : i32
    return %c0_i32, %c0_i32_0, %c0_i32_1 : i32, i32, i32
  }
  func.func @transform_4(%arg0: i32) -> (i32, i32) {
    %c0_i32 = arith.constant 0 : i32
    %c0_i32_0 = arith.constant 0 : i32
    %c0_i32_1 = arith.constant 0 : i32
    return %c0_i32, %c0_i32_0 : i32, i32
  }
  func.func @transform_5(%arg0: i32) -> (i32, i32) {
    %c0_i32 = arith.constant 0 : i32
    %c0_i32_0 = arith.constant 0 : i32
    %c0_i32_1 = arith.constant 0 : i32
    return %c0_i32, %c0_i32_0 : i32, i32
  }
  func.func @transform_6(%arg0: i32) -> (i32, i32) {
    %c0_i32 = arith.constant 0 : i32
    %c0_i32_0 = arith.constant 0 : i32
    %c0_i32_1 = arith.constant 0 : i32
    return %c0_i32, %c0_i32_0 : i32, i32
  }
  func.func @transform_7(%arg0: i32) -> (i32, i32, i32) {
    %c0_i32 = arith.constant 0 : i32
    %c0_i32_0 = arith.constant 0 : i32
    %c0_i32_1 = arith.constant 0 : i32
    return %arg0, %c0_i32, %c0_i32_0 : i32, i32, i32
  }
}

</mosaic_0001>

<llo_original>
// kernel: tpu_custom_call.1
$region0: #{tpu_custom_call.1}
  #allocation0 [shape = 'u32[]', space=smem, size = 0x4, offset = 0x4, fixed_abs, tag = 'smem constant byte address 0x4 - core index']
  #allocation1 [shape = 'u32[144,128]{1,0:T(1,128)}', space=vmem, size = 0x12000, scoped, tag = 'internal scratch']
  #allocation2 [shape = 'bf16[305,4]{1,0:T(8,128)(2,1)}', space=vmem, size = 0x13800, scoped, tag = 'scratch operand']
  %s0 = inlined_call_operand.vmem [shape: bf16[2,256,16], index: 0, kind: input, shape index: {}]
  %s1 = inlined_call_operand.vmem [shape: bf16[16,4], index: 1, kind: input, shape index: {}]
  %s2 = inlined_call_operand.vmem [shape: f32[1,4], index: 2, kind: input, shape index: {}]
  %s3 = inlined_call_operand.vmem [shape: bf16[9,4,4], index: 3, kind: input, shape index: {}]
  %s4 = inlined_call_operand.vmem [shape: f32[1,4], index: 4, kind: input, shape index: {}]
  %s5 = inlined_call_operand.vmem [shape: bf16[4,16], index: 5, kind: input, shape index: {}]
  %s6 = inlined_call_operand.vmem [shape: f32[1,16], index: 6, kind: input, shape index: {}]
  %s7 = inlined_call_operand.vmem [shape: bf16[2,256,16], index: 7, kind: output, shape index: {}]
  %s8 = sld [smem:[#allocation0]]
  $region61: #{tpu_custom_call.1} parent=0
    _
  %s10 = ssub.s32 1, %s8
  %s11 = scalar_select 0, %s10, %s8
  loop: start=0, step=1, limit=4
  $region2: #{tpu_custom_call.1} parent=0 // loop_pre_header
    _
  $region3: #{tpu_custom_call.1} parent=0 // loop_header
    %s13 = sphi 0, %s17
    %p14 = scmp.ge.s32.totalorder %s13, 4
    %s23 = sphi 0, %s25
    %s26 = sphi 0, %s23
    %s27 = sphi 0, %s26
    %s43 = sphi 0, %s27
    %s47 = sphi 0, %s47
    %s49 = sphi 0, %s47
    %s50 = sphi 0, %s49
    %s64 = sphi 0, %s50
    %s68 = sphi 0, %s68
    %s70 = sphi 0, %s68
    %s71 = sphi 0, %s70
    %s85 = sphi 0, %s71
    %s89 = sphi 0, %s89
    %s91 = sphi 0, %s89
    %s92 = sphi 0, %s91
    %s106 = sphi 0, %s92
    %s110 = sphi 0, %s110
    %s112 = sphi 0, %s110
    %s113 = sphi 0, %s112
    %s127 = sphi 0, %s113
    %s131 = sphi 0, %s131
    %s133 = sphi 0, %s131
    %s134 = sphi 0, %s133
    %s148 = sphi 0, %s134
    %s152 = sphi 0, %s152
    %s154 = sphi 0, %s152
    %s155 = sphi 0, %s154
    %s169 = sphi 0, %s155
    %s175 = sphi 0, %s177
    %s178 = sphi 0, %s175
    %s179 = sphi 0, %s178
    %s195 = sphi 0, %s179
  $region4: #{tpu_custom_call.1} parent=0 // loop_header_branch
    %16 = sbr.rel (%p14) target = $region8
  $region5: #{tpu_custom_call.1} parent=0 // loop_body
    %s18 = ssub.s32 %s13, 1
    %s19 = ssub.s32 %s13, 2
    %s20 = sadd.s32 %s13, 1
    %s21 = ssub.s32 %s13, %s20
    %p22 = scmp.eq.s32.totalorder %s21, 0
    %s24 = sadd.s32 %s23, 1
    %s25 = scalar_select %p22, %s23, %s24
    %p28 = pneg %p22
    %p29 = scmp.eq.s32.totalorder %s13, 1
    %p30 = por %p28, %p29
    %p31 = scmp.ne.s32.totalorder %s23, %s26
    %p32 = scmp.eq.s32.totalorder %s13, 0
    %p33 = por %p31, %p32
    %p34 = scmp.ne.s32.totalorder %s23, %s26
    %p35 = scmp.eq.s32.totalorder %s18, 1
    %p36 = por %p34, %p35
    %p37 = scmp.ne.s32.totalorder %s26, %s27
    %p38 = scmp.eq.s32.totalorder %s18, 0
    %p39 = por %p37, %p38
    %p40 = scmp.ne.s32.totalorder %s26, %s27
    %p41 = scmp.eq.s32.totalorder %s19, 1
    %p42 = por %p40, %p41
    %p44 = scmp.ne.s32.totalorder %s27, %s43
    %p45 = scmp.eq.s32.totalorder %s19, 0
    %p46 = por %p44, %p45
    %s48 = sadd.s32 %s47, 1
    %p51 = scmp.eq.s32.totalorder %s13, 1
    %p52 = scmp.ne.s32.totalorder %s47, %s49
    %p53 = scmp.eq.s32.totalorder %s13, 0
    %p54 = por %p52, %p53
    %p55 = scmp.ne.s32.totalorder %s47, %s49
    %p56 = scmp.eq.s32.totalorder %s18, 1
    %p57 = por %p55, %p56
    %p58 = scmp.ne.s32.totalorder %s49, %s50
    %p59 = scmp.eq.s32.totalorder %s18, 0
    %p60 = por %p58, %p59
    %p61 = scmp.ne.s32.totalorder %s49, %s50
    %p62 = scmp.eq.s32.totalorder %s19, 1
    %p63 = por %p61, %p62
    %p65 = scmp.ne.s32.totalorder %s50, %s64
    %p66 = scmp.eq.s32.totalorder %s19, 0
    %p67 = por %p65, %p66
    %s69 = sadd.s32 %s68, 1
    %p72 = scmp.eq.s32.totalorder %s13, 1
    %p73 = scmp.ne.s32.totalorder %s68, %s70
    %p74 = scmp.eq.s32.totalorder %s13, 0
    %p75 = por %p73, %p74
    %p76 = scmp.ne.s32.totalorder %s68, %s70
    %p77 = scmp.eq.s32.totalorder %s18, 1
    %p78 = por %p76, %p77
    %p79 = scmp.ne.s32.totalorder %s70, %s71
    %p80 = scmp.eq.s32.totalorder %s18, 0
    %p81 = por %p79, %p80
    %p82 = scmp.ne.s32.totalorder %s70, %s71
    %p83 = scmp.eq.s32.totalorder %s19, 1
    %p84 = por %p82, %p83
    %p86 = scmp.ne.s32.totalorder %s71, %s85
    %p87 = scmp.eq.s32.totalorder %s19, 0
    %p88 = por %p86, %p87
    %s90 = sadd.s32 %s89, 1
    %p93 = scmp.eq.s32.totalorder %s13, 1
    %p94 = scmp.ne.s32.totalorder %s89, %s91
    %p95 = scmp.eq.s32.totalorder %s13, 0
    %p96 = por %p94, %p95
    %p97 = scmp.ne.s32.totalorder %s89, %s91
    %p98 = scmp.eq.s32.totalorder %s18, 1
    %p99 = por %p97, %p98
    %p100 = scmp.ne.s32.totalorder %s91, %s92
    %p101 = scmp.eq.s32.totalorder %s18, 0
    %p102 = por %p100, %p101
    %p103 = scmp.ne.s32.totalorder %s91, %s92
    %p104 = scmp.eq.s32.totalorder %s19, 1
    %p105 = por %p103, %p104
    %p107 = scmp.ne.s32.totalorder %s92, %s106
    %p108 = scmp.eq.s32.totalorder %s19, 0
    %p109 = por %p107, %p108
    %s111 = sadd.s32 %s110, 1
    %p114 = scmp.eq.s32.totalorder %s13, 1
    %p115 = scmp.ne.s32.totalorder %s110, %s112
    %p116 = scmp.eq.s32.totalorder %s13, 0
    %p117 = por %p115, %p116
    %p118 = scmp.ne.s32.totalorder %s110, %s112
    %p119 = scmp.eq.s32.totalorder %s18, 1
    %p120 = por %p118, %p119
    %p121 = scmp.ne.s32.totalorder %s112, %s113
    %p122 = scmp.eq.s32.totalorder %s18, 0
    %p123 = por %p121, %p122
    %p124 = scmp.ne.s32.totalorder %s112, %s113
    %p125 = scmp.eq.s32.totalorder %s19, 1
    %p126 = por %p124, %p125
    %p128 = scmp.ne.s32.totalorder %s113, %s127
    %p129 = scmp.eq.s32.totalorder %s19, 0
    %p130 = por %p128, %p129
    %s132 = sadd.s32 %s131, 1
    %p135 = scmp.eq.s32.totalorder %s13, 1
    %p136 = scmp.ne.s32.totalorder %s131, %s133
    %p137 = scmp.eq.s32.totalorder %s13, 0
    %p138 = por %p136, %p137
    %p139 = scmp.ne.s32.totalorder %s131, %s133
    %p140 = scmp.eq.s32.totalorder %s18, 1
    %p141 = por %p139, %p140
    %p142 = scmp.ne.s32.totalorder %s133, %s134
    %p143 = scmp.eq.s32.totalorder %s18, 0
    %p144 = por %p142, %p143
    %p145 = scmp.ne.s32.totalorder %s133, %s134
    %p146 = scmp.eq.s32.totalorder %s19, 1
    %p147 = por %p145, %p146
    %p149 = scmp.ne.s32.totalorder %s134, %s148
    %p150 = scmp.eq.s32.totalorder %s19, 0
    %p151 = por %p149, %p150
    %s153 = sadd.s32 %s152, 1
    %p156 = scmp.eq.s32.totalorder %s13, 1
    %p157 = scmp.ne.s32.totalorder %s152, %s154
    %p158 = scmp.eq.s32.totalorder %s13, 0
    %p159 = por %p157, %p158
    %p160 = scmp.ne.s32.totalorder %s152, %s154
    %p161 = scmp.eq.s32.totalorder %s18, 1
    %p162 = por %p160, %p161
    %p163 = scmp.ne.s32.totalorder %s154, %s155
    %p164 = scmp.eq.s32.totalorder %s18, 0
    %p165 = por %p163, %p164
    %p166 = scmp.ne.s32.totalorder %s154, %s155
    %p167 = scmp.eq.s32.totalorder %s19, 1
    %p168 = por %p166, %p167
    %p170 = scmp.ne.s32.totalorder %s155, %s169
    %p171 = scmp.eq.s32.totalorder %s19, 0
    %p172 = por %p170, %p171
    %s173 = ssub.s32 %s13, %s20
    %p174 = scmp.eq.s32.totalorder %s173, 0
    %s176 = sadd.s32 %s175, 1
    %s177 = scalar_select %p174, %s175, %s176
    %p180 = pneg %p174
    %p181 = scmp.eq.s32.totalorder %s13, 1
    %p182 = por %p180, %p181
    %p183 = scmp.ne.s32.totalorder %s175, %s178
    %p184 = scmp.eq.s32.totalorder %s13, 0
    %p185 = por %p183, %p184
    %p186 = scmp.ne.s32.totalorder %s175, %s178
    %p187 = scmp.eq.s32.totalorder %s18, 1
    %p188 = por %p186, %p187
    %p189 = scmp.ne.s32.totalorder %s178, %s179
    %p190 = scmp.eq.s32.totalorder %s18, 0
    %p191 = por %p189, %p190
    %p192 = scmp.ne.s32.totalorder %s178, %s179
    %p193 = scmp.eq.s32.totalorder %s19, 1
    %p194 = por %p192, %p193
    %p196 = scmp.ne.s32.totalorder %s179, %s195
    %p197 = scmp.eq.s32.totalorder %s19, 0
    %p198 = por %p196, %p197
    %p199 = scmp.le.s32.totalorder 1, %s13
    %p200 = scmp.lt.s32.totalorder %s13, 3
    %p201 = pnand %p199, %p200
    %p202 = pneg %p201
    // Predicated region
    $region9: #{tpu_custom_call.1} parent=5 // pred_check
      _
    $region10: #{tpu_custom_call.1} parent=5 // pred_check_branch
      %204 = sbr.rel (%p201) target = $region12
    $region11: #{tpu_custom_call.1} parent=5 // pred_region
      %s205 = ssub.s32 %s13, 1
      // Predicated region
      $region13: #{tpu_custom_call.1} parent=11 // pred_check
        %p206 = pneg %p60
      $region14: #{tpu_custom_call.1} parent=11 // pred_check_branch
        %208 = sbr.rel (%p206) target = $region16
      $region15: #{tpu_custom_call.1} parent=11 // pred_region
        _
      $region16: #{tpu_custom_call.1} parent=11 // pred_fallthru
        _
      // Predicated region
      $region17: #{tpu_custom_call.1} parent=11 // pred_check
        %p209 = pneg %p81
      $region18: #{tpu_custom_call.1} parent=11 // pred_check_branch
        %211 = sbr.rel (%p209) target = $region20
      $region19: #{tpu_custom_call.1} parent=11 // pred_region
        _
      $region20: #{tpu_custom_call.1} parent=11 // pred_fallthru
        _
      // Predicated region
      $region21: #{tpu_custom_call.1} parent=11 // pred_check
        %p212 = pneg %p102
      $region22: #{tpu_custom_call.1} parent=11 // pred_check_branch
        %214 = sbr.rel (%p212) target = $region24
      $region23: #{tpu_custom_call.1} parent=11 // pred_region
        _
      $region24: #{tpu_custom_call.1} parent=11 // pred_fallthru
        _
      // Predicated region
      $region25: #{tpu_custom_call.1} parent=11 // pred_check
        %p215 = pneg %p123
      $region26: #{tpu_custom_call.1} parent=11 // pred_check_branch
        %217 = sbr.rel (%p215) target = $region28
      $region27: #{tpu_custom_call.1} parent=11 // pred_region
        _
      $region28: #{tpu_custom_call.1} parent=11 // pred_fallthru
        _
      // Predicated region
      $region29: #{tpu_custom_call.1} parent=11 // pred_check
        %p218 = pneg %p144
      $region30: #{tpu_custom_call.1} parent=11 // pred_check_branch
        %220 = sbr.rel (%p218) target = $region32
      $region31: #{tpu_custom_call.1} parent=11 // pred_region
        _
      $region32: #{tpu_custom_call.1} parent=11 // pred_fallthru
        _
      // Predicated region
      $region33: #{tpu_custom_call.1} parent=11 // pred_check
        %p221 = pneg %p165
      $region34: #{tpu_custom_call.1} parent=11 // pred_check_branch
        %223 = sbr.rel (%p221) target = $region36
      $region35: #{tpu_custom_call.1} parent=11 // pred_region
        _
      $region36: #{tpu_custom_call.1} parent=11 // pred_fallthru
        _
    $region12: #{tpu_custom_call.1} parent=5 // pred_fallthru
      _
    %p224 = scmp.lt.s32.totalorder %s13, 2
    // Predicated region
    $region37: #{tpu_custom_call.1} parent=5 // pred_check
      %p225 = pneg %p224
    $region38: #{tpu_custom_call.1} parent=5 // pred_check_branch
      %227 = sbr.rel (%p225) target = $region40
    $region39: #{tpu_custom_call.1} parent=5 // pred_region
      // Predicated region
      $region41: #{tpu_custom_call.1} parent=39 // pred_check
        %p228 = pneg %p33
      $region42: #{tpu_custom_call.1} parent=39 // pred_check_branch
        %230 = sbr.rel (%p228) target = $region44
      $region43: #{tpu_custom_call.1} parent=39 // pred_region
        %p231 = scmp.lt.s32.totalorder %s13, 1
        %s232 = scalar_select %p231, %s13, 1
        %s233 = smul.addr %s232, 32
        %s234 = smul.addr %s233, 4
        %s235 = scalar_lea.vmem %s0, %s234
      $region44: #{tpu_custom_call.1} parent=39 // pred_fallthru
        _
    $region40: #{tpu_custom_call.1} parent=5 // pred_fallthru
      _
    %p236 = scmp.le.s32.totalorder 1, %s13
    %p237 = scmp.lt.s32.totalorder %s13, 3
    %p238 = pnand %p236, %p237
    %p239 = pneg %p238
    // Predicated region
    $region45: #{tpu_custom_call.1} parent=5 // pred_check
      _
    $region46: #{tpu_custom_call.1} parent=5 // pred_check_branch
      %241 = sbr.rel (%p238) target = $region48
    $region47: #{tpu_custom_call.1} parent=5 // pred_region
      %s242 = ssub.s32 %s13, 1
      %p243 = scmp.lt.s32.totalorder %s18, 1
      %s244 = scalar_select %p243, %s18, 1
      %s245 = smul.addr %s244, 32
      %s246 = smul.addr %s245, 4
      %s247 = scalar_lea.vmem %s0, %s246
      %p248 = pneg %p39
      %p249 = pneg %p36
      %p250 = pneg %p60
      %p251 = pneg %p57
      %p252 = pneg %p81
      %p253 = pneg %p78
      %p254 = pneg %p102
      %p255 = pneg %p99
      %p256 = pneg %p123
      %p257 = pneg %p120
      %p258 = pneg %p144
      %p259 = pneg %p141
      %p260 = pneg %p165
      %p261 = pneg %p162
      %p262 = pneg %p191
      %p263 = pneg %p188
      %p264 = scmp.lt.s32.totalorder %s18, 1
      %s265 = scalar_select %p264, %s18, 1
      %s266 = smul.addr %s265, 32
      %s267 = smul.addr %s266, 4
      %s268 = scalar_lea.vmem %s7, %s267
      %p269 = scmp.lt.s32.totalorder %s18, 1
      %s270 = scalar_select %p269, %s18, 1
      %s271 = smul.addr %s270, 32
      %s272 = smul.addr %s271, 4
      %s273 = scalar_lea.vmem %s0, %s272
      %p274 = scmp.lt.s32.totalorder %s18, 1
      %s275 = scalar_select %p274, %s18, 1
      %s276 = smul.addr %s275, 32
      %s277 = smul.addr %s276, 4
      %s278 = scalar_lea.vmem %s7, %s277
      %v282 = vld [vmem:[%s273] sm:$0xf]
      %v283 = vld [vmem:[%s273 + $0x4] sm:$0xf]
      %v284 = vld [vmem:[%s273 + $0x8] sm:$0xf]
      %v285 = vld [vmem:[%s273 + $0xc] sm:$0xf]
      %v286 = vld [vmem:[%s273 + $0x10] sm:$0xf]
      %v287 = vld [vmem:[%s273 + $0x14] sm:$0xf]
      %v288 = vld [vmem:[%s273 + $0x18] sm:$0xf]
      %v289 = vld [vmem:[%s273 + $0x1c] sm:$0xf]
      %v290 = vld [vmem:[%s273 + $0x20] sm:$0xf]
      %v291 = vld [vmem:[%s273 + $0x24] sm:$0xf]
      %v292 = vld [vmem:[%s273 + $0x28] sm:$0xf]
      %v293 = vld [vmem:[%s273 + $0x2c] sm:$0xf]
      %v294 = vld [vmem:[%s273 + $0x30] sm:$0xf]
      %v295 = vld [vmem:[%s273 + $0x34] sm:$0xf]
      %v296 = vld [vmem:[%s273 + $0x38] sm:$0xf]
      %v297 = vld [vmem:[%s273 + $0x3c] sm:$0xf]
      %v298 = vld [vmem:[%s273 + $0x40] sm:$0xf]
      %v299 = vld [vmem:[%s273 + $0x44] sm:$0xf]
      %v300 = vld [vmem:[%s273 + $0x48] sm:$0xf]
      %v301 = vld [vmem:[%s273 + $0x4c] sm:$0xf]
      %v302 = vld [vmem:[%s273 + $0x50] sm:$0xf]
      %v303 = vld [vmem:[%s273 + $0x54] sm:$0xf]
      %v304 = vld [vmem:[%s273 + $0x58] sm:$0xf]
      %v305 = vld [vmem:[%s273 + $0x5c] sm:$0xf]
      %v306 = vld [vmem:[%s273 + $0x60] sm:$0xf]
      %v307 = vld [vmem:[%s273 + $0x64] sm:$0xf]
      %v308 = vld [vmem:[%s273 + $0x68] sm:$0xf]
      %v309 = vld [vmem:[%s273 + $0x6c] sm:$0xf]
      %v310 = vld [vmem:[%s273 + $0x70] sm:$0xf]
      %v311 = vld [vmem:[%s273 + $0x74] sm:$0xf]
      %v312 = vld [vmem:[%s273 + $0x78] sm:$0xf]
      %v313 = vld [vmem:[%s273 + $0x7c] sm:$0xf]
      %v314 = vld [vmem:[%s1] sm:$0xf]
      %v315 = vld [vmem:[%s1 + $0x4] sm:$0xf]
      %v316 = vld [vmem:[%s2] sm:$0x1]
      %v318 = vlaneseq
      %v319 = vshrl.u32 %v318, 7
      %v320 = vsub.s32 0, %v319
      %v321 = vrot.slane %v316, %v320
      %v355 = vunpack.c.l.b16 %v282
      %v356 = vunpack.c.l.b16 %v283
      %v357 = vunpack.c.l.b16 %v284
      %v358 = vunpack.c.l.b16 %v285
      %v359 = vunpack.c.l.b16 %v286
      %v360 = vunpack.c.l.b16 %v287
      %v361 = vunpack.c.l.b16 %v288
      %v362 = vunpack.c.l.b16 %v289
      %v363 = vunpack.c.l.b16 %v290
      %v364 = vunpack.c.l.b16 %v291
      %v365 = vunpack.c.l.b16 %v292
      %v366 = vunpack.c.l.b16 %v293
      %v367 = vunpack.c.l.b16 %v294
      %v368 = vunpack.c.l.b16 %v295
      %v369 = vunpack.c.l.b16 %v296
      %v370 = vunpack.c.l.b16 %v297
      %v371 = vunpack.c.l.b16 %v298
      %v372 = vunpack.c.l.b16 %v299
      %v373 = vunpack.c.l.b16 %v300
      %v374 = vunpack.c.l.b16 %v301
      %v375 = vunpack.c.l.b16 %v302
      %v376 = vunpack.c.l.b16 %v303
      %v377 = vunpack.c.l.b16 %v304
      %v378 = vunpack.c.l.b16 %v305
      %v379 = vunpack.c.l.b16 %v306
      %v380 = vunpack.c.l.b16 %v307
      %v381 = vunpack.c.l.b16 %v308
      %v382 = vunpack.c.l.b16 %v309
      %v383 = vunpack.c.l.b16 %v310
      %v384 = vunpack.c.l.b16 %v311
      %v385 = vunpack.c.l.b16 %v312
      %v386 = vunpack.c.l.b16 %v313
      %v387 = vpack.c.b16 %v356, %v355
      %v388 = vpack.c.b16 %v358, %v357
      %v389 = vpack.c.b16 %v360, %v359
      %v390 = vpack.c.b16 %v362, %v361
      %v391 = vpack.c.b16 %v364, %v363
      %v392 = vpack.c.b16 %v366, %v365
      %v393 = vpack.c.b16 %v368, %v367
      %v394 = vpack.c.b16 %v370, %v369
      %v395 = vpack.c.b16 %v372, %v371
      %v396 = vpack.c.b16 %v374, %v373
      %v397 = vpack.c.b16 %v376, %v375
      %v398 = vpack.c.b16 %v378, %v377
      %v399 = vpack.c.b16 %v380, %v379
      %v400 = vpack.c.b16 %v382, %v381
      %v401 = vpack.c.b16 %v384, %v383
      %v402 = vpack.c.b16 %v386, %v385
      %v405 = vunpack.c.l.b16 %v314
      %v406 = vunpack.c.l.b16 %v315
      %v407 = vpack.c.b16 %v406, %v405
      %vm409 = vcmask 130048
      %v411 = vsel %vm409, %v387, 0
      %v414 = vsel %vm409, %v388, 0
      %v417 = vsel %vm409, %v389, 0
      %v420 = vsel %vm409, %v390, 0
      %v423 = vsel %vm409, %v391, 0
      %v426 = vsel %vm409, %v392, 0
      %v429 = vsel %vm409, %v393, 0
      %v432 = vsel %vm409, %v394, 0
      %v435 = vsel %vm409, %v395, 0
      %v438 = vsel %vm409, %v396, 0
      %v441 = vsel %vm409, %v397, 0
      %v444 = vsel %vm409, %v398, 0
      %v447 = vsel %vm409, %v399, 0
      %v450 = vsel %vm409, %v400, 0
      %v453 = vsel %vm409, %v401, 0
      %v456 = vsel %vm409, %v402, 0
      %458 = vmatprep.subr.bf16.mxu0 0
      %459 = vmatpush1.bf16.msra.mxu0 %v407
      %460 = vmatprep.subr.bf16.mxu0 0
      %461 = vmatpush1.bf16.msra.mxu0 0
      %462 = vmatprep.subr.bf16.mxu0 0
      %463 = vmatpush1.bf16.msra.mxu0 0
      %464 = vmatprep.subr.bf16.mxu0 0
      %465 = vmatpush1.bf16.msra.mxu0 0
      %466 = vmatprep.subr.bf16.mxu0 0
      %467 = vmatpush1.bf16.msra.mxu0 0
      %468 = vmatprep.subr.bf16.mxu0 0
      %469 = vmatpush1.bf16.msra.mxu0 0
      %470 = vmatprep.subr.bf16.mxu0 0
      %471 = vmatpush1.bf16.msra.mxu0 0
      %472 = vmatprep.subr.bf16.mxu0 0
      %473 = vmatpush1.bf16.msra.mxu0 0
      %474 = vmatprep.subr.bf16.mxu0 0
      %475 = vmatpush1.bf16.msra.mxu0 0
      %476 = vmatprep.subr.bf16.mxu0 0
      %477 = vmatpush1.bf16.msra.mxu0 0
      %478 = vmatprep.subr.bf16.mxu0 0
      %479 = vmatpush1.bf16.msra.mxu0 0
      %480 = vmatprep.subr.bf16.mxu0 0
      %481 = vmatpush1.bf16.msra.mxu0 0
      %482 = vmatprep.subr.bf16.mxu0 0
      %483 = vmatpush1.bf16.msra.mxu0 0
      %484 = vmatprep.subr.bf16.mxu0 0
      %485 = vmatpush1.bf16.msra.mxu0 0
      %486 = vmatprep.subr.bf16.mxu0 0
      %487 = vmatpush1.bf16.msra.mxu0 0
      %488 = vmatprep.subr.bf16.mxu0 0
      %489 = vmatpush1.bf16.msra.mxu0 0
      %490 = vmatprep.mubr.bf16.mxu0 0
      %491 = vmatmul.mubr.bf16.gmra.mrb[0].mxu0 %v411
      %v492 = vpop.f32.mrb[0].mxu0
      %v493 = vadd.f32 %v321, %v492
      %v494 = vpop.f32.mrb[0].mxu0
      %v495 = vpop.f32.mrb[0].mxu0
      %v496 = vadd.f32 %v321, %v495
      %v497 = vpop.f32.mrb[0].mxu0
      %498 = vmatprep.mubr.bf16.mxu0 0
      %499 = vmatmul.mubr.bf16.gmra.mrb[0].mxu0 %v414
      %v500 = vpop.f32.mrb[0].mxu0
      %v501 = vadd.f32 %v321, %v500
      %v502 = vpop.f32.mrb[0].mxu0
      %v503 = vpop.f32.mrb[0].mxu0
      %v504 = vadd.f32 %v321, %v503
      %v505 = vpop.f32.mrb[0].mxu0
      %506 = vmatprep.mubr.bf16.mxu0 0
      %507 = vmatmul.mubr.bf16.gmra.mrb[0].mxu0 %v417
      %v508 = vpop.f32.mrb[0].mxu0
      %v509 = vadd.f32 %v321, %v508
      %v510 = vpop.f32.mrb[0].mxu0
      %v511 = vpop.f32.mrb[0].mxu0
      %v512 = vadd.f32 %v321, %v511
      %v513 = vpop.f32.mrb[0].mxu0
      %514 = vmatprep.mubr.bf16.mxu0 0
      %515 = vmatmul.mubr.bf16.gmra.mrb[0].mxu0 %v420
      %v516 = vpop.f32.mrb[0].mxu0
      %v517 = vadd.f32 %v321, %v516
      %v518 = vpop.f32.mrb[0].mxu0
      %v519 = vpop.f32.mrb[0].mxu0
      %v520 = vadd.f32 %v321, %v519
      %v521 = vpop.f32.mrb[0].mxu0
      %522 = vmatprep.mubr.bf16.mxu0 0
      %523 = vmatmul.mubr.bf16.gmra.mrb[0].mxu0 %v423
      %v524 = vpop.f32.mrb[0].mxu0
      %v525 = vadd.f32 %v321, %v524
      %v526 = vpop.f32.mrb[0].mxu0
      %v527 = vpop.f32.mrb[0].mxu0
      %v528 = vadd.f32 %v321, %v527
      %v529 = vpop.f32.mrb[0].mxu0
      %530 = vmatprep.mubr.bf16.mxu0 0
      %531 = vmatmul.mubr.bf16.gmra.mrb[0].mxu0 %v426
      %v532 = vpop.f32.mrb[0].mxu0
      %v533 = vadd.f32 %v321, %v532
      %v534 = vpop.f32.mrb[0].mxu0
      %v535 = vpop.f32.mrb[0].mxu0
      %v536 = vadd.f32 %v321, %v535
      %v537 = vpop.f32.mrb[0].mxu0
      %538 = vmatprep.mubr.bf16.mxu0 0
      %539 = vmatmul.mubr.bf16.gmra.mrb[0].mxu0 %v429
      %v540 = vpop.f32.mrb[0].mxu0
      %v541 = vadd.f32 %v321, %v540
      %v542 = vpop.f32.mrb[0].mxu0
      %v543 = vpop.f32.mrb[0].mxu0
      %v544 = vadd.f32 %v321, %v543
      %v545 = vpop.f32.mrb[0].mxu0
      %546 = vmatprep.mubr.bf16.mxu0 0
      %547 = vmatmul.mubr.bf16.gmra.mrb[0].mxu0 %v432
      %v548 = vpop.f32.mrb[0].mxu0
      %v549 = vadd.f32 %v321, %v548
      %v550 = vpop.f32.mrb[0].mxu0
      %v551 = vpop.f32.mrb[0].mxu0
      %v552 = vadd.f32 %v321, %v551
      %v553 = vpop.f32.mrb[0].mxu0
      %554 = vmatprep.mubr.bf16.mxu0 0
      %555 = vmatmul.mubr.bf16.gmra.mrb[0].mxu0 %v435
      %v556 = vpop.f32.mrb[0].mxu0
      %v557 = vadd.f32 %v321, %v556
      %v558 = vpop.f32.mrb[0].mxu0
      %v559 = vpop.f32.mrb[0].mxu0
      %v560 = vadd.f32 %v321, %v559
      %v561 = vpop.f32.mrb[0].mxu0
      %562 = vmatprep.mubr.bf16.mxu0 0
      %563 = vmatmul.mubr.bf16.gmra.mrb[0].mxu0 %v438
      %v564 = vpop.f32.mrb[0].mxu0
      %v565 = vadd.f32 %v321, %v564
      %v566 = vpop.f32.mrb[0].mxu0
      %v567 = vpop.f32.mrb[0].mxu0
      %v568 = vadd.f32 %v321, %v567
      %v569 = vpop.f32.mrb[0].mxu0
      %570 = vmatprep.mubr.bf16.mxu0 0
      %571 = vmatmul.mubr.bf16.gmra.mrb[0].mxu0 %v441
      %v572 = vpop.f32.mrb[0].mxu0
      %v573 = vadd.f32 %v321, %v572
      %v574 = vpop.f32.mrb[0].mxu0
      %v575 = vpop.f32.mrb[0].mxu0
      %v576 = vadd.f32 %v321, %v575
      %v577 = vpop.f32.mrb[0].mxu0
      %578 = vmatprep.mubr.bf16.mxu0 0
      %579 = vmatmul.mubr.bf16.gmra.mrb[0].mxu0 %v444
      %v580 = vpop.f32.mrb[0].mxu0
      %v581 = vadd.f32 %v321, %v580
      %v582 = vpop.f32.mrb[0].mxu0
      %v583 = vpop.f32.mrb[0].mxu0
      %v584 = vadd.f32 %v321, %v583
      %v585 = vpop.f32.mrb[0].mxu0
      %586 = vmatprep.mubr.bf16.mxu0 0
      %587 = vmatmul.mubr.bf16.gmra.mrb[0].mxu0 %v447
      %v588 = vpop.f32.mrb[0].mxu0
      %v589 = vadd.f32 %v321, %v588
      %v590 = vpop.f32.mrb[0].mxu0
      %v591 = vpop.f32.mrb[0].mxu0
      %v592 = vadd.f32 %v321, %v591
      %v593 = vpop.f32.mrb[0].mxu0
      %594 = vmatprep.mubr.bf16.mxu0 0
      %595 = vmatmul.mubr.bf16.gmra.mrb[0].mxu0 %v450
      %v596 = vpop.f32.mrb[0].mxu0
      %v597 = vadd.f32 %v321, %v596
      %v598 = vpop.f32.mrb[0].mxu0
      %v599 = vpop.f32.mrb[0].mxu0
      %v600 = vadd.f32 %v321, %v599
      %v601 = vpop.f32.mrb[0].mxu0
      %602 = vmatprep.mubr.bf16.mxu0 0
      %603 = vmatmul.mubr.bf16.gmra.mrb[0].mxu0 %v453
      %v604 = vpop.f32.mrb[0].mxu0
      %v605 = vadd.f32 %v321, %v604
      %v606 = vpop.f32.mrb[0].mxu0
      %v607 = vpop.f32.mrb[0].mxu0
      %v608 = vadd.f32 %v321, %v607
      %v609 = vpop.f32.mrb[0].mxu0
      %610 = vmatprep.mubr.bf16.mxu0 0
      %611 = vmatmul.mubr.bf16.gmra.mrb[0].mxu0 %v456
      %v612 = vpop.f32.mrb[0].mxu0
      %v613 = vadd.f32 %v321, %v612
      %v614 = vpop.f32.mrb[0].mxu0
      %v615 = vpop.f32.mrb[0].mxu0
      %v616 = vadd.f32 %v321, %v615
      %v617 = vpop.f32.mrb[0].mxu0
      %618 = vdwg.mxu0
      %v619 = vmax.f32 %v493, 0.0
      %v620 = vmax.f32 %v496, 0.0
      %v621 = vmax.f32 %v501, 0.0
      %v622 = vmax.f32 %v504, 0.0
      %v623 = vmax.f32 %v509, 0.0
      %v624 = vmax.f32 %v512, 0.0
      %v625 = vmax.f32 %v517, 0.0
      %v626 = vmax.f32 %v520, 0.0
      %v627 = vmax.f32 %v525, 0.0
      %v628 = vmax.f32 %v528, 0.0
      %v629 = vmax.f32 %v533, 0.0
      %v630 = vmax.f32 %v536, 0.0
      %v631 = vmax.f32 %v541, 0.0
      %v632 = vmax.f32 %v544, 0.0
      %v633 = vmax.f32 %v549, 0.0
      %v634 = vmax.f32 %v552, 0.0
      %v635 = vmax.f32 %v557, 0.0
      %v636 = vmax.f32 %v560, 0.0
      %v637 = vmax.f32 %v565, 0.0
      %v638 = vmax.f32 %v568, 0.0
      %v639 = vmax.f32 %v573, 0.0
      %v640 = vmax.f32 %v576, 0.0
      %v641 = vmax.f32 %v581, 0.0
      %v642 = vmax.f32 %v584, 0.0
      %v643 = vmax.f32 %v589, 0.0
      %v644 = vmax.f32 %v592, 0.0
      %v645 = vmax.f32 %v597, 0.0
      %v646 = vmax.f32 %v600, 0.0
      %v647 = vmax.f32 %v605, 0.0
      %v648 = vmax.f32 %v608, 0.0
      %v649 = vmax.f32 %v613, 0.0
      %v650 = vmax.f32 %v616, 0.0
      %vm651 = vcmask 27648
      %652 = vst.msk [vmem:[#allocation2] sm:$0xf] %vm651, 0
      %653 = vst.msk [vmem:[#allocation2 + $0x4] sm:$0xf] %vm651, 0
      %654 = vst.msk [vmem:[#allocation2 + $0x8] sm:$0xf] %vm651, 0
      %655 = vst.msk [vmem:[#allocation2 + $0xc] sm:$0xf] %vm651, 0
      %656 = vst.msk [vmem:[#allocation2 + $0x90] sm:$0xf] %vm651, 0
      %657 = vst.msk [vmem:[#allocation2 + $0x94] sm:$0xf] %vm651, 0
      %vm658 = vcmask 24576
      %vm659 = vsmask.f32 256
      %vm660 = vmand %vm658, %vm659
      %v661 = vld [vmem:[#allocation2 + $0x98] sm:$0x1]
      %v662 = vsel %vm660, 0, %v661
      %663 = vst [vmem:[#allocation2 + $0x98] sm:$0x1] %v662
      %v664 = vpack.c.bf16 %v620, %v619
      %v665 = vpack.c.bf16 %v622, %v621
      %v666 = vpack.c.bf16 %v624, %v623
      %v667 = vpack.c.bf16 %v626, %v625
      %v668 = vpack.c.bf16 %v628, %v627
      %v669 = vpack.c.bf16 %v630, %v629
      %v670 = vpack.c.bf16 %v632, %v631
      %v671 = vpack.c.bf16 %v634, %v633
      %v672 = vpack.c.bf16 %v636, %v635
      %v673 = vpack.c.bf16 %v638, %v637
      %v674 = vpack.c.bf16 %v640, %v639
      %v675 = vpack.c.bf16 %v642, %v641
      %v676 = vpack.c.bf16 %v644, %v643
      %v677 = vpack.c.bf16 %v646, %v645
      %v678 = vpack.c.bf16 %v648, %v647
      %v679 = vpack.c.bf16 %v650, %v649
      %v696 = vunpack.c.l.b16 %v664
      %v697 = vunpack.c.h.b16 %v664
      %v698 = vunpack.c.l.b16 %v665
      %v699 = vunpack.c.h.b16 %v665
      %v700 = vunpack.c.l.b16 %v666
      %v701 = vunpack.c.h.b16 %v666
      %v702 = vunpack.c.l.b16 %v667
      %v703 = vunpack.c.h.b16 %v667
      %v704 = vunpack.c.l.b16 %v668
      %v705 = vunpack.c.h.b16 %v668
      %v706 = vunpack.c.l.b16 %v669
      %v707 = vunpack.c.h.b16 %v669
      %v708 = vunpack.c.l.b16 %v670
      %v709 = vunpack.c.h.b16 %v670
      %v710 = vunpack.c.l.b16 %v671
      %v711 = vunpack.c.h.b16 %v671
      %v712 = vunpack.c.l.b16 %v672
      %v713 = vunpack.c.h.b16 %v672
      %v714 = vunpack.c.l.b16 %v673
      %v715 = vunpack.c.h.b16 %v673
      %v716 = vunpack.c.l.b16 %v674
      %v717 = vunpack.c.h.b16 %v674
      %v718 = vunpack.c.l.b16 %v675
      %v719 = vunpack.c.h.b16 %v675
      %v720 = vunpack.c.l.b16 %v676
      %v721 = vunpack.c.h.b16 %v676
      %v722 = vunpack.c.l.b16 %v677
      %v723 = vunpack.c.h.b16 %v677
      %v724 = vunpack.c.l.b16 %v678
      %v725 = vunpack.c.h.b16 %v678
      %v726 = vunpack.c.l.b16 %v679
      %v727 = vunpack.c.h.b16 %v679
      %v728 = vpack.c.b16 %v696, %v696
      %v729 = vpack.c.b16 %v697, %v697
      %v730 = vpack.c.b16 %v698, %v698
      %v731 = vpack.c.b16 %v699, %v699
      %v732 = vpack.c.b16 %v700, %v700
      %v733 = vpack.c.b16 %v701, %v701
      %v734 = vpack.c.b16 %v702, %v702
      %v735 = vpack.c.b16 %v703, %v703
      %v736 = vpack.c.b16 %v704, %v704
      %v737 = vpack.c.b16 %v705, %v705
      %v738 = vpack.c.b16 %v706, %v706
      %v739 = vpack.c.b16 %v707, %v707
      %v740 = vpack.c.b16 %v708, %v708
      %v741 = vpack.c.b16 %v709, %v709
      %v742 = vpack.c.b16 %v710, %v710
      %v743 = vpack.c.b16 %v711, %v711
      %v744 = vpack.c.b16 %v712, %v712
      %v745 = vpack.c.b16 %v713, %v713
      %v746 = vpack.c.b16 %v714, %v714
      %v747 = vpack.c.b16 %v715, %v715
      %v748 = vpack.c.b16 %v716, %v716
      %v749 = vpack.c.b16 %v717, %v717
      %v750 = vpack.c.b16 %v718, %v718
      %v751 = vpack.c.b16 %v719, %v719
      %v752 = vpack.c.b16 %v720, %v720
      %v753 = vpack.c.b16 %v721, %v721
      %v754 = vpack.c.b16 %v722, %v722
      %v755 = vpack.c.b16 %v723, %v723
      %v756 = vpack.c.b16 %v724, %v724
      %v757 = vpack.c.b16 %v725, %v725
      %v758 = vpack.c.b16 %v726, %v726
      %v759 = vpack.c.b16 %v727, %v727
      %792 = vst.msk [vmem:[#allocation2 + $0x10] sm:$0xf] %vm651, %v728
      %793 = vst.msk [vmem:[#allocation2 + $0x14] sm:$0xf] %vm651, %v729
      %794 = vst.msk [vmem:[#allocation2 + $0x18] sm:$0xf] %vm651, %v730
      %795 = vst.msk [vmem:[#allocation2 + $0x1c] sm:$0xf] %vm651, %v731
      %796 = vst.msk [vmem:[#allocation2 + $0x20] sm:$0xf] %vm651, %v732
      %797 = vst.msk [vmem:[#allocation2 + $0x24] sm:$0xf] %vm651, %v733
      %798 = vst.msk [vmem:[#allocation2 + $0x28] sm:$0xf] %vm651, %v734
      %799 = vst.msk [vmem:[#allocation2 + $0x2c] sm:$0xf] %vm651, %v735
      %800 = vst.msk [vmem:[#allocation2 + $0x30] sm:$0xf] %vm651, %v736
      %801 = vst.msk [vmem:[#allocation2 + $0x34] sm:$0xf] %vm651, %v737
      %802 = vst.msk [vmem:[#allocation2 + $0x38] sm:$0xf] %vm651, %v738
      %803 = vst.msk [vmem:[#allocation2 + $0x3c] sm:$0xf] %vm651, %v739
      %804 = vst.msk [vmem:[#allocation2 + $0x40] sm:$0xf] %vm651, %v740
      %805 = vst.msk [vmem:[#allocation2 + $0x44] sm:$0xf] %vm651, %v741
      %806 = vst.msk [vmem:[#allocation2 + $0x48] sm:$0xf] %vm651, %v742
      %807 = vst.msk [vmem:[#allocation2 + $0x4c] sm:$0xf] %vm651, %v743
      %808 = vst.msk [vmem:[#allocation2 + $0x50] sm:$0xf] %vm651, %v744
      %809 = vst.msk [vmem:[#allocation2 + $0x54] sm:$0xf] %vm651, %v745
      %810 = vst.msk [vmem:[#allocation2 + $0x58] sm:$0xf] %vm651, %v746
      %811 = vst.msk [vmem:[#allocation2 + $0x5c] sm:$0xf] %vm651, %v747
      %812 = vst.msk [vmem:[#allocation2 + $0x60] sm:$0xf] %vm651, %v748
      %813 = vst.msk [vmem:[#allocation2 + $0x64] sm:$0xf] %vm651, %v749
      %814 = vst.msk [vmem:[#allocation2 + $0x68] sm:$0xf] %vm651, %v750
      %815 = vst.msk [vmem:[#allocation2 + $0x6c] sm:$0xf] %vm651, %v751
      %816 = vst.msk [vmem:[#allocation2 + $0x70] sm:$0xf] %vm651, %v752
      %817 = vst.msk [vmem:[#allocation2 + $0x74] sm:$0xf] %vm651, %v753
      %818 = vst.msk [vmem:[#allocation2 + $0x78] sm:$0xf] %vm651, %v754
      %819 = vst.msk [vmem:[#allocation2 + $0x7c] sm:$0xf] %vm651, %v755
      %820 = vst.msk [vmem:[#allocation2 + $0x80] sm:$0xf] %vm651, %v756
      %821 = vst.msk [vmem:[#allocation2 + $0x84] sm:$0xf] %vm651, %v757
      %822 = vst.msk [vmem:[#allocation2 + $0x88] sm:$0xf] %vm651, %v758
      %823 = vst.msk [vmem:[#allocation2 + $0x8c] sm:$0xf] %vm651, %v759
      %v824 = vlaneseq
      %v825 = vshrl.u32 %v824, 7
      %v826 = vadd.s32 %v825, 8
      %v827 = vadd.s32 %v825, 16
      %v828 = vadd.s32 %v825, 24
      %v829 = vadd.s32 %v825, 32
      %v830 = vadd.s32 %v825, 40
      %v831 = vadd.s32 %v825, 48
      %v832 = vadd.s32 %v825, 56
      %v833 = vadd.s32 %v825, 64
      %v834 = vadd.s32 %v825, 72
      %v835 = vadd.s32 %v825, 80
      %v836 = vadd.s32 %v825, 88
      %v837 = vadd.s32 %v825, 96
      %v838 = vadd.s32 %v825, 104
      %v839 = vadd.s32 %v825, 112
      %v840 = vadd.s32 %v825, 120
      %v841 = vadd.s32 %v825, 128
      %v842 = vadd.s32 %v825, 136
      %v843 = vadd.s32 %v825, 144
      %v844 = vadd.s32 %v825, 152
      %v845 = vadd.s32 %v825, 160
      %v846 = vadd.s32 %v825, 168
      %v847 = vadd.s32 %v825, 176
      %v848 = vadd.s32 %v825, 184
      %v849 = vadd.s32 %v825, 192
      %v850 = vadd.s32 %v825, 200
      %v851 = vadd.s32 %v825, 208
      %v852 = vadd.s32 %v825, 216
      %v853 = vadd.s32 %v825, 224
      %v854 = vadd.s32 %v825, 232
      %v855 = vadd.s32 %v825, 240
      %v856 = vadd.s32 %v825, 248
      %vm857 = vcmp.lt.s32.totalorder %v825, 0
      %v858 = vsub.s32 0, %v825
      %v859 = vsel %vm857, %v858, %v825
      %v860 = vshrl.u32 %v859, 4
      %v861 = vand.u32 %v859, 15
      %v862 = vsub.s32 0, %v861
      %v863 = vsel %vm857, %v862, %v861
      %vm864 = vcmp.lt.s32.totalorder %v826, 0
      %v865 = vsub.s32 0, %v826
      %v866 = vsel %vm864, %v865, %v826
      %v867 = vshrl.u32 %v866, 4
      %v868 = vand.u32 %v866, 15
      %v869 = vsub.s32 0, %v868
      %v870 = vsel %vm864, %v869, %v868
      %vm871 = vcmp.lt.s32.totalorder %v827, 0
      %v872 = vsub.s32 0, %v827
      %v873 = vsel %vm871, %v872, %v827
      %v874 = vshrl.u32 %v873, 4
      %v875 = vand.u32 %v873, 15
      %v876 = vsub.s32 0, %v875
      %v877 = vsel %vm871, %v876, %v875
      %vm878 = vcmp.lt.s32.totalorder %v828, 0
      %v879 = vsub.s32 0, %v828
      %v880 = vsel %vm878, %v879, %v828
      %v881 = vshrl.u32 %v880, 4
      %v882 = vand.u32 %v880, 15
      %v883 = vsub.s32 0, %v882
      %v884 = vsel %vm878, %v883, %v882
      %vm885 = vcmp.lt.s32.totalorder %v829, 0
      %v886 = vsub.s32 0, %v829
      %v887 = vsel %vm885, %v886, %v829
      %v888 = vshrl.u32 %v887, 4
      %v889 = vand.u32 %v887, 15
      %v890 = vsub.s32 0, %v889
      %v891 = vsel %vm885, %v890, %v889
      %vm892 = vcmp.lt.s32.totalorder %v830, 0
      %v893 = vsub.s32 0, %v830
      %v894 = vsel %vm892, %v893, %v830
      %v895 = vshrl.u32 %v894, 4
      %v896 = vand.u32 %v894, 15
      %v897 = vsub.s32 0, %v896
      %v898 = vsel %vm892, %v897, %v896
      %vm899 = vcmp.lt.s32.totalorder %v831, 0
      %v900 = vsub.s32 0, %v831
      %v901 = vsel %vm899, %v900, %v831
      %v902 = vshrl.u32 %v901, 4
      %v903 = vand.u32 %v901, 15
      %v904 = vsub.s32 0, %v903
      %v905 = vsel %vm899, %v904, %v903
      %vm906 = vcmp.lt.s32.totalorder %v832, 0
      %v907 = vsub.s32 0, %v832
      %v908 = vsel %vm906, %v907, %v832
      %v909 = vshrl.u32 %v908, 4
      %v910 = vand.u32 %v908, 15
      %v911 = vsub.s32 0, %v910
      %v912 = vsel %vm906, %v911, %v910
      %vm913 = vcmp.lt.s32.totalorder %v833, 0
      %v914 = vsub.s32 0, %v833
      %v915 = vsel %vm913, %v914, %v833
      %v916 = vshrl.u32 %v915, 4
      %v917 = vand.u32 %v915, 15
      %v918 = vsub.s32 0, %v917
      %v919 = vsel %vm913, %v918, %v917
      %vm920 = vcmp.lt.s32.totalorder %v834, 0
      %v921 = vsub.s32 0, %v834
      %v922 = vsel %vm920, %v921, %v834
      %v923 = vshrl.u32 %v922, 4
      %v924 = vand.u32 %v922, 15
      %v925 = vsub.s32 0, %v924
      %v926 = vsel %vm920, %v925, %v924
      %vm927 = vcmp.lt.s32.totalorder %v835, 0
      %v928 = vsub.s32 0, %v835
      %v929 = vsel %vm927, %v928, %v835
      %v930 = vshrl.u32 %v929, 4
      %v931 = vand.u32 %v929, 15
      %v932 = vsub.s32 0, %v931
      %v933 = vsel %vm927, %v932, %v931
      %vm934 = vcmp.lt.s32.totalorder %v836, 0
      %v935 = vsub.s32 0, %v836
      %v936 = vsel %vm934, %v935, %v836
      %v937 = vshrl.u32 %v936, 4
      %v938 = vand.u32 %v936, 15
      %v939 = vsub.s32 0, %v938
      %v940 = vsel %vm934, %v939, %v938
      %vm941 = vcmp.lt.s32.totalorder %v837, 0
      %v942 = vsub.s32 0, %v837
      %v943 = vsel %vm941, %v942, %v837
      %v944 = vshrl.u32 %v943, 4
      %v945 = vand.u32 %v943, 15
      %v946 = vsub.s32 0, %v945
      %v947 = vsel %vm941, %v946, %v945
      %vm948 = vcmp.lt.s32.totalorder %v838, 0
      %v949 = vsub.s32 0, %v838
      %v950 = vsel %vm948, %v949, %v838
      %v951 = vshrl.u32 %v950, 4
      %v952 = vand.u32 %v950, 15
      %v953 = vsub.s32 0, %v952
      %v954 = vsel %vm948, %v953, %v952
      %vm955 = vcmp.lt.s32.totalorder %v839, 0
      %v956 = vsub.s32 0, %v839
      %v957 = vsel %vm955, %v956, %v839
      %v958 = vshrl.u32 %v957, 4
      %v959 = vand.u32 %v957, 15
      %v960 = vsub.s32 0, %v959
      %v961 = vsel %vm955, %v960, %v959
      %vm962 = vcmp.lt.s32.totalorder %v840, 0
      %v963 = vsub.s32 0, %v840
      %v964 = vsel %vm962, %v963, %v840
      %v965 = vshrl.u32 %v964, 4
      %v966 = vand.u32 %v964, 15
      %v967 = vsub.s32 0, %v966
      %v968 = vsel %vm962, %v967, %v966
      %vm969 = vcmp.lt.s32.totalorder %v841, 0
      %v970 = vsub.s32 0, %v841
      %v971 = vsel %vm969, %v970, %v841
      %v972 = vshrl.u32 %v971, 4
      %v973 = vand.u32 %v971, 15
      %v974 = vsub.s32 0, %v973
      %v975 = vsel %vm969, %v974, %v973
      %vm976 = vcmp.lt.s32.totalorder %v842, 0
      %v977 = vsub.s32 0, %v842
      %v978 = vsel %vm976, %v977, %v842
      %v979 = vshrl.u32 %v978, 4
      %v980 = vand.u32 %v978, 15
      %v981 = vsub.s32 0, %v980
      %v982 = vsel %vm976, %v981, %v980
      %vm983 = vcmp.lt.s32.totalorder %v843, 0
      %v984 = vsub.s32 0, %v843
      %v985 = vsel %vm983, %v984, %v843
      %v986 = vshrl.u32 %v985, 4
      %v987 = vand.u32 %v985, 15
      %v988 = vsub.s32 0, %v987
      %v989 = vsel %vm983, %v988, %v987
      %vm990 = vcmp.lt.s32.totalorder %v844, 0
      %v991 = vsub.s32 0, %v844
      %v992 = vsel %vm990, %v991, %v844
      %v993 = vshrl.u32 %v992, 4
      %v994 = vand.u32 %v992, 15
      %v995 = vsub.s32 0, %v994
      %v996 = vsel %vm990, %v995, %v994
      %vm997 = vcmp.lt.s32.totalorder %v845, 0
      %v998 = vsub.s32 0, %v845
      %v999 = vsel %vm997, %v998, %v845
      %v1000 = vshrl.u32 %v999, 4
      %v1001 = vand.u32 %v999, 15
      %v1002 = vsub.s32 0, %v1001
      %v1003 = vsel %vm997, %v1002, %v1001
      %vm1004 = vcmp.lt.s32.totalorder %v846, 0
      %v1005 = vsub.s32 0, %v846
      %v1006 = vsel %vm1004, %v1005, %v846
      %v1007 = vshrl.u32 %v1006, 4
      %v1008 = vand.u32 %v1006, 15
      %v1009 = vsub.s32 0, %v1008
      %v1010 = vsel %vm1004, %v1009, %v1008
      %vm1011 = vcmp.lt.s32.totalorder %v847, 0
      %v1012 = vsub.s32 0, %v847
      %v1013 = vsel %vm1011, %v1012, %v847
      %v1014 = vshrl.u32 %v1013, 4
      %v1015 = vand.u32 %v1013, 15
      %v1016 = vsub.s32 0, %v1015
      %v1017 = vsel %vm1011, %v1016, %v1015
      %vm1018 = vcmp.lt.s32.totalorder %v848, 0
      %v1019 = vsub.s32 0, %v848
      %v1020 = vsel %vm1018, %v1019, %v848
      %v1021 = vshrl.u32 %v1020, 4
      %v1022 = vand.u32 %v1020, 15
      %v1023 = vsub.s32 0, %v1022
      %v1024 = vsel %vm1018, %v1023, %v1022
      %vm1025 = vcmp.lt.s32.totalorder %v849, 0
      %v1026 = vsub.s32 0, %v849
      %v1027 = vsel %vm1025, %v1026, %v849
      %v1028 = vshrl.u32 %v1027, 4
      %v1029 = vand.u32 %v1027, 15
      %v1030 = vsub.s32 0, %v1029
      %v1031 = vsel %vm1025, %v1030, %v1029
      %vm1032 = vcmp.lt.s32.totalorder %v850, 0
      %v1033 = vsub.s32 0, %v850
      %v1034 = vsel %vm1032, %v1033, %v850
      %v1035 = vshrl.u32 %v1034, 4
      %v1036 = vand.u32 %v1034, 15
      %v1037 = vsub.s32 0, %v1036
      %v1038 = vsel %vm1032, %v1037, %v1036
      %vm1039 = vcmp.lt.s32.totalorder %v851, 0
      %v1040 = vsub.s32 0, %v851
      %v1041 = vsel %vm1039, %v1040, %v851
      %v1042 = vshrl.u32 %v1041, 4
      %v1043 = vand.u32 %v1041, 15
      %v1044 = vsub.s32 0, %v1043
      %v1045 = vsel %vm1039, %v1044, %v1043
      %vm1046 = vcmp.lt.s32.totalorder %v852, 0
      %v1047 = vsub.s32 0, %v852
      %v1048 = vsel %vm1046, %v1047, %v852
      %v1049 = vshrl.u32 %v1048, 4
      %v1050 = vand.u32 %v1048, 15
      %v1051 = vsub.s32 0, %v1050
      %v1052 = vsel %vm1046, %v1051, %v1050
      %vm1053 = vcmp.lt.s32.totalorder %v853, 0
      %v1054 = vsub.s32 0, %v853
      %v1055 = vsel %vm1053, %v1054, %v853
      %v1056 = vshrl.u32 %v1055, 4
      %v1057 = vand.u32 %v1055, 15
      %v1058 = vsub.s32 0, %v1057
      %v1059 = vsel %vm1053, %v1058, %v1057
      %vm1060 = vcmp.lt.s32.totalorder %v854, 0
      %v1061 = vsub.s32 0, %v854
      %v1062 = vsel %vm1060, %v1061, %v854
      %v1063 = vshrl.u32 %v1062, 4
      %v1064 = vand.u32 %v1062, 15
      %v1065 = vsub.s32 0, %v1064
      %v1066 = vsel %vm1060, %v1065, %v1064
      %vm1067 = vcmp.lt.s32.totalorder %v855, 0
      %v1068 = vsub.s32 0, %v855
      %v1069 = vsel %vm1067, %v1068, %v855
      %v1070 = vshrl.u32 %v1069, 4
      %v1071 = vand.u32 %v1069, 15
      %v1072 = vsub.s32 0, %v1071
      %v1073 = vsel %vm1067, %v1072, %v1071
      %vm1074 = vcmp.lt.s32.totalorder %v856, 0
      %v1075 = vsub.s32 0, %v856
      %v1076 = vsel %vm1074, %v1075, %v856
      %v1077 = vshrl.u32 %v1076, 4
      %v1078 = vand.u32 %v1076, 15
      %v1079 = vsub.s32 0, %v1078
      %v1080 = vsel %vm1074, %v1079, %v1078
      %vm1081 = vcmp.ne.s32.totalorder %v863, 0
      %vm1082 = vcmp.ne.s32.totalorder %v870, 0
      %vm1083 = vcmp.ne.s32.totalorder %v877, 0
      %vm1084 = vcmp.ne.s32.totalorder %v884, 0
      %vm1085 = vcmp.ne.s32.totalorder %v891, 0
      %vm1086 = vcmp.ne.s32.totalorder %v898, 0
      %vm1087 = vcmp.ne.s32.totalorder %v905, 0
      %vm1088 = vcmp.ne.s32.totalorder %v912, 0
      %vm1089 = vcmp.ne.s32.totalorder %v919, 0
      %vm1090 = vcmp.ne.s32.totalorder %v926, 0
      %vm1091 = vcmp.ne.s32.totalorder %v933, 0
      %vm1092 = vcmp.ne.s32.totalorder %v940, 0
      %vm1093 = vcmp.ne.s32.totalorder %v947, 0
      %vm1094 = vcmp.ne.s32.totalorder %v954, 0
      %vm1095 = vcmp.ne.s32.totalorder %v961, 0
      %vm1096 = vcmp.ne.s32.totalorder %v968, 0
      %vm1097 = vcmp.ne.s32.totalorder %v975, 0
      %vm1098 = vcmp.ne.s32.totalorder %v982, 0
      %vm1099 = vcmp.ne.s32.totalorder %v989, 0
      %vm1100 = vcmp.ne.s32.totalorder %v996, 0
      %vm1101 = vcmp.ne.s32.totalorder %v1003, 0
      %vm1102 = vcmp.ne.s32.totalorder %v1010, 0
      %vm1103 = vcmp.ne.s32.totalorder %v1017, 0
      %vm1104 = vcmp.ne.s32.totalorder %v1024, 0
      %vm1105 = vcmp.ne.s32.totalorder %v1031, 0
      %vm1106 = vcmp.ne.s32.totalorder %v1038, 0
      %vm1107 = vcmp.ne.s32.totalorder %v1045, 0
      %vm1108 = vcmp.ne.s32.totalorder %v1052, 0
      %vm1109 = vcmp.ne.s32.totalorder %v1059, 0
      %vm1110 = vcmp.ne.s32.totalorder %v1066, 0
      %vm1111 = vcmp.ne.s32.totalorder %v1073, 0
      %vm1112 = vcmp.ne.s32.totalorder %v1080, 0
      %vm1113 = vcmp.lt.s32.totalorder %v863, 0
      %vm1114 = vcmp.lt.s32.totalorder %v870, 0
      %vm1115 = vcmp.lt.s32.totalorder %v877, 0
      %vm1116 = vcmp.lt.s32.totalorder %v884, 0
      %vm1117 = vcmp.lt.s32.totalorder %v891, 0
      %vm1118 = vcmp.lt.s32.totalorder %v898, 0
      %vm1119 = vcmp.lt.s32.totalorder %v905, 0
      %vm1120 = vcmp.lt.s32.totalorder %v912, 0
      %vm1121 = vcmp.lt.s32.totalorder %v919, 0
      %vm1122 = vcmp.lt.s32.totalorder %v926, 0
      %vm1123 = vcmp.lt.s32.totalorder %v933, 0
      %vm1124 = vcmp.lt.s32.totalorder %v940, 0
      %vm1125 = vcmp.lt.s32.totalorder %v947, 0
      %vm1126 = vcmp.lt.s32.totalorder %v954, 0
      %vm1127 = vcmp.lt.s32.totalorder %v961, 0
      %vm1128 = vcmp.lt.s32.totalorder %v968, 0
      %vm1129 = vcmp.lt.s32.totalorder %v975, 0
      %vm1130 = vcmp.lt.s32.totalorder %v982, 0
      %vm1131 = vcmp.lt.s32.totalorder %v989, 0
      %vm1132 = vcmp.lt.s32.totalorder %v996, 0
      %vm1133 = vcmp.lt.s32.totalorder %v1003, 0
      %vm1134 = vcmp.lt.s32.totalorder %v1010, 0
      %vm1135 = vcmp.lt.s32.totalorder %v1017, 0
      %vm1136 = vcmp.lt.s32.totalorder %v1024, 0
      %vm1137 = vcmp.lt.s32.totalorder %v1031, 0
      %vm1138 = vcmp.lt.s32.totalorder %v1038, 0
      %vm1139 = vcmp.lt.s32.totalorder %v1045, 0
      %vm1140 = vcmp.lt.s32.totalorder %v1052, 0
      %vm1141 = vcmp.lt.s32.totalorder %v1059, 0
      %vm1142 = vcmp.lt.s32.totalorder %v1066, 0
      %vm1143 = vcmp.lt.s32.totalorder %v1073, 0
      %vm1144 = vcmp.lt.s32.totalorder %v1080, 0
      %vm1145 = vmand %vm1113, %vm1081
      %vm1146 = vmand %vm1114, %vm1082
      %vm1147 = vmand %vm1115, %vm1083
      %vm1148 = vmand %vm1116, %vm1084
      %vm1149 = vmand %vm1117, %vm1085
      %vm1150 = vmand %vm1118, %vm1086
      %vm1151 = vmand %vm1119, %vm1087
      %vm1152 = vmand %vm1120, %vm1088
      %vm1153 = vmand %vm1121, %vm1089
      %vm1154 = vmand %vm1122, %vm1090
      %vm1155 = vmand %vm1123, %vm1091
      %vm1156 = vmand %vm1124, %vm1092
      %vm1157 = vmand %vm1125, %vm1093
      %vm1158 = vmand %vm1126, %vm1094
      %vm1159 = vmand %vm1127, %vm1095
      %vm1160 = vmand %vm1128, %vm1096
      %vm1161 = vmand %vm1129, %vm1097
      %vm1162 = vmand %vm1130, %vm1098
      %vm1163 = vmand %vm1131, %vm1099
      %vm1164 = vmand %vm1132, %vm1100
      %vm1165 = vmand %vm1133, %vm1101
      %vm1166 = vmand %vm1134, %vm1102
      %vm1167 = vmand %vm1135, %vm1103
      %vm1168 = vmand %vm1136, %vm1104
      %vm1169 = vmand %vm1137, %vm1105
      %vm1170 = vmand %vm1138, %vm1106
      %vm1171 = vmand %vm1139, %vm1107
      %vm1172 = vmand %vm1140, %vm1108
      %vm1173 = vmand %vm1141, %vm1109
      %vm1174 = vmand %vm1142, %vm1110
      %vm1175 = vmand %vm1143, %vm1111
      %vm1176 = vmand %vm1144, %vm1112
      %v1177 = vadd.s32 %v863, 16
      %v1178 = vadd.s32 %v870, 16
      %v1179 = vadd.s32 %v877, 16
      %v1180 = vadd.s32 %v884, 16
      %v1181 = vadd.s32 %v891, 16
      %v1182 = vadd.s32 %v898, 16
      %v1183 = vadd.s32 %v905, 16
      %v1184 = vadd.s32 %v912, 16
      %v1185 = vadd.s32 %v919, 16
      %v1186 = vadd.s32 %v926, 16
      %v1187 = vadd.s32 %v933, 16
      %v1188 = vadd.s32 %v940, 16
      %v1189 = vadd.s32 %v947, 16
      %v1190 = vadd.s32 %v954, 16
      %v1191 = vadd.s32 %v961, 16
      %v1192 = vadd.s32 %v968, 16
      %v1193 = vadd.s32 %v975, 16
      %v1194 = vadd.s32 %v982, 16
      %v1195 = vadd.s32 %v989, 16
      %v1196 = vadd.s32 %v996, 16
      %v1197 = vadd.s32 %v1003, 16
      %v1198 = vadd.s32 %v1010, 16
      %v1199 = vadd.s32 %v1017, 16
      %v1200 = vadd.s32 %v1024, 16
      %v1201 = vadd.s32 %v1031, 16
      %v1202 = vadd.s32 %v1038, 16
      %v1203 = vadd.s32 %v1045, 16
      %v1204 = vadd.s32 %v1052, 16
      %v1205 = vadd.s32 %v1059, 16
      %v1206 = vadd.s32 %v1066, 16
      %v1207 = vadd.s32 %v1073, 16
      %v1208 = vadd.s32 %v1080, 16
      %v1209 = vsel %vm1145, %v1177, %v863
      %v1210 = vsel %vm1146, %v1178, %v870
      %v1211 = vsel %vm1147, %v1179, %v877
      %v1212 = vsel %vm1148, %v1180, %v884
      %v1213 = vsel %vm1149, %v1181, %v891
      %v1214 = vsel %vm1150, %v1182, %v898
      %v1215 = vsel %vm1151, %v1183, %v905
      %v1216 = vsel %vm1152, %v1184, %v912
      %v1217 = vsel %vm1153, %v1185, %v919
      %v1218 = vsel %vm1154, %v1186, %v926
      %v1219 = vsel %vm1155, %v1187, %v933
      %v1220 = vsel %vm1156, %v1188, %v940
      %v1221 = vsel %vm1157, %v1189, %v947
      %v1222 = vsel %vm1158, %v1190, %v954
      %v1223 = vsel %vm1159, %v1191, %v961
      %v1224 = vsel %vm1160, %v1192, %v968
      %v1225 = vsel %vm1161, %v1193, %v975
      %v1226 = vsel %vm1162, %v1194, %v982
      %v1227 = vsel %vm1163, %v1195, %v989
      %v1228 = vsel %vm1164, %v1196, %v996
      %v1229 = vsel %vm1165, %v1197, %v1003
      %v1230 = vsel %vm1166, %v1198, %v1010
      %v1231 = vsel %vm1167, %v1199, %v1017
      %v1232 = vsel %vm1168, %v1200, %v1024
      %v1233 = vsel %vm1169, %v1201, %v1031
      %v1234 = vsel %vm1170, %v1202, %v1038
      %v1235 = vsel %vm1171, %v1203, %v1045
      %v1236 = vsel %vm1172, %v1204, %v1052
      %v1237 = vsel %vm1173, %v1205, %v1059
      %v1238 = vsel %vm1174, %v1206, %v1066
      %v1239 = vsel %vm1175, %v1207, %v1073
      %v1240 = vsel %vm1176, %v1208, %v1080
      %vm1241 = vcmp.ne.s32.totalorder %v1209, 0
      %vm1242 = vcmp.ne.s32.totalorder %v1210, 0
      %vm1243 = vcmp.ne.s32.totalorder %v1211, 0
      %vm1244 = vcmp.ne.s32.totalorder %v1212, 0
      %vm1245 = vcmp.ne.s32.totalorder %v1213, 0
      %vm1246 = vcmp.ne.s32.totalorder %v1214, 0
      %vm1247 = vcmp.ne.s32.totalorder %v1215, 0
      %vm1248 = vcmp.ne.s32.totalorder %v1216, 0
      %vm1249 = vcmp.ne.s32.totalorder %v1217, 0
      %vm1250 = vcmp.ne.s32.totalorder %v1218, 0
      %vm1251 = vcmp.ne.s32.totalorder %v1219, 0
      %vm1252 = vcmp.ne.s32.totalorder %v1220, 0
      %vm1253 = vcmp.ne.s32.totalorder %v1221, 0
      %vm1254 = vcmp.ne.s32.totalorder %v1222, 0
      %vm1255 = vcmp.ne.s32.totalorder %v1223, 0
      %vm1256 = vcmp.ne.s32.totalorder %v1224, 0
      %vm1257 = vcmp.ne.s32.totalorder %v1225, 0
      %vm1258 = vcmp.ne.s32.totalorder %v1226, 0
      %vm1259 = vcmp.ne.s32.totalorder %v1227, 0
      %vm1260 = vcmp.ne.s32.totalorder %v1228, 0
      %vm1261 = vcmp.ne.s32.totalorder %v1229, 0
      %vm1262 = vcmp.ne.s32.totalorder %v1230, 0
      %vm1263 = vcmp.ne.s32.totalorder %v1231, 0
      %vm1264 = vcmp.ne.s32.totalorder %v1232, 0
      %vm1265 = vcmp.ne.s32.totalorder %v1233, 0
      %vm1266 = vcmp.ne.s32.totalorder %v1234, 0
      %vm1267 = vcmp.ne.s32.totalorder %v1235, 0
      %vm1268 = vcmp.ne.s32.totalorder %v1236, 0
      %vm1269 = vcmp.ne.s32.totalorder %v1237, 0
      %vm1270 = vcmp.ne.s32.totalorder %v1238, 0
      %vm1271 = vcmp.ne.s32.totalorder %v1239, 0
      %vm1272 = vcmp.ne.s32.totalorder %v1240, 0
      %vm1273 = vcmp.ne.s32.totalorder %v1209, 15
      %vm1274 = vcmp.ne.s32.totalorder %v1210, 15
      %vm1275 = vcmp.ne.s32.totalorder %v1211, 15
      %vm1276 = vcmp.ne.s32.totalorder %v1212, 15
      %vm1277 = vcmp.ne.s32.totalorder %v1213, 15
      %vm1278 = vcmp.ne.s32.totalorder %v1214, 15
      %vm1279 = vcmp.ne.s32.totalorder %v1215, 15
      %vm1280 = vcmp.ne.s32.totalorder %v1216, 15
      %vm1281 = vcmp.ne.s32.totalorder %v1217, 15
      %vm1282 = vcmp.ne.s32.totalorder %v1218, 15
      %vm1283 = vcmp.ne.s32.totalorder %v1219, 15
      %vm1284 = vcmp.ne.s32.totalorder %v1220, 15
      %vm1285 = vcmp.ne.s32.totalorder %v1221, 15
      %vm1286 = vcmp.ne.s32.totalorder %v1222, 15
      %vm1287 = vcmp.ne.s32.totalorder %v1223, 15
      %vm1288 = vcmp.ne.s32.totalorder %v1224, 15
      %vm1289 = vcmp.ne.s32.totalorder %v1225, 15
      %vm1290 = vcmp.ne.s32.totalorder %v1226, 15
      %vm1291 = vcmp.ne.s32.totalorder %v1227, 15
      %vm1292 = vcmp.ne.s32.totalorder %v1228, 15
      %vm1293 = vcmp.ne.s32.totalorder %v1229, 15
      %vm1294 = vcmp.ne.s32.totalorder %v1230, 15
      %vm1295 = vcmp.ne.s32.totalorder %v1231, 15
      %vm1296 = vcmp.ne.s32.totalorder %v1232, 15
      %vm1297 = vcmp.ne.s32.totalorder %v1233, 15
      %vm1298 = vcmp.ne.s32.totalorder %v1234, 15
      %vm1299 = vcmp.ne.s32.totalorder %v1235, 15
      %vm1300 = vcmp.ne.s32.totalorder %v1236, 15
      %vm1301 = vcmp.ne.s32.totalorder %v1237, 15
      %vm1302 = vcmp.ne.s32.totalorder %v1238, 15
      %vm1303 = vcmp.ne.s32.totalorder %v1239, 15
      %vm1304 = vcmp.ne.s32.totalorder %v1240, 15
      %v1305 = vld [vmem:[#allocation2 + $0x4] sm:$0x8]
      %v1306 = vld [vmem:[#allocation2 + $0x8] sm:$0xf]
      %v1307 = vld [vmem:[#allocation2 + $0xc] sm:$0xf]
      %v1308 = vld [vmem:[#allocation2 + $0x10] sm:$0xf]
      %v1309 = vld [vmem:[#allocation2 + $0x14] sm:$0xf]
      %v1310 = vld [vmem:[#allocation2 + $0x18] sm:$0xf]
      %v1311 = vld [vmem:[#allocation2 + $0x1c] sm:$0xf]
      %v1312 = vld [vmem:[#allocation2 + $0x20] sm:$0xf]
      %v1313 = vld [vmem:[#allocation2 + $0x24] sm:$0xf]
      %v1314 = vld [vmem:[#allocation2 + $0x28] sm:$0xf]
      %v1315 = vld [vmem:[#allocation2 + $0x2c] sm:$0xf]
      %v1316 = vld [vmem:[#allocation2 + $0x30] sm:$0xf]
      %v1317 = vld [vmem:[#allocation2 + $0x34] sm:$0xf]
      %v1318 = vld [vmem:[#allocation2 + $0x38] sm:$0xf]
      %v1319 = vld [vmem:[#allocation2 + $0x3c] sm:$0xf]
      %v1320 = vld [vmem:[#allocation2 + $0x40] sm:$0xf]
      %v1321 = vld [vmem:[#allocation2 + $0x44] sm:$0xf]
      %v1322 = vld [vmem:[#allocation2 + $0x48] sm:$0xf]
      %v1323 = vld [vmem:[#allocation2 + $0x4c] sm:$0xf]
      %v1324 = vld [vmem:[#allocation2 + $0x50] sm:$0xf]
      %v1325 = vld [vmem:[#allocation2 + $0x54] sm:$0xf]
      %v1326 = vld [vmem:[#allocation2 + $0x58] sm:$0xf]
      %v1327 = vld [vmem:[#allocation2 + $0x5c] sm:$0xf]
      %v1328 = vld [vmem:[#allocation2 + $0x60] sm:$0xf]
      %v1329 = vld [vmem:[#allocation2 + $0x64] sm:$0xf]
      %v1330 = vld [vmem:[#allocation2 + $0x68] sm:$0xf]
      %v1331 = vld [vmem:[#allocation2 + $0x6c] sm:$0xf]
      %v1332 = vld [vmem:[#allocation2 + $0x70] sm:$0xf]
      %v1333 = vld [vmem:[#allocation2 + $0x74] sm:$0xf]
      %v1334 = vld [vmem:[#allocation2 + $0x78] sm:$0xf]
      %v1335 = vld [vmem:[#allocation2 + $0x7c] sm:$0xf]
      %v1336 = vld [vmem:[#allocation2 + $0x80] sm:$0xf]
      %v1337 = vld [vmem:[#allocation2 + $0x84] sm:$0xf]
      %v1338 = vsel %vm1241, 1, 0
      %v1339 = vsel %vm1242, 1, 0
      %v1340 = vsel %vm1243, 1, 0
      %v1341 = vsel %vm1244, 1, 0
      %v1342 = vsel %vm1245, 1, 0
      %v1343 = vsel %vm1246, 1, 0
      %v1344 = vsel %vm1247, 1, 0
      %v1345 = vsel %vm1248, 1, 0
      %v1346 = vsel %vm1249, 1, 0
      %v1347 = vsel %vm1250, 1, 0
      %v1348 = vsel %vm1251, 1, 0
      %v1349 = vsel %vm1252, 1, 0
      %v1350 = vsel %vm1253, 1, 0
      %v1351 = vsel %vm1254, 1, 0
      %v1352 = vsel %vm1255, 1, 0
      %v1353 = vsel %vm1256, 1, 0
      %v1354 = vsel %vm1257, 1, 0
      %v1355 = vsel %vm1258, 1, 0
      %v1356 = vsel %vm1259, 1, 0
      %v1357 = vsel %vm1260, 1, 0
      %v1358 = vsel %vm1261, 1, 0
      %v1359 = vsel %vm1262, 1, 0
      %v1360 = vsel %vm1263, 1, 0
      %v1361 = vsel %vm1264, 1, 0
      %v1362 = vsel %vm1265, 1, 0
      %v1363 = vsel %vm1266, 1, 0
      %v1364 = vsel %vm1267, 1, 0
      %v1365 = vsel %vm1268, 1, 0
      %v1366 = vsel %vm1269, 1, 0
      %v1367 = vsel %vm1270, 1, 0
      %v1368 = vsel %vm1271, 1, 0
      %v1369 = vsel %vm1272, 1, 0
      %vm1370 = vcmp.eq.s32.totalorder %v1338, 1
      %vm1371 = vcmp.eq.s32.totalorder %v1339, 1
      %vm1372 = vcmp.eq.s32.totalorder %v1340, 1
      %vm1373 = vcmp.eq.s32.totalorder %v1341, 1
      %vm1374 = vcmp.eq.s32.totalorder %v1342, 1
      %vm1375 = vcmp.eq.s32.totalorder %v1343, 1
      %vm1376 = vcmp.eq.s32.totalorder %v1344, 1
      %vm1377 = vcmp.eq.s32.totalorder %v1345, 1
      %vm1378 = vcmp.eq.s32.totalorder %v1346, 1
      %vm1379 = vcmp.eq.s32.totalorder %v1347, 1
      %vm1380 = vcmp.eq.s32.totalorder %v1348, 1
      %vm1381 = vcmp.eq.s32.totalorder %v1349, 1
      %vm1382 = vcmp.eq.s32.totalorder %v1350, 1
      %vm1383 = vcmp.eq.s32.totalorder %v1351, 1
      %vm1384 = vcmp.eq.s32.totalorder %v1352, 1
      %vm1385 = vcmp.eq.s32.totalorder %v1353, 1
      %vm1386 = vcmp.eq.s32.totalorder %v1354, 1
      %vm1387 = vcmp.eq.s32.totalorder %v1355, 1
      %vm1388 = vcmp.eq.s32.totalorder %v1356, 1
      %vm1389 = vcmp.eq.s32.totalorder %v1357, 1
      %vm1390 = vcmp.eq.s32.totalorder %v1358, 1
      %vm1391 = vcmp.eq.s32.totalorder %v1359, 1
      %vm1392 = vcmp.eq.s32.totalorder %v1360, 1
      %vm1393 = vcmp.eq.s32.totalorder %v1361, 1
      %vm1394 = vcmp.eq.s32.totalorder %v1362, 1
      %vm1395 = vcmp.eq.s32.totalorder %v1363, 1
      %vm1396 = vcmp.eq.s32.totalorder %v1364, 1
      %vm1397 = vcmp.eq.s32.totalorder %v1365, 1
      %vm1398 = vcmp.eq.s32.totalorder %v1366, 1
      %vm1399 = vcmp.eq.s32.totalorder %v1367, 1
      %vm1400 = vcmp.eq.s32.totalorder %v1368, 1
      %vm1401 = vcmp.eq.s32.totalorder %v1369, 1
      %vm1402 = vmpackc.low %vm1370, %vm1370
      %vm1403 = vmpackc.low %vm1371, %vm1371
      %vm1404 = vmpackc.low %vm1372, %vm1372
      %vm1405 = vmpackc.low %vm1373, %vm1373
      %vm1406 = vmpackc.low %vm1374, %vm1374
      %vm1407 = vmpackc.low %vm1375, %vm1375
      %vm1408 = vmpackc.low %vm1376, %vm1376
      %vm1409 = vmpackc.low %vm1377, %vm1377
      %vm1410 = vmpackc.low %vm1378, %vm1378
      %vm1411 = vmpackc.low %vm1379, %vm1379
      %vm1412 = vmpackc.low %vm1380, %vm1380
      %vm1413 = vmpackc.low %vm1381, %vm1381
      %vm1414 = vmpackc.low %vm1382, %vm1382
      %vm1415 = vmpackc.low %vm1383, %vm1383
      %vm1416 = vmpackc.low %vm1384, %vm1384
      %vm1417 = vmpackc.low %vm1385, %vm1385
      %vm1418 = vmpackc.low %vm1386, %vm1386
      %vm1419 = vmpackc.low %vm1387, %vm1387
      %vm1420 = vmpackc.low %vm1388, %vm1388
      %vm1421 = vmpackc.low %vm1389, %vm1389
      %vm1422 = vmpackc.low %vm1390, %vm1390
      %vm1423 = vmpackc.low %vm1391, %vm1391
      %vm1424 = vmpackc.low %vm1392, %vm1392
      %vm1425 = vmpackc.low %vm1393, %vm1393
      %vm1426 = vmpackc.low %vm1394, %vm1394
      %vm1427 = vmpackc.low %vm1395, %vm1395
      %vm1428 = vmpackc.low %vm1396, %vm1396
      %vm1429 = vmpackc.low %vm1397, %vm1397
      %vm1430 = vmpackc.low %vm1398, %vm1398
      %vm1431 = vmpackc.low %vm1399, %vm1399
      %vm1432 = vmpackc.low %vm1400, %vm1400
      %vm1433 = vmpackc.low %vm1401, %vm1401
      %v1434 = vsel %vm1402, 65537, 0
      %v1435 = vsel %vm1403, 65537, 0
      %v1436 = vsel %vm1404, 65537, 0
      %v1437 = vsel %vm1405, 65537, 0
      %v1438 = vsel %vm1406, 65537, 0
      %v1439 = vsel %vm1407, 65537, 0
      %v1440 = vsel %vm1408, 65537, 0
      %v1441 = vsel %vm1409, 65537, 0
      %v1442 = vsel %vm1410, 65537, 0
      %v1443 = vsel %vm1411, 65537, 0
      %v1444 = vsel %vm1412, 65537, 0
      %v1445 = vsel %vm1413, 65537, 0
      %v1446 = vsel %vm1414, 65537, 0
      %v1447 = vsel %vm1415, 65537, 0
      %v1448 = vsel %vm1416, 65537, 0
      %v1449 = vsel %vm1417, 65537, 0
      %v1450 = vsel %vm1418, 65537, 0
      %v1451 = vsel %vm1419, 65537, 0
      %v1452 = vsel %vm1420, 65537, 0
      %v1453 = vsel %vm1421, 65537, 0
      %v1454 = vsel %vm1422, 65537, 0
      %v1455 = vsel %vm1423, 65537, 0
      %v1456 = vsel %vm1424, 65537, 0
      %v1457 = vsel %vm1425, 65537, 0
      %v1458 = vsel %vm1426, 65537, 0
      %v1459 = vsel %vm1427, 65537, 0
      %v1460 = vsel %vm1428, 65537, 0
      %v1461 = vsel %vm1429, 65537, 0
      %v1462 = vsel %vm1430, 65537, 0
      %v1463 = vsel %vm1431, 65537, 0
      %v1464 = vsel %vm1432, 65537, 0
      %v1465 = vsel %vm1433, 65537, 0
      %vm1466 = vsmask.f32 3328
      %vm1467 = vsmask.f32 7440
      %vm1468 = vmor %vm1466, %vm1467
      %v1470 = vshll.u32 %v1434, 16
      %v1472 = vrot.slane %v1470, 5
      %v1473 = vshrl.u32 %v1434, 16
      %v1475 = vrot.slane %v1473, 4
      %v1476 = vor.u32 %v1475, %v1472
      %v1477 = vrot.slane %v1476, 4
      %v1479 = vshll.u32 %v1435, 16
      %v1481 = vrot.slane %v1479, 5
      %v1482 = vsel %vm1468, %v1477, %v1481
      %v1483 = vshrl.u32 %v1435, 16
      %v1485 = vrot.slane %v1483, 4
      %v1486 = vor.u32 %v1485, %v1481
      %v1487 = vrot.slane %v1486, 4
      %v1489 = vshll.u32 %v1436, 16
      %v1491 = vrot.slane %v1489, 5
      %v1492 = vsel %vm1468, %v1487, %v1491
      %v1493 = vshrl.u32 %v1436, 16
      %v1495 = vrot.slane %v1493, 4
      %v1496 = vor.u32 %v1495, %v1491
      %v1497 = vrot.slane %v1496, 4
      %v1499 = vshll.u32 %v1437, 16
      %v1501 = vrot.slane %v1499, 5
      %v1502 = vsel %vm1468, %v1497, %v1501
      %v1503 = vshrl.u32 %v1437, 16
      %v1505 = vrot.slane %v1503, 4
      %v1506 = vor.u32 %v1505, %v1501
      %v1507 = vrot.slane %v1506, 4
      %v1509 = vshll.u32 %v1438, 16
      %v1511 = vrot.slane %v1509, 5
      %v1512 = vsel %vm1468, %v1507, %v1511
      %v1513 = vshrl.u32 %v1438, 16
      %v1515 = vrot.slane %v1513, 4
      %v1516 = vor.u32 %v1515, %v1511
      %v1517 = vrot.slane %v1516, 4
      %v1519 = vshll.u32 %v1439, 16
      %v1521 = vrot.slane %v1519, 5
      %v1522 = vsel %vm1468, %v1517, %v1521
      %v1523 = vshrl.u32 %v1439, 16
      %v1525 = vrot.slane %v1523, 4
      %v1526 = vor.u32 %v1525, %v1521
      %v1527 = vrot.slane %v1526, 4
      %v1529 = vshll.u32 %v1440, 16
      %v1531 = vrot.slane %v1529, 5
      %v1532 = vsel %vm1468, %v1527, %v1531
      %v1533 = vshrl.u32 %v1440, 16
      %v1535 = vrot.slane %v1533, 4
      %v1536 = vor.u32 %v1535, %v1531
      %v1537 = vrot.slane %v1536, 4
      %v1539 = vshll.u32 %v1441, 16
      %v1541 = vrot.slane %v1539, 5
      %v1542 = vsel %vm1468, %v1537, %v1541
      %v1543 = vshrl.u32 %v1441, 16
      %v1545 = vrot.slane %v1543, 4
      %v1546 = vor.u32 %v1545, %v1541
      %v1547 = vrot.slane %v1546, 4
      %v1549 = vshll.u32 %v1442, 16
      %v1551 = vrot.slane %v1549, 5
      %v1552 = vsel %vm1468, %v1547, %v1551
      %v1553 = vshrl.u32 %v1442, 16
      %v1555 = vrot.slane %v1553, 4
      %v1556 = vor.u32 %v1555, %v1551
      %v1557 = vrot.slane %v1556, 4
      %v1559 = vshll.u32 %v1443, 16
      %v1561 = vrot.slane %v1559, 5
      %v1562 = vsel %vm1468, %v1557, %v1561
      %v1563 = vshrl.u32 %v1443, 16
      %v1565 = vrot.slane %v1563, 4
      %v1566 = vor.u32 %v1565, %v1561
      %v1567 = vrot.slane %v1566, 4
      %v1569 = vshll.u32 %v1444, 16
      %v1571 = vrot.slane %v1569, 5
      %v1572 = vsel %vm1468, %v1567, %v1571
      %v1573 = vshrl.u32 %v1444, 16
      %v1575 = vrot.slane %v1573, 4
      %v1576 = vor.u32 %v1575, %v1571
      %v1577 = vrot.slane %v1576, 4
      %v1579 = vshll.u32 %v1445, 16
      %v1581 = vrot.slane %v1579, 5
      %v1582 = vsel %vm1468, %v1577, %v1581
      %v1583 = vshrl.u32 %v1445, 16
      %v1585 = vrot.slane %v1583, 4
      %v1586 = vor.u32 %v1585, %v1581
      %v1587 = vrot.slane %v1586, 4
      %v1589 = vshll.u32 %v1446, 16
      %v1591 = vrot.slane %v1589, 5
      %v1592 = vsel %vm1468, %v1587, %v1591
      %v1593 = vshrl.u32 %v1446, 16
      %v1595 = vrot.slane %v1593, 4
      %v1596 = vor.u32 %v1595, %v1591
      %v1597 = vrot.slane %v1596, 4
      %v1599 = vshll.u32 %v1447, 16
      %v1601 = vrot.slane %v1599, 5
      %v1602 = vsel %vm1468, %v1597, %v1601
      %v1603 = vshrl.u32 %v1447, 16
      %v1605 = vrot.slane %v1603, 4
      %v1606 = vor.u32 %v1605, %v1601
      %v1607 = vrot.slane %v1606, 4
      %v1609 = vshll.u32 %v1448, 16
      %v1611 = vrot.slane %v1609, 5
      %v1612 = vsel %vm1468, %v1607, %v1611
      %v1613 = vshrl.u32 %v1448, 16
      %v1615 = vrot.slane %v1613, 4
      %v1616 = vor.u32 %v1615, %v1611
      %v1617 = vrot.slane %v1616, 4
      %v1619 = vshll.u32 %v1449, 16
      %v1621 = vrot.slane %v1619, 5
      %v1622 = vsel %vm1468, %v1617, %v1621
      %v1623 = vshrl.u32 %v1449, 16
      %v1625 = vrot.slane %v1623, 4
      %v1626 = vor.u32 %v1625, %v1621
      %v1627 = vrot.slane %v1626, 4
      %v1629 = vshll.u32 %v1450, 16
      %v1631 = vrot.slane %v1629, 5
      %v1632 = vsel %vm1468, %v1627, %v1631
      %v1633 = vshrl.u32 %v1450, 16
      %v1635 = vrot.slane %v1633, 4
      %v1636 = vor.u32 %v1635, %v1631
      %v1637 = vrot.slane %v1636, 4
      %v1639 = vshll.u32 %v1451, 16
      %v1641 = vrot.slane %v1639, 5
      %v1642 = vsel %vm1468, %v1637, %v1641
      %v1643 = vshrl.u32 %v1451, 16
      %v1645 = vrot.slane %v1643, 4
      %v1646 = vor.u32 %v1645, %v1641
      %v1647 = vrot.slane %v1646, 4
      %v1649 = vshll.u32 %v1452, 16
      %v1651 = vrot.slane %v1649, 5
      %v1652 = vsel %vm1468, %v1647, %v1651
      %v1653 = vshrl.u32 %v1452, 16
      %v1655 = vrot.slane %v1653, 4
      %v1656 = vor.u32 %v1655, %v1651
      %v1657 = vrot.slane %v1656, 4
      %v1659 = vshll.u32 %v1453, 16
      %v1661 = vrot.slane %v1659, 5
      %v1662 = vsel %vm1468, %v1657, %v1661
      %v1663 = vshrl.u32 %v1453, 16
      %v1665 = vrot.slane %v1663, 4
      %v1666 = vor.u32 %v1665, %v1661
      %v1667 = vrot.slane %v1666, 4
      %v1669 = vshll.u32 %v1454, 16
      %v1671 = vrot.slane %v1669, 5
      %v1672 = vsel %vm1468, %v1667, %v1671
      %v1673 = vshrl.u32 %v1454, 16
      %v1675 = vrot.slane %v1673, 4
      %v1676 = vor.u32 %v1675, %v1671
      %v1677 = vrot.slane %v1676, 4
      %v1679 = vshll.u32 %v1455, 16
      %v1681 = vrot.slane %v1679, 5
      %v1682 = vsel %vm1468, %v1677, %v1681
      %v1683 = vshrl.u32 %v1455, 16
      %v1685 = vrot.slane %v1683, 4
      %v1686 = vor.u32 %v1685, %v1681
      %v1687 = vrot.slane %v1686, 4
      %v1689 = vshll.u32 %v1456, 16
      %v1691 = vrot.slane %v1689, 5
      %v1692 = vsel %vm1468, %v1687, %v1691
      %v1693 = vshrl.u32 %v1456, 16
      %v1695 = vrot.slane %v1693, 4
      %v1696 = vor.u32 %v1695, %v1691
      %v1697 = vrot.slane %v1696, 4
      %v1699 = vshll.u32 %v1457, 16
      %v1701 = vrot.slane %v1699, 5
      %v1702 = vsel %vm1468, %v1697, %v1701
      %v1703 = vshrl.u32 %v1457, 16
      %v1705 = vrot.slane %v1703, 4
      %v1706 = vor.u32 %v1705, %v1701
      %v1707 = vrot.slane %v1706, 4
      %v1709 = vshll.u32 %v1458, 16
      %v1711 = vrot.slane %v1709, 5
      %v1712 = vsel %vm1468, %v1707, %v1711
      %v1713 = vshrl.u32 %v1458, 16
      %v1715 = vrot.slane %v1713, 4
      %v1716 = vor.u32 %v1715, %v1711
      %v1717 = vrot.slane %v1716, 4
      %v1719 = vshll.u32 %v1459, 16
      %v1721 = vrot.slane %v1719, 5
      %v1722 = vsel %vm1468, %v1717, %v1721
      %v1723 = vshrl.u32 %v1459, 16
      %v1725 = vrot.slane %v1723, 4
      %v1726 = vor.u32 %v1725, %v1721
      %v1727 = vrot.slane %v1726, 4
      %v1729 = vshll.u32 %v1460, 16
      %v1731 = vrot.slane %v1729, 5
      %v1732 = vsel %vm1468, %v1727, %v1731
      %v1733 = vshrl.u32 %v1460, 16
      %v1735 = vrot.slane %v1733, 4
      %v1736 = vor.u32 %v1735, %v1731
      %v1737 = vrot.slane %v1736, 4
      %v1739 = vshll.u32 %v1461, 16
      %v1741 = vrot.slane %v1739, 5
      %v1742 = vsel %vm1468, %v1737, %v1741
      %v1743 = vshrl.u32 %v1461, 16
      %v1745 = vrot.slane %v1743, 4
      %v1746 = vor.u32 %v1745, %v1741
      %v1747 = vrot.slane %v1746, 4
      %v1749 = vshll.u32 %v1462, 16
      %v1751 = vrot.slane %v1749, 5
      %v1752 = vsel %vm1468, %v1747, %v1751
      %v1753 = vshrl.u32 %v1462, 16
      %v1755 = vrot.slane %v1753, 4
      %v1756 = vor.u32 %v1755, %v1751
      %v1757 = vrot.slane %v1756, 4
      %v1759 = vshll.u32 %v1463, 16
      %v1761 = vrot.slane %v1759, 5
      %v1762 = vsel %vm1468, %v1757, %v1761
      %v1763 = vshrl.u32 %v1463, 16
      %v1765 = vrot.slane %v1763, 4
      %v1766 = vor.u32 %v1765, %v1761
      %v1767 = vrot.slane %v1766, 4
      %v1769 = vshll.u32 %v1464, 16
      %v1771 = vrot.slane %v1769, 5
      %v1772 = vsel %vm1468, %v1767, %v1771
      %v1773 = vshrl.u32 %v1464, 16
      %v1775 = vrot.slane %v1773, 4
      %v1776 = vor.u32 %v1775, %v1771
      %v1777 = vrot.slane %v1776, 4
      %v1779 = vshll.u32 %v1465, 16
      %v1781 = vrot.slane %v1779, 5
      %v1782 = vsel %vm1468, %v1777, %v1781
      %v1783 = vshrl.u32 %v1465, 16
      %v1785 = vrot.slane %v1783, 4
      %v1786 = vor.u32 %v1785, %v1781
      %v1787 = vrot.slane %v1786, 4
      %vm1788 = vcmp.ne.s16.totalorder %v1472, 0
      %vm1789 = vcmp.ne.s16.totalorder %v1482, 0
      %vm1790 = vcmp.ne.s16.totalorder %v1492, 0
      %vm1791 = vcmp.ne.s16.totalorder %v1502, 0
      %vm1792 = vcmp.ne.s16.totalorder %v1512, 0
      %vm1793 = vcmp.ne.s16.totalorder %v1522, 0
      %vm1794 = vcmp.ne.s16.totalorder %v1532, 0
      %vm1795 = vcmp.ne.s16.totalorder %v1542, 0
      %vm1796 = vcmp.ne.s16.totalorder %v1552, 0
      %vm1797 = vcmp.ne.s16.totalorder %v1562, 0
      %vm1798 = vcmp.ne.s16.totalorder %v1572, 0
      %vm1799 = vcmp.ne.s16.totalorder %v1582, 0
      %vm1800 = vcmp.ne.s16.totalorder %v1592, 0
      %vm1801 = vcmp.ne.s16.totalorder %v1602, 0
      %vm1802 = vcmp.ne.s16.totalorder %v1612, 0
      %vm1803 = vcmp.ne.s16.totalorder %v1622, 0
      %vm1804 = vcmp.ne.s16.totalorder %v1632, 0
      %vm1805 = vcmp.ne.s16.totalorder %v1642, 0
      %vm1806 = vcmp.ne.s16.totalorder %v1652, 0
      %vm1807 = vcmp.ne.s16.totalorder %v1662, 0
      %vm1808 = vcmp.ne.s16.totalorder %v1672, 0
      %vm1809 = vcmp.ne.s16.totalorder %v1682, 0
      %vm1810 = vcmp.ne.s16.totalorder %v1692, 0
      %vm1811 = vcmp.ne.s16.totalorder %v1702, 0
      %vm1812 = vcmp.ne.s16.totalorder %v1712, 0
      %vm1813 = vcmp.ne.s16.totalorder %v1722, 0
      %vm1814 = vcmp.ne.s16.totalorder %v1732, 0
      %vm1815 = vcmp.ne.s16.totalorder %v1742, 0
      %vm1816 = vcmp.ne.s16.totalorder %v1752, 0
      %vm1817 = vcmp.ne.s16.totalorder %v1762, 0
      %vm1818 = vcmp.ne.s16.totalorder %v1772, 0
      %vm1819 = vcmp.ne.s16.totalorder %v1782, 0
      %vm1820 = vcmp.ne.s16.totalorder %v1787, 0
      %v1821 = vsel %vm1788, %v1305, 0
      %v1822 = vsel %vm1789, %v1306, 0
      %v1823 = vsel %vm1790, %v1307, 0
      %v1824 = vsel %vm1791, %v1308, 0
      %v1825 = vsel %vm1792, %v1309, 0
      %v1826 = vsel %vm1793, %v1310, 0
      %v1827 = vsel %vm1794, %v1311, 0
      %v1828 = vsel %vm1795, %v1312, 0
      %v1829 = vsel %vm1796, %v1313, 0
      %v1830 = vsel %vm1797, %v1314, 0
      %v1831 = vsel %vm1798, %v1315, 0
      %v1832 = vsel %vm1799, %v1316, 0
      %v1833 = vsel %vm1800, %v1317, 0
      %v1834 = vsel %vm1801, %v1318, 0
      %v1835 = vsel %vm1802, %v1319, 0
      %v1836 = vsel %vm1803, %v1320, 0
      %v1837 = vsel %vm1804, %v1321, 0
      %v1838 = vsel %vm1805, %v1322, 0
      %v1839 = vsel %vm1806, %v1323, 0
      %v1840 = vsel %vm1807, %v1324, 0
      %v1841 = vsel %vm1808, %v1325, 0
      %v1842 = vsel %vm1809, %v1326, 0
      %v1843 = vsel %vm1810, %v1327, 0
      %v1844 = vsel %vm1811, %v1328, 0
      %v1845 = vsel %vm1812, %v1329, 0
      %v1846 = vsel %vm1813, %v1330, 0
      %v1847 = vsel %vm1814, %v1331, 0
      %v1848 = vsel %vm1815, %v1332, 0
      %v1849 = vsel %vm1816, %v1333, 0
      %v1850 = vsel %vm1817, %v1334, 0
      %v1851 = vsel %vm1818, %v1335, 0
      %v1852 = vsel %vm1819, %v1336, 0
      %v1853 = vsel %vm1820, %v1337, 0
      %v1854 = vld [vmem:[%s3] sm:$0x3]
      %s1855 = scalar_lea.vmem %s3, 2
      %v1856 = vld [vmem:[%s1855] sm:$0x3]
      %v1889 = vunpack.c.l.b16 %v1306
      %v1890 = vunpack.c.l.b16 %v1307
      %v1891 = vunpack.c.l.b16 %v1308
      %v1892 = vunpack.c.l.b16 %v1309
      %v1893 = vunpack.c.l.b16 %v1310
      %v1894 = vunpack.c.l.b16 %v1311
      %v1895 = vunpack.c.l.b16 %v1312
      %v1896 = vunpack.c.l.b16 %v1313
      %v1897 = vunpack.c.l.b16 %v1314
      %v1898 = vunpack.c.l.b16 %v1315
      %v1899 = vunpack.c.l.b16 %v1316
      %v1900 = vunpack.c.l.b16 %v1317
      %v1901 = vunpack.c.l.b16 %v1318
      %v1902 = vunpack.c.l.b16 %v1319
      %v1903 = vunpack.c.l.b16 %v1320
      %v1904 = vunpack.c.l.b16 %v1321
      %v1905 = vunpack.c.l.b16 %v1322
      %v1906 = vunpack.c.l.b16 %v1323
      %v1907 = vunpack.c.l.b16 %v1324
      %v1908 = vunpack.c.l.b16 %v1325
      %v1909 = vunpack.c.l.b16 %v1326
      %v1910 = vunpack.c.l.b16 %v1327
      %v1911 = vunpack.c.l.b16 %v1328
      %v1912 = vunpack.c.l.b16 %v1329
      %v1913 = vunpack.c.l.b16 %v1330
      %v1914 = vunpack.c.l.b16 %v1331
      %v1915 = vunpack.c.l.b16 %v1332
      %v1916 = vunpack.c.l.b16 %v1333
      %v1917 = vunpack.c.l.b16 %v1334
      %v1918 = vunpack.c.l.b16 %v1335
      %v1919 = vunpack.c.l.b16 %v1336
      %v1920 = vunpack.c.l.b16 %v1337
      %v1921 = vpack.c.b16 %v1890, %v1889
      %v1922 = vpack.c.b16 %v1892, %v1891
      %v1923 = vpack.c.b16 %v1894, %v1893
      %v1924 = vpack.c.b16 %v1896, %v1895
      %v1925 = vpack.c.b16 %v1898, %v1897
      %v1926 = vpack.c.b16 %v1900, %v1899
      %v1927 = vpack.c.b16 %v1902, %v1901
      %v1928 = vpack.c.b16 %v1904, %v1903
      %v1929 = vpack.c.b16 %v1906, %v1905
      %v1930 = vpack.c.b16 %v1908, %v1907
      %v1931 = vpack.c.b16 %v1910, %v1909
      %v1932 = vpack.c.b16 %v1912, %v1911
      %v1933 = vpack.c.b16 %v1914, %v1913
      %v1934 = vpack.c.b16 %v1916, %v1915
      %v1935 = vpack.c.b16 %v1918, %v1917
      %v1936 = vpack.c.b16 %v1920, %v1919
      %vm1937 = vcmask 31744
      %v1939 = vsel %vm1937, %v1921, 0
      %v1942 = vsel %vm1937, %v1922, 0
      %v1945 = vsel %vm1937, %v1923, 0
      %v1948 = vsel %vm1937, %v1924, 0
      %v1951 = vsel %vm1937, %v1925, 0
      %v1954 = vsel %vm1937, %v1926, 0
      %v1957 = vsel %vm1937, %v1927, 0
      %v1960 = vsel %vm1937, %v1928, 0
      %v1963 = vsel %vm1937, %v1929, 0
      %v1966 = vsel %vm1937, %v1930, 0
      %v1969 = vsel %vm1937, %v1931, 0
      %v1972 = vsel %vm1937, %v1932, 0
      %v1975 = vsel %vm1937, %v1933, 0
      %v1978 = vsel %vm1937, %v1934, 0
      %v1981 = vsel %vm1937, %v1935, 0
      %v1984 = vsel %vm1937, %v1936, 0
      %vm1986 = vcmask 1041408
      %v1988 = vsel %vm1986, %v1856, 0
      %1990 = vmatprep.subr.bf16.mxu0 0
      %1991 = vmatpush1.bf16.msra.mxu0 %v1988
      %1992 = vmatprep.subr.bf16.mxu0 0
      %1993 = vmatpush1.bf16.msra.mxu0 0
      %1994 = vmatprep.subr.bf16.mxu0 0
      %1995 = vmatpush1.bf16.msra.mxu0 0
      %1996 = vmatprep.subr.bf16.mxu0 0
      %1997 = vmatpush1.bf16.msra.mxu0 0
      %1998 = vmatprep.subr.bf16.mxu0 0
      %1999 = vmatpush1.bf16.msra.mxu0 0
      %2000 = vmatprep.subr.bf16.mxu0 0
      %2001 = vmatpush1.bf16.msra.mxu0 0
      %2002 = vmatprep.subr.bf16.mxu0 0
      %2003 = vmatpush1.bf16.msra.mxu0 0
      %2004 = vmatprep.subr.bf16.mxu0 0
      %2005 = vmatpush1.bf16.msra.mxu0 0
      %2006 = vmatprep.subr.bf16.mxu0 0
      %2007 = vmatpush1.bf16.msra.mxu0 0
      %2008 = vmatprep.subr.bf16.mxu0 0
      %2009 = vmatpush1.bf16.msra.mxu0 0
      %2010 = vmatprep.subr.bf16.mxu0 0
      %2011 = vmatpush1.bf16.msra.mxu0 0
      %2012 = vmatprep.subr.bf16.mxu0 0
      %2013 = vmatpush1.bf16.msra.mxu0 0
      %2014 = vmatprep.subr.bf16.mxu0 0
      %2015 = vmatpush1.bf16.msra.mxu0 0
      %2016 = vmatprep.subr.bf16.mxu0 0
      %2017 = vmatpush1.bf16.msra.mxu0 0
      %2018 = vmatprep.subr.bf16.mxu0 0
      %2019 = vmatpush1.bf16.msra.mxu0 0
      %2020 = vmatprep.subr.bf16.mxu0 0
      %2021 = vmatpush1.bf16.msra.mxu0 0
      %2022 = vmatprep.mubr.bf16.mxu0 0
      %2023 = vmatmul.mubr.bf16.gmra.mrb[0].mxu0 %v1939
      %v2024 = vpop.f32.mrb[0].mxu0
      %v2025 = vadd.f32 0.0, %v2024
      %v2026 = vpop.f32.mrb[0].mxu0
      %v2027 = vpop.f32.mrb[0].mxu0
      %v2028 = vadd.f32 0.0, %v2027
      %v2029 = vpop.f32.mrb[0].mxu0
      %2030 = vmatprep.mubr.bf16.mxu0 0
      %2031 = vmatmul.mubr.bf16.gmra.mrb[0].mxu0 %v1942
      %v2032 = vpop.f32.mrb[0].mxu0
      %v2033 = vadd.f32 0.0, %v2032
      %v2034 = vpop.f32.mrb[0].mxu0
      %v2035 = vpop.f32.mrb[0].mxu0
      %v2036 = vadd.f32 0.0, %v2035
      %v2037 = vpop.f32.mrb[0].mxu0
      %2038 = vmatprep.mubr.bf16.mxu0 0
      %2039 = vmatmul.mubr.bf16.gmra.mrb[0].mxu0 %v1945
      %v2040 = vpop.f32.mrb[0].mxu0
      %v2041 = vadd.f32 0.0, %v2040
      %v2042 = vpop.f32.mrb[0].mxu0
      %v2043 = vpop.f32.mrb[0].mxu0
      %v2044 = vadd.f32 0.0, %v2043
      %v2045 = vpop.f32.mrb[0].mxu0
      %2046 = vmatprep.mubr.bf16.mxu0 0
      %2047 = vmatmul.mubr.bf16.gmra.mrb[0].mxu0 %v1948
      %v2048 = vpop.f32.mrb[0].mxu0
      %v2049 = vadd.f32 0.0, %v2048
      %v2050 = vpop.f32.mrb[0].mxu0
      %v2051 = vpop.f32.mrb[0].mxu0
      %v2052 = vadd.f32 0.0, %v2051
      %v2053 = vpop.f32.mrb[0].mxu0
      %2054 = vmatprep.mubr.bf16.mxu0 0
      %2055 = vmatmul.mubr.bf16.gmra.mrb[0].mxu0 %v1951
      %v2056 = vpop.f32.mrb[0].mxu0
      %v2057 = vadd.f32 0.0, %v2056
      %v2058 = vpop.f32.mrb[0].mxu0
      %v2059 = vpop.f32.mrb[0].mxu0
      %v2060 = vadd.f32 0.0, %v2059
      %v2061 = vpop.f32.mrb[0].mxu0
      %2062 = vmatprep.mubr.bf16.mxu0 0
      %2063 = vmatmul.mubr.bf16.gmra.mrb[0].mxu0 %v1954
      %v2064 = vpop.f32.mrb[0].mxu0
      %v2065 = vadd.f32 0.0, %v2064
      %v2066 = vpop.f32.mrb[0].mxu0
      %v2067 = vpop.f32.mrb[0].mxu0
      %v2068 = vadd.f32 0.0, %v2067
      %v2069 = vpop.f32.mrb[0].mxu0
      %2070 = vmatprep.mubr.bf16.mxu0 0
      %2071 = vmatmul.mubr.bf16.gmra.mrb[0].mxu0 %v1957
      %v2072 = vpop.f32.mrb[0].mxu0
      %v2073 = vadd.f32 0.0, %v2072
      %v2074 = vpop.f32.mrb[0].mxu0
      %v2075 = vpop.f32.mrb[0].mxu0
      %v2076 = vadd.f32 0.0, %v2075
      %v2077 = vpop.f32.mrb[0].mxu0
      %2078 = vmatprep.mubr.bf16.mxu0 0
      %2079 = vmatmul.mubr.bf16.gmra.mrb[0].mxu0 %v1960
      %v2080 = vpop.f32.mrb[0].mxu0
      %v2081 = vadd.f32 0.0, %v2080
      %v2082 = vpop.f32.mrb[0].mxu0
      %v2083 = vpop.f32.mrb[0].mxu0
      %v2084 = vadd.f32 0.0, %v2083
      %v2085 = vpop.f32.mrb[0].mxu0
      %2086 = vmatprep.mubr.bf16.mxu0 0
      %2087 = vmatmul.mubr.bf16.gmra.mrb[0].mxu0 %v1963
      %v2088 = vpop.f32.mrb[0].mxu0
      %v2089 = vadd.f32 0.0, %v2088
      %v2090 = vpop.f32.mrb[0].mxu0
      %v2091 = vpop.f32.mrb[0].mxu0
      %v2092 = vadd.f32 0.0, %v2091
      %v2093 = vpop.f32.mrb[0].mxu0
      %2094 = vmatprep.mubr.bf16.mxu0 0
      %2095 = vmatmul.mubr.bf16.gmra.mrb[0].mxu0 %v1966
      %v2096 = vpop.f32.mrb[0].mxu0
      %v2097 = vadd.f32 0.0, %v2096
      %v2098 = vpop.f32.mrb[0].mxu0
      %v2099 = vpop.f32.mrb[0].mxu0
      %v2100 = vadd.f32 0.0, %v2099
      %v2101 = vpop.f32.mrb[0].mxu0
      %2102 = vmatprep.mubr.bf16.mxu0 0
      %2103 = vmatmul.mubr.bf16.gmra.mrb[0].mxu0 %v1969
      %v2104 = vpop.f32.mrb[0].mxu0
      %v2105 = vadd.f32 0.0, %v2104
      %v2106 = vpop.f32.mrb[0].mxu0
      %v2107 = vpop.f32.mrb[0].mxu0
      %v2108 = vadd.f32 0.0, %v2107
      %v2109 = vpop.f32.mrb[0].mxu0
      %2110 = vmatprep.mubr.bf16.mxu0 0
      %2111 = vmatmul.mubr.bf16.gmra.mrb[0].mxu0 %v1972
      %v2112 = vpop.f32.mrb[0].mxu0
      %v2113 = vadd.f32 0.0, %v2112
      %v2114 = vpop.f32.mrb[0].mxu0
      %v2115 = vpop.f32.mrb[0].mxu0
      %v2116 = vadd.f32 0.0, %v2115
      %v2117 = vpop.f32.mrb[0].mxu0
      %2118 = vmatprep.mubr.bf16.mxu0 0
      %2119 = vmatmul.mubr.bf16.gmra.mrb[0].mxu0 %v1975
      %v2120 = vpop.f32.mrb[0].mxu0
      %v2121 = vadd.f32 0.0, %v2120
      %v2122 = vpop.f32.mrb[0].mxu0
      %v2123 = vpop.f32.mrb[0].mxu0
      %v2124 = vadd.f32 0.0, %v2123
      %v2125 = vpop.f32.mrb[0].mxu0
      %2126 = vmatprep.mubr.bf16.mxu0 0
      %2127 = vmatmul.mubr.bf16.gmra.mrb[0].mxu0 %v1978
      %v2128 = vpop.f32.mrb[0].mxu0
      %v2129 = vadd.f32 0.0, %v2128
      %v2130 = vpop.f32.mrb[0].mxu0
      %v2131 = vpop.f32.mrb[0].mxu0
      %v2132 = vadd.f32 0.0, %v2131
      %v2133 = vpop.f32.mrb[0].mxu0
      %2134 = vmatprep.mubr.bf16.mxu0 0
      %2135 = vmatmul.mubr.bf16.gmra.mrb[0].mxu0 %v1981
      %v2136 = vpop.f32.mrb[0].mxu0
      %v2137 = vadd.f32 0.0, %v2136
      %v2138 = vpop.f32.mrb[0].mxu0
      %v2139 = vpop.f32.mrb[0].mxu0
      %v2140 = vadd.f32 0.0, %v2139
      %v2141 = vpop.f32.mrb[0].mxu0
      %2142 = vmatprep.mubr.bf16.mxu0 0
      %2143 = vmatmul.mubr.bf16.gmra.mrb[0].mxu0 %v1984
      %v2144 = vpop.f32.mrb[0].mxu0
      %v2145 = vadd.f32 0.0, %v2144
      %v2146 = vpop.f32.mrb[0].mxu0
      %v2147 = vpop.f32.mrb[0].mxu0
      %v2148 = vadd.f32 0.0, %v2147
      %v2149 = vpop.f32.mrb[0].mxu0
      %2150 = vdwg.mxu0
      %v2184 = vunpack.c.l.b16 %v1821
      %v2185 = vunpack.c.l.b16 %v1822
      %v2186 = vunpack.c.l.b16 %v1823
      %v2187 = vunpack.c.l.b16 %v1824
      %v2188 = vunpack.c.l.b16 %v1825
      %v2189 = vunpack.c.l.b16 %v1826
      %v2190 = vunpack.c.l.b16 %v1827
      %v2191 = vunpack.c.l.b16 %v1828
      %v2192 = vunpack.c.l.b16 %v1829
      %v2193 = vunpack.c.l.b16 %v1830
      %v2194 = vunpack.c.l.b16 %v1831
      %v2195 = vunpack.c.l.b16 %v1832
      %v2196 = vunpack.c.l.b16 %v1833
      %v2197 = vunpack.c.l.b16 %v1834
      %v2198 = vunpack.c.l.b16 %v1835
      %v2199 = vunpack.c.l.b16 %v1836
      %v2200 = vunpack.c.l.b16 %v1837
      %v2201 = vunpack.c.l.b16 %v1838
      %v2202 = vunpack.c.l.b16 %v1839
      %v2203 = vunpack.c.l.b16 %v1840
      %v2204 = vunpack.c.l.b16 %v1841
      %v2205 = vunpack.c.l.b16 %v1842
      %v2206 = vunpack.c.l.b16 %v1843
      %v2207 = vunpack.c.l.b16 %v1844
      %v2208 = vunpack.c.l.b16 %v1845
      %v2209 = vunpack.c.l.b16 %v1846
      %v2210 = vunpack.c.l.b16 %v1847
      %v2211 = vunpack.c.l.b16 %v1848
      %v2212 = vunpack.c.l.b16 %v1849
      %v2213 = vunpack.c.l.b16 %v1850
      %v2214 = vunpack.c.l.b16 %v1851
      %v2215 = vunpack.c.l.b16 %v1852
      %v2216 = vunpack.c.l.b16 %v1853
      %v2217 = vpack.c.b16 %v2185, %v2184
      %v2218 = vpack.c.b16 %v2187, %v2186
      %v2219 = vpack.c.b16 %v2189, %v2188
      %v2220 = vpack.c.b16 %v2191, %v2190
      %v2221 = vpack.c.b16 %v2193, %v2192
      %v2222 = vpack.c.b16 %v2195, %v2194
      %v2223 = vpack.c.b16 %v2197, %v2196
      %v2224 = vpack.c.b16 %v2199, %v2198
      %v2225 = vpack.c.b16 %v2201, %v2200
      %v2226 = vpack.c.b16 %v2203, %v2202
      %v2227 = vpack.c.b16 %v2205, %v2204
      %v2228 = vpack.c.b16 %v2207, %v2206
      %v2229 = vpack.c.b16 %v2209, %v2208
      %v2230 = vpack.c.b16 %v2211, %v2210
      %v2231 = vpack.c.b16 %v2213, %v2212
      %v2232 = vpack.c.b16 %v2215, %v2214
      %v2233 = vpack.c.b16 %v2216, %v2216
      %vm2234 = vsmask.f32 4352
      %v2236 = vshrl.u32 %v2217, 16
      %v2238 = vrot.slane %v2236, 3
      %v2239 = vshll.u32 %v2217, 16
      %v2241 = vrot.slane %v2239, 4
      %v2242 = vor.u32 %v2238, %v2241
      %v2244 = vshrl.u32 %v2218, 16
      %v2246 = vrot.slane %v2244, 3
      %v2247 = vshll.u32 %v2218, 16
      %v2249 = vrot.slane %v2247, 4
      %v2250 = vor.u32 %v2246, %v2249
      %v2251 = vsel %vm2234, %v2242, %v2250
      %v2253 = vshrl.u32 %v2219, 16
      %v2255 = vrot.slane %v2253, 3
      %v2256 = vshll.u32 %v2219, 16
      %v2258 = vrot.slane %v2256, 4
      %v2259 = vor.u32 %v2255, %v2258
      %v2260 = vsel %vm2234, %v2250, %v2259
      %v2262 = vshrl.u32 %v2220, 16
      %v2264 = vrot.slane %v2262, 3
      %v2265 = vshll.u32 %v2220, 16
      %v2267 = vrot.slane %v2265, 4
      %v2268 = vor.u32 %v2264, %v2267
      %v2269 = vsel %vm2234, %v2259, %v2268
      %v2271 = vshrl.u32 %v2221, 16
      %v2273 = vrot.slane %v2271, 3
      %v2274 = vshll.u32 %v2221, 16
      %v2276 = vrot.slane %v2274, 4
      %v2277 = vor.u32 %v2273, %v2276
      %v2278 = vsel %vm2234, %v2268, %v2277
      %v2280 = vshrl.u32 %v2222, 16
      %v2282 = vrot.slane %v2280, 3
      %v2283 = vshll.u32 %v2222, 16
      %v2285 = vrot.slane %v2283, 4
      %v2286 = vor.u32 %v2282, %v2285
      %v2287 = vsel %vm2234, %v2277, %v2286
      %v2289 = vshrl.u32 %v2223, 16
      %v2291 = vrot.slane %v2289, 3
      %v2292 = vshll.u32 %v2223, 16
      %v2294 = vrot.slane %v2292, 4
      %v2295 = vor.u32 %v2291, %v2294
      %v2296 = vsel %vm2234, %v2286, %v2295
      %v2298 = vshrl.u32 %v2224, 16
      %v2300 = vrot.slane %v2298, 3
      %v2301 = vshll.u32 %v2224, 16
      %v2303 = vrot.slane %v2301, 4
      %v2304 = vor.u32 %v2300, %v2303
      %v2305 = vsel %vm2234, %v2295, %v2304
      %v2307 = vshrl.u32 %v2225, 16
      %v2309 = vrot.slane %v2307, 3
      %v2310 = vshll.u32 %v2225, 16
      %v2312 = vrot.slane %v2310, 4
      %v2313 = vor.u32 %v2309, %v2312
      %v2314 = vsel %vm2234, %v2304, %v2313
      %v2316 = vshrl.u32 %v2226, 16
      %v2318 = vrot.slane %v2316, 3
      %v2319 = vshll.u32 %v2226, 16
      %v2321 = vrot.slane %v2319, 4
      %v2322 = vor.u32 %v2318, %v2321
      %v2323 = vsel %vm2234, %v2313, %v2322
      %v2325 = vshrl.u32 %v2227, 16
      %v2327 = vrot.slane %v2325, 3
      %v2328 = vshll.u32 %v2227, 16
      %v2330 = vrot.slane %v2328, 4
      %v2331 = vor.u32 %v2327, %v2330
      %v2332 = vsel %vm2234, %v2322, %v2331
      %v2334 = vshrl.u32 %v2228, 16
      %v2336 = vrot.slane %v2334, 3
      %v2337 = vshll.u32 %v2228, 16
      %v2339 = vrot.slane %v2337, 4
      %v2340 = vor.u32 %v2336, %v2339
      %v2341 = vsel %vm2234, %v2331, %v2340
      %v2343 = vshrl.u32 %v2229, 16
      %v2345 = vrot.slane %v2343, 3
      %v2346 = vshll.u32 %v2229, 16
      %v2348 = vrot.slane %v2346, 4
      %v2349 = vor.u32 %v2345, %v2348
      %v2350 = vsel %vm2234, %v2340, %v2349
      %v2352 = vshrl.u32 %v2230, 16
      %v2354 = vrot.slane %v2352, 3
      %v2355 = vshll.u32 %v2230, 16
      %v2357 = vrot.slane %v2355, 4
      %v2358 = vor.u32 %v2354, %v2357
      %v2359 = vsel %vm2234, %v2349, %v2358
      %v2361 = vshrl.u32 %v2231, 16
      %v2363 = vrot.slane %v2361, 3
      %v2364 = vshll.u32 %v2231, 16
      %v2366 = vrot.slane %v2364, 4
      %v2367 = vor.u32 %v2363, %v2366
      %v2368 = vsel %vm2234, %v2358, %v2367
      %v2370 = vshrl.u32 %v2232, 16
      %v2372 = vrot.slane %v2370, 3
      %v2373 = vshll.u32 %v2232, 16
      %v2375 = vrot.slane %v2373, 4
      %v2376 = vor.u32 %v2372, %v2375
      %v2377 = vsel %vm2234, %v2367, %v2376
      %v2379 = vshrl.u32 %v2233, 16
      %v2381 = vrot.slane %v2379, 3
      %v2382 = vshll.u32 %v2233, 16
      %v2384 = vrot.slane %v2382, 4
      %v2385 = vor.u32 %v2381, %v2384
      %v2386 = vsel %vm2234, %v2376, %v2385
      %v2388 = vsel %vm1937, %v2251, 0
      %v2391 = vsel %vm1937, %v2260, 0
      %v2394 = vsel %vm1937, %v2269, 0
      %v2397 = vsel %vm1937, %v2278, 0
      %v2400 = vsel %vm1937, %v2287, 0
      %v2403 = vsel %vm1937, %v2296, 0
      %v2406 = vsel %vm1937, %v2305, 0
      %v2409 = vsel %vm1937, %v2314, 0
      %v2412 = vsel %vm1937, %v2323, 0
      %v2415 = vsel %vm1937, %v2332, 0
      %v2418 = vsel %vm1937, %v2341, 0
      %v2421 = vsel %vm1937, %v2350, 0
      %v2424 = vsel %vm1937, %v2359, 0
      %v2427 = vsel %vm1937, %v2368, 0
      %v2430 = vsel %vm1937, %v2377, 0
      %v2433 = vsel %vm1937, %v2386, 0
      %v2436 = vsel %vm1986, %v1854, 0
      %2438 = vmatprep.subr.bf16.mxu0 0
      %2439 = vmatpush1.bf16.msra.mxu0 %v2436
      %2440 = vmatprep.subr.bf16.mxu0 0
      %2441 = vmatpush1.bf16.msra.mxu0 0
      %2442 = vmatprep.subr.bf16.mxu0 0
      %2443 = vmatpush1.bf16.msra.mxu0 0
      %2444 = vmatprep.subr.bf16.mxu0 0
      %2445 = vmatpush1.bf16.msra.mxu0 0
      %2446 = vmatprep.subr.bf16.mxu0 0
      %2447 = vmatpush1.bf16.msra.mxu0 0
      %2448 = vmatprep.subr.bf16.mxu0 0
      %2449 = vmatpush1.bf16.msra.mxu0 0
      %2450 = vmatprep.subr.bf16.mxu0 0
      %2451 = vmatpush1.bf16.msra.mxu0 0
      %2452 = vmatprep.subr.bf16.mxu0 0
      %2453 = vmatpush1.bf16.msra.mxu0 0
      %2454 = vmatprep.subr.bf16.mxu0 0
      %2455 = vmatpush1.bf16.msra.mxu0 0
      %2456 = vmatprep.subr.bf16.mxu0 0
      %2457 = vmatpush1.bf16.msra.mxu0 0
      %2458 = vmatprep.subr.bf16.mxu0 0
      %2459 = vmatpush1.bf16.msra.mxu0 0
      %2460 = vmatprep.subr.bf16.mxu0 0
      %2461 = vmatpush1.bf16.msra.mxu0 0
      %2462 = vmatprep.subr.bf16.mxu0 0
      %2463 = vmatpush1.bf16.msra.mxu0 0
      %2464 = vmatprep.subr.bf16.mxu0 0
      %2465 = vmatpush1.bf16.msra.mxu0 0
      %2466 = vmatprep.subr.bf16.mxu0 0
      %2467 = vmatpush1.bf16.msra.mxu0 0
      %2468 = vmatprep.subr.bf16.mxu0 0
      %2469 = vmatpush1.bf16.msra.mxu0 0
      %2470 = vmatprep.mubr.bf16.mxu0 0
      %2471 = vmatmul.mubr.bf16.gmra.mrb[0].mxu0 %v2388
      %v2472 = vpop.f32.mrb[0].mxu0
      %v2473 = vadd.f32 %v2025, %v2472
      %v2474 = vpop.f32.mrb[0].mxu0
      %v2475 = vpop.f32.mrb[0].mxu0
      %v2476 = vadd.f32 %v2028, %v2475
      %v2477 = vpop.f32.mrb[0].mxu0
      %2478 = vmatprep.mubr.bf16.mxu0 0
      %2479 = vmatmul.mubr.bf16.gmra.mrb[0].mxu0 %v2391
      %v2480 = vpop.f32.mrb[0].mxu0
      %v2481 = vadd.f32 %v2033, %v2480
      %v2482 = vpop.f32.mrb[0].mxu0
      %v2483 = vpop.f32.mrb[0].mxu0
      %v2484 = vadd.f32 %v2036, %v2483
      %v2485 = vpop.f32.mrb[0].mxu0
      %2486 = vmatprep.mubr.bf16.mxu0 0
      %2487 = vmatmul.mubr.bf16.gmra.mrb[0].mxu0 %v2394
      %v2488 = vpop.f32.mrb[0].mxu0
      %v2489 = vadd.f32 %v2041, %v2488
      %v2490 = vpop.f32.mrb[0].mxu0
      %v2491 = vpop.f32.mrb[0].mxu0
      %v2492 = vadd.f32 %v2044, %v2491
      %v2493 = vpop.f32.mrb[0].mxu0
      %2494 = vmatprep.mubr.bf16.mxu0 0
      %2495 = vmatmul.mubr.bf16.gmra.mrb[0].mxu0 %v2397
      %v2496 = vpop.f32.mrb[0].mxu0
      %v2497 = vadd.f32 %v2049, %v2496
      %v2498 = vpop.f32.mrb[0].mxu0
      %v2499 = vpop.f32.mrb[0].mxu0
      %v2500 = vadd.f32 %v2052, %v2499
      %v2501 = vpop.f32.mrb[0].mxu0
      %2502 = vmatprep.mubr.bf16.mxu0 0
      %2503 = vmatmul.mubr.bf16.gmra.mrb[0].mxu0 %v2400
      %v2504 = vpop.f32.mrb[0].mxu0
      %v2505 = vadd.f32 %v2057, %v2504
      %v2506 = vpop.f32.mrb[0].mxu0
      %v2507 = vpop.f32.mrb[0].mxu0
      %v2508 = vadd.f32 %v2060, %v2507
      %v2509 = vpop.f32.mrb[0].mxu0
      %2510 = vmatprep.mubr.bf16.mxu0 0
      %2511 = vmatmul.mubr.bf16.gmra.mrb[0].mxu0 %v2403
      %v2512 = vpop.f32.mrb[0].mxu0
      %v2513 = vadd.f32 %v2065, %v2512
      %v2514 = vpop.f32.mrb[0].mxu0
      %v2515 = vpop.f32.mrb[0].mxu0
      %v2516 = vadd.f32 %v2068, %v2515
      %v2517 = vpop.f32.mrb[0].mxu0
      %2518 = vmatprep.mubr.bf16.mxu0 0
      %2519 = vmatmul.mubr.bf16.gmra.mrb[0].mxu0 %v2406
      %v2520 = vpop.f32.mrb[0].mxu0
      %v2521 = vadd.f32 %v2073, %v2520
      %v2522 = vpop.f32.mrb[0].mxu0
      %v2523 = vpop.f32.mrb[0].mxu0
      %v2524 = vadd.f32 %v2076, %v2523
      %v2525 = vpop.f32.mrb[0].mxu0
      %2526 = vmatprep.mubr.bf16.mxu0 0
      %2527 = vmatmul.mubr.bf16.gmra.mrb[0].mxu0 %v2409
      %v2528 = vpop.f32.mrb[0].mxu0
      %v2529 = vadd.f32 %v2081, %v2528
      %v2530 = vpop.f32.mrb[0].mxu0
      %v2531 = vpop.f32.mrb[0].mxu0
      %v2532 = vadd.f32 %v2084, %v2531
      %v2533 = vpop.f32.mrb[0].mxu0
      %2534 = vmatprep.mubr.bf16.mxu0 0
      %2535 = vmatmul.mubr.bf16.gmra.mrb[0].mxu0 %v2412
      %v2536 = vpop.f32.mrb[0].mxu0
      %v2537 = vadd.f32 %v2089, %v2536
      %v2538 = vpop.f32.mrb[0].mxu0
      %v2539 = vpop.f32.mrb[0].mxu0
      %v2540 = vadd.f32 %v2092, %v2539
      %v2541 = vpop.f32.mrb[0].mxu0
      %2542 = vmatprep.mubr.bf16.mxu0 0
      %2543 = vmatmul.mubr.bf16.gmra.mrb[0].mxu0 %v2415
      %v2544 = vpop.f32.mrb[0].mxu0
      %v2545 = vadd.f32 %v2097, %v2544
      %v2546 = vpop.f32.mrb[0].mxu0
      %v2547 = vpop.f32.mrb[0].mxu0
      %v2548 = vadd.f32 %v2100, %v2547
      %v2549 = vpop.f32.mrb[0].mxu0
      %2550 = vmatprep.mubr.bf16.mxu0 0
      %2551 = vmatmul.mubr.bf16.gmra.mrb[0].mxu0 %v2418
      %v2552 = vpop.f32.mrb[0].mxu0
      %v2553 = vadd.f32 %v2105, %v2552
      %v2554 = vpop.f32.mrb[0].mxu0
      %v2555 = vpop.f32.mrb[0].mxu0
      %v2556 = vadd.f32 %v2108, %v2555
      %v2557 = vpop.f32.mrb[0].mxu0
      %2558 = vmatprep.mubr.bf16.mxu0 0
      %2559 = vmatmul.mubr.bf16.gmra.mrb[0].mxu0 %v2421
      %v2560 = vpop.f32.mrb[0].mxu0
      %v2561 = vadd.f32 %v2113, %v2560
      %v2562 = vpop.f32.mrb[0].mxu0
      %v2563 = vpop.f32.mrb[0].mxu0
      %v2564 = vadd.f32 %v2116, %v2563
      %v2565 = vpop.f32.mrb[0].mxu0
      %2566 = vmatprep.mubr.bf16.mxu0 0
      %2567 = vmatmul.mubr.bf16.gmra.mrb[0].mxu0 %v2424
      %v2568 = vpop.f32.mrb[0].mxu0
      %v2569 = vadd.f32 %v2121, %v2568
      %v2570 = vpop.f32.mrb[0].mxu0
      %v2571 = vpop.f32.mrb[0].mxu0
      %v2572 = vadd.f32 %v2124, %v2571
      %v2573 = vpop.f32.mrb[0].mxu0
      %2574 = vmatprep.mubr.bf16.mxu0 0
      %2575 = vmatmul.mubr.bf16.gmra.mrb[0].mxu0 %v2427
      %v2576 = vpop.f32.mrb[0].mxu0
      %v2577 = vadd.f32 %v2129, %v2576
      %v2578 = vpop.f32.mrb[0].mxu0
      %v2579 = vpop.f32.mrb[0].mxu0
      %v2580 = vadd.f32 %v2132, %v2579
      %v2581 = vpop.f32.mrb[0].mxu0
      %2582 = vmatprep.mubr.bf16.mxu0 0
      %2583 = vmatmul.mubr.bf16.gmra.mrb[0].mxu0 %v2430
      %v2584 = vpop.f32.mrb[0].mxu0
      %v2585 = vadd.f32 %v2137, %v2584
      %v2586 = vpop.f32.mrb[0].mxu0
      %v2587 = vpop.f32.mrb[0].mxu0
      %v2588 = vadd.f32 %v2140, %v2587
      %v2589 = vpop.f32.mrb[0].mxu0
      %2590 = vmatprep.mubr.bf16.mxu0 0
      %2591 = vmatmul.mubr.bf16.gmra.mrb[0].mxu0 %v2433
      %v2592 = vpop.f32.mrb[0].mxu0
      %v2593 = vadd.f32 %v2145, %v2592
      %v2594 = vpop.f32.mrb[0].mxu0
      %v2595 = vpop.f32.mrb[0].mxu0
      %v2596 = vadd.f32 %v2148, %v2595
      %v2597 = vpop.f32.mrb[0].mxu0
      %2598 = vdwg.mxu0
      %v2599 = vld [vmem:[#allocation2 + $0x8] sm:$0xf]
      %v2600 = vld [vmem:[#allocation2 + $0xc] sm:$0xf]
      %v2601 = vld [vmem:[#allocation2 + $0x10] sm:$0xf]
      %v2602 = vld [vmem:[#allocation2 + $0x14] sm:$0xf]
      %v2603 = vld [vmem:[#allocation2 + $0x18] sm:$0xf]
      %v2604 = vld [vmem:[#allocation2 + $0x1c] sm:$0xf]
      %v2605 = vld [vmem:[#allocation2 + $0x20] sm:$0xf]
      %v2606 = vld [vmem:[#allocation2 + $0x24] sm:$0xf]
      %v2607 = vld [vmem:[#allocation2 + $0x28] sm:$0xf]
      %v2608 = vld [vmem:[#allocation2 + $0x2c] sm:$0xf]
      %v2609 = vld [vmem:[#allocation2 + $0x30] sm:$0xf]
      %v2610 = vld [vmem:[#allocation2 + $0x34] sm:$0xf]
      %v2611 = vld [vmem:[#allocation2 + $0x38] sm:$0xf]
      %v2612 = vld [vmem:[#allocation2 + $0x3c] sm:$0xf]
      %v2613 = vld [vmem:[#allocation2 + $0x40] sm:$0xf]
      %v2614 = vld [vmem:[#allocation2 + $0x44] sm:$0xf]
      %v2615 = vld [vmem:[#allocation2 + $0x48] sm:$0xf]
      %v2616 = vld [vmem:[#allocation2 + $0x4c] sm:$0xf]
      %v2617 = vld [vmem:[#allocation2 + $0x50] sm:$0xf]
      %v2618 = vld [vmem:[#allocation2 + $0x54] sm:$0xf]
      %v2619 = vld [vmem:[#allocation2 + $0x58] sm:$0xf]
      %v2620 = vld [vmem:[#allocation2 + $0x5c] sm:$0xf]
      %v2621 = vld [vmem:[#allocation2 + $0x60] sm:$0xf]
      %v2622 = vld [vmem:[#allocation2 + $0x64] sm:$0xf]
      %v2623 = vld [vmem:[#allocation2 + $0x68] sm:$0xf]
      %v2624 = vld [vmem:[#allocation2 + $0x6c] sm:$0xf]
      %v2625 = vld [vmem:[#allocation2 + $0x70] sm:$0xf]
      %v2626 = vld [vmem:[#allocation2 + $0x74] sm:$0xf]
      %v2627 = vld [vmem:[#allocation2 + $0x78] sm:$0xf]
      %v2628 = vld [vmem:[#allocation2 + $0x7c] sm:$0xf]
      %v2629 = vld [vmem:[#allocation2 + $0x80] sm:$0xf]
      %v2630 = vld [vmem:[#allocation2 + $0x84] sm:$0xf]
      %v2631 = vld [vmem:[#allocation2 + $0x88] sm:$0x1]
      %v2632 = vsel %vm1273, 1, 0
      %v2633 = vsel %vm1274, 1, 0
      %v2634 = vsel %vm1275, 1, 0
      %v2635 = vsel %vm1276, 1, 0
      %v2636 = vsel %vm1277, 1, 0
      %v2637 = vsel %vm1278, 1, 0
      %v2638 = vsel %vm1279, 1, 0
      %v2639 = vsel %vm1280, 1, 0
      %v2640 = vsel %vm1281, 1, 0
      %v2641 = vsel %vm1282, 1, 0
      %v2642 = vsel %vm1283, 1, 0
      %v2643 = vsel %vm1284, 1, 0
      %v2644 = vsel %vm1285, 1, 0
      %v2645 = vsel %vm1286, 1, 0
      %v2646 = vsel %vm1287, 1, 0
      %v2647 = vsel %vm1288, 1, 0
      %v2648 = vsel %vm1289, 1, 0
      %v2649 = vsel %vm1290, 1, 0
      %v2650 = vsel %vm1291, 1, 0
      %v2651 = vsel %vm1292, 1, 0
      %v2652 = vsel %vm1293, 1, 0
      %v2653 = vsel %vm1294, 1, 0
      %v2654 = vsel %vm1295, 1, 0
      %v2655 = vsel %vm1296, 1, 0
      %v2656 = vsel %vm1297, 1, 0
      %v2657 = vsel %vm1298, 1, 0
      %v2658 = vsel %vm1299, 1, 0
      %v2659 = vsel %vm1300, 1, 0
      %v2660 = vsel %vm1301, 1, 0
      %v2661 = vsel %vm1302, 1, 0
      %v2662 = vsel %vm1303, 1, 0
      %v2663 = vsel %vm1304, 1, 0
      %vm2664 = vcmp.eq.s32.totalorder %v2632, 1
      %vm2665 = vcmp.eq.s32.totalorder %v2633, 1
      %vm2666 = vcmp.eq.s32.totalorder %v2634, 1
      %vm2667 = vcmp.eq.s32.totalorder %v2635, 1
      %vm2668 = vcmp.eq.s32.totalorder %v2636, 1
      %vm2669 = vcmp.eq.s32.totalorder %v2637, 1
      %vm2670 = vcmp.eq.s32.totalorder %v2638, 1
      %vm2671 = vcmp.eq.s32.totalorder %v2639, 1
      %vm2672 = vcmp.eq.s32.totalorder %v2640, 1
      %vm2673 = vcmp.eq.s32.totalorder %v2641, 1
      %vm2674 = vcmp.eq.s32.totalorder %v2642, 1
      %vm2675 = vcmp.eq.s32.totalorder %v2643, 1
      %vm2676 = vcmp.eq.s32.totalorder %v2644, 1
      %vm2677 = vcmp.eq.s32.totalorder %v2645, 1
      %vm2678 = vcmp.eq.s32.totalorder %v2646, 1
      %vm2679 = vcmp.eq.s32.totalorder %v2647, 1
      %vm2680 = vcmp.eq.s32.totalorder %v2648, 1
      %vm2681 = vcmp.eq.s32.totalorder %v2649, 1
      %vm2682 = vcmp.eq.s32.totalorder %v2650, 1
      %vm2683 = vcmp.eq.s32.totalorder %v2651, 1
      %vm2684 = vcmp.eq.s32.totalorder %v2652, 1
      %vm2685 = vcmp.eq.s32.totalorder %v2653, 1
      %vm2686 = vcmp.eq.s32.totalorder %v2654, 1
      %vm2687 = vcmp.eq.s32.totalorder %v2655, 1
      %vm2688 = vcmp.eq.s32.totalorder %v2656, 1
      %vm2689 = vcmp.eq.s32.totalorder %v2657, 1
      %vm2690 = vcmp.eq.s32.totalorder %v2658, 1
      %vm2691 = vcmp.eq.s32.totalorder %v2659, 1
      %vm2692 = vcmp.eq.s32.totalorder %v2660, 1
      %vm2693 = vcmp.eq.s32.totalorder %v2661, 1
      %vm2694 = vcmp.eq.s32.totalorder %v2662, 1
      %vm2695 = vcmp.eq.s32.totalorder %v2663, 1
      %vm2696 = vmpackc.low %vm2664, %vm2664
      %vm2697 = vmpackc.low %vm2665, %vm2665
      %vm2698 = vmpackc.low %vm2666, %vm2666
      %vm2699 = vmpackc.low %vm2667, %vm2667
      %vm2700 = vmpackc.low %vm2668, %vm2668
      %vm2701 = vmpackc.low %vm2669, %vm2669
      %vm2702 = vmpackc.low %vm2670, %vm2670
      %vm2703 = vmpackc.low %vm2671, %vm2671
      %vm2704 = vmpackc.low %vm2672, %vm2672
      %vm2705 = vmpackc.low %vm2673, %vm2673
      %vm2706 = vmpackc.low %vm2674, %vm2674
      %vm2707 = vmpackc.low %vm2675, %vm2675
      %vm2708 = vmpackc.low %vm2676, %vm2676
      %vm2709 = vmpackc.low %vm2677, %vm2677
      %vm2710 = vmpackc.low %vm2678, %vm2678
      %vm2711 = vmpackc.low %vm2679, %vm2679
      %vm2712 = vmpackc.low %vm2680, %vm2680
      %vm2713 = vmpackc.low %vm2681, %vm2681
      %vm2714 = vmpackc.low %vm2682, %vm2682
      %vm2715 = vmpackc.low %vm2683, %vm2683
      %vm2716 = vmpackc.low %vm2684, %vm2684
      %vm2717 = vmpackc.low %vm2685, %vm2685
      %vm2718 = vmpackc.low %vm2686, %vm2686
      %vm2719 = vmpackc.low %vm2687, %vm2687
      %vm2720 = vmpackc.low %vm2688, %vm2688
      %vm2721 = vmpackc.low %vm2689, %vm2689
      %vm2722 = vmpackc.low %vm2690, %vm2690
      %vm2723 = vmpackc.low %vm2691, %vm2691
      %vm2724 = vmpackc.low %vm2692, %vm2692
      %vm2725 = vmpackc.low %vm2693, %vm2693
      %vm2726 = vmpackc.low %vm2694, %vm2694
      %vm2727 = vmpackc.low %vm2695, %vm2695
      %v2728 = vsel %vm2696, 65537, 0
      %v2729 = vsel %vm2697, 65537, 0
      %v2730 = vsel %vm2698, 65537, 0
      %v2731 = vsel %vm2699, 65537, 0
      %v2732 = vsel %vm2700, 65537, 0
      %v2733 = vsel %vm2701, 65537, 0
      %v2734 = vsel %vm2702, 65537, 0
      %v2735 = vsel %vm2703, 65537, 0
      %v2736 = vsel %vm2704, 65537, 0
      %v2737 = vsel %vm2705, 65537, 0
      %v2738 = vsel %vm2706, 65537, 0
      %v2739 = vsel %vm2707, 65537, 0
      %v2740 = vsel %vm2708, 65537, 0
      %v2741 = vsel %vm2709, 65537, 0
      %v2742 = vsel %vm2710, 65537, 0
      %v2743 = vsel %vm2711, 65537, 0
      %v2744 = vsel %vm2712, 65537, 0
      %v2745 = vsel %vm2713, 65537, 0
      %v2746 = vsel %vm2714, 65537, 0
      %v2747 = vsel %vm2715, 65537, 0
      %v2748 = vsel %vm2716, 65537, 0
      %v2749 = vsel %vm2717, 65537, 0
      %v2750 = vsel %vm2718, 65537, 0
      %v2751 = vsel %vm2719, 65537, 0
      %v2752 = vsel %vm2720, 65537, 0
      %v2753 = vsel %vm2721, 65537, 0
      %v2754 = vsel %vm2722, 65537, 0
      %v2755 = vsel %vm2723, 65537, 0
      %v2756 = vsel %vm2724, 65537, 0
      %v2757 = vsel %vm2725, 65537, 0
      %v2758 = vsel %vm2726, 65537, 0
      %v2759 = vsel %vm2727, 65537, 0
      %vm2760 = vsmask.f32 4368
      %vm2761 = vmor %vm659, %vm2760
      %v2763 = vshrl.u32 %v2728, 16
      %v2765 = vrot.slane %v2763, 7
      %v2766 = vshll.u32 %v2728, 16
      %v2768 = vor.u32 %v2765, %v2766
      %v2769 = vrot.slane %v2765, 4
      %v2771 = vshrl.u32 %v2729, 16
      %v2773 = vrot.slane %v2771, 7
      %v2774 = vshll.u32 %v2729, 16
      %v2776 = vor.u32 %v2773, %v2774
      %v2777 = vsel %vm2761, %v2769, %v2776
      %v2778 = vrot.slane %v2773, 4
      %v2780 = vshrl.u32 %v2730, 16
      %v2782 = vrot.slane %v2780, 7
      %v2783 = vshll.u32 %v2730, 16
      %v2785 = vor.u32 %v2782, %v2783
      %v2786 = vsel %vm2761, %v2778, %v2785
      %v2787 = vrot.slane %v2782, 4
      %v2789 = vshrl.u32 %v2731, 16
      %v2791 = vrot.slane %v2789, 7
      %v2792 = vshll.u32 %v2731, 16
      %v2794 = vor.u32 %v2791, %v2792
      %v2795 = vsel %vm2761, %v2787, %v2794
      %v2796 = vrot.slane %v2791, 4
      %v2798 = vshrl.u32 %v2732, 16
      %v2800 = vrot.slane %v2798, 7
      %v2801 = vshll.u32 %v2732, 16
      %v2803 = vor.u32 %v2800, %v2801
      %v2804 = vsel %vm2761, %v2796, %v2803
      %v2805 = vrot.slane %v2800, 4
      %v2807 = vshrl.u32 %v2733, 16
      %v2809 = vrot.slane %v2807, 7
      %v2810 = vshll.u32 %v2733, 16
      %v2812 = vor.u32 %v2809, %v2810
      %v2813 = vsel %vm2761, %v2805, %v2812
      %v2814 = vrot.slane %v2809, 4
      %v2816 = vshrl.u32 %v2734, 16
      %v2818 = vrot.slane %v2816, 7
      %v2819 = vshll.u32 %v2734, 16
      %v2821 = vor.u32 %v2818, %v2819
      %v2822 = vsel %vm2761, %v2814, %v2821
      %v2823 = vrot.slane %v2818, 4
      %v2825 = vshrl.u32 %v2735, 16
      %v2827 = vrot.slane %v2825, 7
      %v2828 = vshll.u32 %v2735, 16
      %v2830 = vor.u32 %v2827, %v2828
      %v2831 = vsel %vm2761, %v2823, %v2830
      %v2832 = vrot.slane %v2827, 4
      %v2834 = vshrl.u32 %v2736, 16
      %v2836 = vrot.slane %v2834, 7
      %v2837 = vshll.u32 %v2736, 16
      %v2839 = vor.u32 %v2836, %v2837
      %v2840 = vsel %vm2761, %v2832, %v2839
      %v2841 = vrot.slane %v2836, 4
      %v2843 = vshrl.u32 %v2737, 16
      %v2845 = vrot.slane %v2843, 7
      %v2846 = vshll.u32 %v2737, 16
      %v2848 = vor.u32 %v2845, %v2846
      %v2849 = vsel %vm2761, %v2841, %v2848
      %v2850 = vrot.slane %v2845, 4
      %v2852 = vshrl.u32 %v2738, 16
      %v2854 = vrot.slane %v2852, 7
      %v2855 = vshll.u32 %v2738, 16
      %v2857 = vor.u32 %v2854, %v2855
      %v2858 = vsel %vm2761, %v2850, %v2857
      %v2859 = vrot.slane %v2854, 4
      %v2861 = vshrl.u32 %v2739, 16
      %v2863 = vrot.slane %v2861, 7
      %v2864 = vshll.u32 %v2739, 16
      %v2866 = vor.u32 %v2863, %v2864
      %v2867 = vsel %vm2761, %v2859, %v2866
      %v2868 = vrot.slane %v2863, 4
      %v2870 = vshrl.u32 %v2740, 16
      %v2872 = vrot.slane %v2870, 7
      %v2873 = vshll.u32 %v2740, 16
      %v2875 = vor.u32 %v2872, %v2873
      %v2876 = vsel %vm2761, %v2868, %v2875
      %v2877 = vrot.slane %v2872, 4
      %v2879 = vshrl.u32 %v2741, 16
      %v2881 = vrot.slane %v2879, 7
      %v2882 = vshll.u32 %v2741, 16
      %v2884 = vor.u32 %v2881, %v2882
      %v2885 = vsel %vm2761, %v2877, %v2884
      %v2886 = vrot.slane %v2881, 4
      %v2888 = vshrl.u32 %v2742, 16
      %v2890 = vrot.slane %v2888, 7
      %v2891 = vshll.u32 %v2742, 16
      %v2893 = vor.u32 %v2890, %v2891
      %v2894 = vsel %vm2761, %v2886, %v2893
      %v2895 = vrot.slane %v2890, 4
      %v2897 = vshrl.u32 %v2743, 16
      %v2899 = vrot.slane %v2897, 7
      %v2900 = vshll.u32 %v2743, 16
      %v2902 = vor.u32 %v2899, %v2900
      %v2903 = vsel %vm2761, %v2895, %v2902
      %v2904 = vrot.slane %v2899, 4
      %v2906 = vshrl.u32 %v2744, 16
      %v2908 = vrot.slane %v2906, 7
      %v2909 = vshll.u32 %v2744, 16
      %v2911 = vor.u32 %v2908, %v2909
      %v2912 = vsel %vm2761, %v2904, %v2911
      %v2913 = vrot.slane %v2908, 4
      %v2915 = vshrl.u32 %v2745, 16
      %v2917 = vrot.slane %v2915, 7
      %v2918 = vshll.u32 %v2745, 16
      %v2920 = vor.u32 %v2917, %v2918
      %v2921 = vsel %vm2761, %v2913, %v2920
      %v2922 = vrot.slane %v2917, 4
      %v2924 = vshrl.u32 %v2746, 16
      %v2926 = vrot.slane %v2924, 7
      %v2927 = vshll.u32 %v2746, 16
      %v2929 = vor.u32 %v2926, %v2927
      %v2930 = vsel %vm2761, %v2922, %v2929
      %v2931 = vrot.slane %v2926, 4
      %v2933 = vshrl.u32 %v2747, 16
      %v2935 = vrot.slane %v2933, 7
      %v2936 = vshll.u32 %v2747, 16
      %v2938 = vor.u32 %v2935, %v2936
      %v2939 = vsel %vm2761, %v2931, %v2938
      %v2940 = vrot.slane %v2935, 4
      %v2942 = vshrl.u32 %v2748, 16
      %v2944 = vrot.slane %v2942, 7
      %v2945 = vshll.u32 %v2748, 16
      %v2947 = vor.u32 %v2944, %v2945
      %v2948 = vsel %vm2761, %v2940, %v2947
      %v2949 = vrot.slane %v2944, 4
      %v2951 = vshrl.u32 %v2749, 16
      %v2953 = vrot.slane %v2951, 7
      %v2954 = vshll.u32 %v2749, 16
      %v2956 = vor.u32 %v2953, %v2954
      %v2957 = vsel %vm2761, %v2949, %v2956
      %v2958 = vrot.slane %v2953, 4
      %v2960 = vshrl.u32 %v2750, 16
      %v2962 = vrot.slane %v2960, 7
      %v2963 = vshll.u32 %v2750, 16
      %v2965 = vor.u32 %v2962, %v2963
      %v2966 = vsel %vm2761, %v2958, %v2965
      %v2967 = vrot.slane %v2962, 4
      %v2969 = vshrl.u32 %v2751, 16
      %v2971 = vrot.slane %v2969, 7
      %v2972 = vshll.u32 %v2751, 16
      %v2974 = vor.u32 %v2971, %v2972
      %v2975 = vsel %vm2761, %v2967, %v2974
      %v2976 = vrot.slane %v2971, 4
      %v2978 = vshrl.u32 %v2752, 16
      %v2980 = vrot.slane %v2978, 7
      %v2981 = vshll.u32 %v2752, 16
      %v2983 = vor.u32 %v2980, %v2981
      %v2984 = vsel %vm2761, %v2976, %v2983
      %v2985 = vrot.slane %v2980, 4
      %v2987 = vshrl.u32 %v2753, 16
      %v2989 = vrot.slane %v2987, 7
      %v2990 = vshll.u32 %v2753, 16
      %v2992 = vor.u32 %v2989, %v2990
      %v2993 = vsel %vm2761, %v2985, %v2992
      %v2994 = vrot.slane %v2989, 4
      %v2996 = vshrl.u32 %v2754, 16
      %v2998 = vrot.slane %v2996, 7
      %v2999 = vshll.u32 %v2754, 16
      %v3001 = vor.u32 %v2998, %v2999
      %v3002 = vsel %vm2761, %v2994, %v3001
      %v3003 = vrot.slane %v2998, 4
      %v3005 = vshrl.u32 %v2755, 16
      %v3007 = vrot.slane %v3005, 7
      %v3008 = vshll.u32 %v2755, 16
      %v3010 = vor.u32 %v3007, %v3008
      %v3011 = vsel %vm2761, %v3003, %v3010
      %v3012 = vrot.slane %v3007, 4
      %v3014 = vshrl.u32 %v2756, 16
      %v3016 = vrot.slane %v3014, 7
      %v3017 = vshll.u32 %v2756, 16
      %v3019 = vor.u32 %v3016, %v3017
      %v3020 = vsel %vm2761, %v3012, %v3019
      %v3021 = vrot.slane %v3016, 4
      %v3023 = vshrl.u32 %v2757, 16
      %v3025 = vrot.slane %v3023, 7
      %v3026 = vshll.u32 %v2757, 16
      %v3028 = vor.u32 %v3025, %v3026
      %v3029 = vsel %vm2761, %v3021, %v3028
      %v3030 = vrot.slane %v3025, 4
      %v3032 = vshrl.u32 %v2758, 16
      %v3034 = vrot.slane %v3032, 7
      %v3035 = vshll.u32 %v2758, 16
      %v3037 = vor.u32 %v3034, %v3035
      %v3038 = vsel %vm2761, %v3030, %v3037
      %v3039 = vrot.slane %v3034, 4
      %v3041 = vshrl.u32 %v2759, 16
      %v3043 = vrot.slane %v3041, 7
      %v3044 = vshll.u32 %v2759, 16
      %v3046 = vor.u32 %v3043, %v3044
      %v3047 = vsel %vm2761, %v3039, %v3046
      %v3048 = vrot.slane %v3043, 4
      %vm3049 = vcmp.ne.s16.totalorder %v2768, 0
      %vm3050 = vcmp.ne.s16.totalorder %v2777, 0
      %vm3051 = vcmp.ne.s16.totalorder %v2786, 0
      %vm3052 = vcmp.ne.s16.totalorder %v2795, 0
      %vm3053 = vcmp.ne.s16.totalorder %v2804, 0
      %vm3054 = vcmp.ne.s16.totalorder %v2813, 0
      %vm3055 = vcmp.ne.s16.totalorder %v2822, 0
      %vm3056 = vcmp.ne.s16.totalorder %v2831, 0
      %vm3057 = vcmp.ne.s16.totalorder %v2840, 0
      %vm3058 = vcmp.ne.s16.totalorder %v2849, 0
      %vm3059 = vcmp.ne.s16.totalorder %v2858, 0
      %vm3060 = vcmp.ne.s16.totalorder %v2867, 0
      %vm3061 = vcmp.ne.s16.totalorder %v2876, 0
      %vm3062 = vcmp.ne.s16.totalorder %v2885, 0
      %vm3063 = vcmp.ne.s16.totalorder %v2894, 0
      %vm3064 = vcmp.ne.s16.totalorder %v2903, 0
      %vm3065 = vcmp.ne.s16.totalorder %v2912, 0
      %vm3066 = vcmp.ne.s16.totalorder %v2921, 0
      %vm3067 = vcmp.ne.s16.totalorder %v2930, 0
      %vm3068 = vcmp.ne.s16.totalorder %v2939, 0
      %vm3069 = vcmp.ne.s16.totalorder %v2948, 0
      %vm3070 = vcmp.ne.s16.totalorder %v2957, 0
      %vm3071 = vcmp.ne.s16.totalorder %v2966, 0
      %vm3072 = vcmp.ne.s16.totalorder %v2975, 0
      %vm3073 = vcmp.ne.s16.totalorder %v2984, 0
      %vm3074 = vcmp.ne.s16.totalorder %v2993, 0
      %vm3075 = vcmp.ne.s16.totalorder %v3002, 0
      %vm3076 = vcmp.ne.s16.totalorder %v3011, 0
      %vm3077 = vcmp.ne.s16.totalorder %v3020, 0
      %vm3078 = vcmp.ne.s16.totalorder %v3029, 0
      %vm3079 = vcmp.ne.s16.totalorder %v3038, 0
      %vm3080 = vcmp.ne.s16.totalorder %v3047, 0
      %vm3081 = vcmp.ne.s16.totalorder %v3048, 0
      %v3082 = vsel %vm3049, %v2599, 0
      %v3083 = vsel %vm3050, %v2600, 0
      %v3084 = vsel %vm3051, %v2601, 0
      %v3085 = vsel %vm3052, %v2602, 0
      %v3086 = vsel %vm3053, %v2603, 0
      %v3087 = vsel %vm3054, %v2604, 0
      %v3088 = vsel %vm3055, %v2605, 0
      %v3089 = vsel %vm3056, %v2606, 0
      %v3090 = vsel %vm3057, %v2607, 0
      %v3091 = vsel %vm3058, %v2608, 0
      %v3092 = vsel %vm3059, %v2609, 0
      %v3093 = vsel %vm3060, %v2610, 0
      %v3094 = vsel %vm3061, %v2611, 0
      %v3095 = vsel %vm3062, %v2612, 0
      %v3096 = vsel %vm3063, %v2613, 0
      %v3097 = vsel %vm3064, %v2614, 0
      %v3098 = vsel %vm3065, %v2615, 0
      %v3099 = vsel %vm3066, %v2616, 0
      %v3100 = vsel %vm3067, %v2617, 0
      %v3101 = vsel %vm3068, %v2618, 0
      %v3102 = vsel %vm3069, %v2619, 0
      %v3103 = vsel %vm3070, %v2620, 0
      %v3104 = vsel %vm3071, %v2621, 0
      %v3105 = vsel %vm3072, %v2622, 0
      %v3106 = vsel %vm3073, %v2623, 0
      %v3107 = vsel %vm3074, %v2624, 0
      %v3108 = vsel %vm3075, %v2625, 0
      %v3109 = vsel %vm3076, %v2626, 0
      %v3110 = vsel %vm3077, %v2627, 0
      %v3111 = vsel %vm3078, %v2628, 0
      %v3112 = vsel %vm3079, %v2629, 0
      %v3113 = vsel %vm3080, %v2630, 0
      %v3114 = vsel %vm3081, %v2631, 0
      %s3115 = scalar_lea.vmem %s3, 4
      %v3116 = vld [vmem:[%s3115] sm:$0x3]
      %v3150 = vunpack.c.l.b16 %v3082
      %v3151 = vunpack.c.l.b16 %v3083
      %v3152 = vunpack.c.l.b16 %v3084
      %v3153 = vunpack.c.l.b16 %v3085
      %v3154 = vunpack.c.l.b16 %v3086
      %v3155 = vunpack.c.l.b16 %v3087
      %v3156 = vunpack.c.l.b16 %v3088
      %v3157 = vunpack.c.l.b16 %v3089
      %v3158 = vunpack.c.l.b16 %v3090
      %v3159 = vunpack.c.l.b16 %v3091
      %v3160 = vunpack.c.l.b16 %v3092
      %v3161 = vunpack.c.l.b16 %v3093
      %v3162 = vunpack.c.l.b16 %v3094
      %v3163 = vunpack.c.l.b16 %v3095
      %v3164 = vunpack.c.l.b16 %v3096
      %v3165 = vunpack.c.l.b16 %v3097
      %v3166 = vunpack.c.l.b16 %v3098
      %v3167 = vunpack.c.l.b16 %v3099
      %v3168 = vunpack.c.l.b16 %v3100
      %v3169 = vunpack.c.l.b16 %v3101
      %v3170 = vunpack.c.l.b16 %v3102
      %v3171 = vunpack.c.l.b16 %v3103
      %v3172 = vunpack.c.l.b16 %v3104
      %v3173 = vunpack.c.l.b16 %v3105
      %v3174 = vunpack.c.l.b16 %v3106
      %v3175 = vunpack.c.l.b16 %v3107
      %v3176 = vunpack.c.l.b16 %v3108
      %v3177 = vunpack.c.l.b16 %v3109
      %v3178 = vunpack.c.l.b16 %v3110
      %v3179 = vunpack.c.l.b16 %v3111
      %v3180 = vunpack.c.l.b16 %v3112
      %v3181 = vunpack.c.l.b16 %v3113
      %v3182 = vunpack.c.l.b16 %v3114
      %v3183 = vpack.c.b16 %v3151, %v3150
      %v3184 = vpack.c.b16 %v3153, %v3152
      %v3185 = vpack.c.b16 %v3155, %v3154
      %v3186 = vpack.c.b16 %v3157, %v3156
      %v3187 = vpack.c.b16 %v3159, %v3158
      %v3188 = vpack.c.b16 %v3161, %v3160
      %v3189 = vpack.c.b16 %v3163, %v3162
      %v3190 = vpack.c.b16 %v3165, %v3164
      %v3191 = vpack.c.b16 %v3167, %v3166
      %v3192 = vpack.c.b16 %v3169, %v3168
      %v3193 = vpack.c.b16 %v3171, %v3170
      %v3194 = vpack.c.b16 %v3173, %v3172
      %v3195 = vpack.c.b16 %v3175, %v3174
      %v3196 = vpack.c.b16 %v3177, %v3176
      %v3197 = vpack.c.b16 %v3179, %v3178
      %v3198 = vpack.c.b16 %v3181, %v3180
      %v3199 = vpack.c.b16 %v3182, %v3182
      %vm3200 = vsmask.f32 7424
      %v3202 = vshrl.u32 %v3183, 16
      %v3204 = vshll.u32 %v3183, 16
      %v3206 = vrot.slane %v3204, 1
      %v3207 = vor.u32 %v3202, %v3206
      %v3209 = vshll.u32 %v3184, 16
      %v3211 = vrot.slane %v3209, 1
      %v3212 = vsel %vm3200, %v3207, %v3211
      %v3213 = vshrl.u32 %v3184, 16
      %v3215 = vor.u32 %v3213, %v3211
      %v3217 = vshll.u32 %v3185, 16
      %v3219 = vrot.slane %v3217, 1
      %v3220 = vsel %vm3200, %v3215, %v3219
      %v3221 = vshrl.u32 %v3185, 16
      %v3223 = vor.u32 %v3221, %v3219
      %v3225 = vshll.u32 %v3186, 16
      %v3227 = vrot.slane %v3225, 1
      %v3228 = vsel %vm3200, %v3223, %v3227
      %v3229 = vshrl.u32 %v3186, 16
      %v3231 = vor.u32 %v3229, %v3227
      %v3233 = vshll.u32 %v3187, 16
      %v3235 = vrot.slane %v3233, 1
      %v3236 = vsel %vm3200, %v3231, %v3235
      %v3237 = vshrl.u32 %v3187, 16
      %v3239 = vor.u32 %v3237, %v3235
      %v3241 = vshll.u32 %v3188, 16
      %v3243 = vrot.slane %v3241, 1
      %v3244 = vsel %vm3200, %v3239, %v3243
      %v3245 = vshrl.u32 %v3188, 16
      %v3247 = vor.u32 %v3245, %v3243
      %v3249 = vshll.u32 %v3189, 16
      %v3251 = vrot.slane %v3249, 1
      %v3252 = vsel %vm3200, %v3247, %v3251
      %v3253 = vshrl.u32 %v3189, 16
      %v3255 = vor.u32 %v3253, %v3251
      %v3257 = vshll.u32 %v3190, 16
      %v3259 = vrot.slane %v3257, 1
      %v3260 = vsel %vm3200, %v3255, %v3259
      %v3261 = vshrl.u32 %v3190, 16
      %v3263 = vor.u32 %v3261, %v3259
      %v3265 = vshll.u32 %v3191, 16
      %v3267 = vrot.slane %v3265, 1
      %v3268 = vsel %vm3200, %v3263, %v3267
      %v3269 = vshrl.u32 %v3191, 16
      %v3271 = vor.u32 %v3269, %v3267
      %v3273 = vshll.u32 %v3192, 16
      %v3275 = vrot.slane %v3273, 1
      %v3276 = vsel %vm3200, %v3271, %v3275
      %v3277 = vshrl.u32 %v3192, 16
      %v3279 = vor.u32 %v3277, %v3275
      %v3281 = vshll.u32 %v3193, 16
      %v3283 = vrot.slane %v3281, 1
      %v3284 = vsel %vm3200, %v3279, %v3283
      %v3285 = vshrl.u32 %v3193, 16
      %v3287 = vor.u32 %v3285, %v3283
      %v3289 = vshll.u32 %v3194, 16
      %v3291 = vrot.slane %v3289, 1
      %v3292 = vsel %vm3200, %v3287, %v3291
      %v3293 = vshrl.u32 %v3194, 16
      %v3295 = vor.u32 %v3293, %v3291
      %v3297 = vshll.u32 %v3195, 16
      %v3299 = vrot.slane %v3297, 1
      %v3300 = vsel %vm3200, %v3295, %v3299
      %v3301 = vshrl.u32 %v3195, 16
      %v3303 = vor.u32 %v3301, %v3299
      %v3305 = vshll.u32 %v3196, 16
      %v3307 = vrot.slane %v3305, 1
      %v3308 = vsel %vm3200, %v3303, %v3307
      %v3309 = vshrl.u32 %v3196, 16
      %v3311 = vor.u32 %v3309, %v3307
      %v3313 = vshll.u32 %v3197, 16
      %v3315 = vrot.slane %v3313, 1
      %v3316 = vsel %vm3200, %v3311, %v3315
      %v3317 = vshrl.u32 %v3197, 16
      %v3319 = vor.u32 %v3317, %v3315
      %v3321 = vshll.u32 %v3198, 16
      %v3323 = vrot.slane %v3321, 1
      %v3324 = vsel %vm3200, %v3319, %v3323
      %v3325 = vshrl.u32 %v3198, 16
      %v3327 = vor.u32 %v3325, %v3323
      %v3329 = vshll.u32 %v3199, 16
      %v3331 = vrot.slane %v3329, 1
      %v3332 = vsel %vm3200, %v3327, %v3331
      %v3334 = vsel %vm1937, %v3212, 0
      %v3337 = vsel %vm1937, %v3220, 0
      %v3340 = vsel %vm1937, %v3228, 0
      %v3343 = vsel %vm1937, %v3236, 0
      %v3346 = vsel %vm1937, %v3244, 0
      %v3349 = vsel %vm1937, %v3252, 0
      %v3352 = vsel %vm1937, %v3260, 0
      %v3355 = vsel %vm1937, %v3268, 0
      %v3358 = vsel %vm1937, %v3276, 0
      %v3361 = vsel %vm1937, %v3284, 0
      %v3364 = vsel %vm1937, %v3292, 0
      %v3367 = vsel %vm1937, %v3300, 0
      %v3370 = vsel %vm1937, %v3308, 0
      %v3373 = vsel %vm1937, %v3316, 0
      %v3376 = vsel %vm1937, %v3324, 0
      %v3379 = vsel %vm1937, %v3332, 0
      %v3382 = vsel %vm1986, %v3116, 0
      %3384 = vmatprep.subr.bf16.mxu0 0
      %3385 = vmatpush1.bf16.msra.mxu0 %v3382
      %3386 = vmatprep.subr.bf16.mxu0 0
      %3387 = vmatpush1.bf16.msra.mxu0 0
      %3388 = vmatprep.subr.bf16.mxu0 0
      %3389 = vmatpush1.bf16.msra.mxu0 0
      %3390 = vmatprep.subr.bf16.mxu0 0
      %3391 = vmatpush1.bf16.msra.mxu0 0
      %3392 = vmatprep.subr.bf16.mxu0 0
      %3393 = vmatpush1.bf16.msra.mxu0 0
      %3394 = vmatprep.subr.bf16.mxu0 0
      %3395 = vmatpush1.bf16.msra.mxu0 0
      %3396 = vmatprep.subr.bf16.mxu0 0
      %3397 = vmatpush1.bf16.msra.mxu0 0
      %3398 = vmatprep.subr.bf16.mxu0 0
      %3399 = vmatpush1.bf16.msra.mxu0 0
      %3400 = vmatprep.subr.bf16.mxu0 0
      %3401 = vmatpush1.bf16.msra.mxu0 0
      %3402 = vmatprep.subr.bf16.mxu0 0
      %3403 = vmatpush1.bf16.msra.mxu0 0
      %3404 = vmatprep.subr.bf16.mxu0 0
      %3405 = vmatpush1.bf16.msra.mxu0 0
      %3406 = vmatprep.subr.bf16.mxu0 0
      %3407 = vmatpush1.bf16.msra.mxu0 0
      %3408 = vmatprep.subr.bf16.mxu0 0
      %3409 = vmatpush1.bf16.msra.mxu0 0
      %3410 = vmatprep.subr.bf16.mxu0 0
      %3411 = vmatpush1.bf16.msra.mxu0 0
      %3412 = vmatprep.subr.bf16.mxu0 0
      %3413 = vmatpush1.bf16.msra.mxu0 0
      %3414 = vmatprep.subr.bf16.mxu0 0
      %3415 = vmatpush1.bf16.msra.mxu0 0
      %3416 = vmatprep.mubr.bf16.mxu0 0
      %3417 = vmatmul.mubr.bf16.gmra.mrb[0].mxu0 %v3334
      %v3418 = vpop.f32.mrb[0].mxu0
      %v3419 = vadd.f32 0.0, %v3418
      %v3420 = vpop.f32.mrb[0].mxu0
      %v3421 = vpop.f32.mrb[0].mxu0
      %v3422 = vadd.f32 0.0, %v3421
      %v3423 = vpop.f32.mrb[0].mxu0
      %3424 = vmatprep.mubr.bf16.mxu0 0
      %3425 = vmatmul.mubr.bf16.gmra.mrb[0].mxu0 %v3337
      %v3426 = vpop.f32.mrb[0].mxu0
      %v3427 = vadd.f32 0.0, %v3426
      %v3428 = vpop.f32.mrb[0].mxu0
      %v3429 = vpop.f32.mrb[0].mxu0
      %v3430 = vadd.f32 0.0, %v3429
      %v3431 = vpop.f32.mrb[0].mxu0
      %3432 = vmatprep.mubr.bf16.mxu0 0
      %3433 = vmatmul.mubr.bf16.gmra.mrb[0].mxu0 %v3340
      %v3434 = vpop.f32.mrb[0].mxu0
      %v3435 = vadd.f32 0.0, %v3434
      %v3436 = vpop.f32.mrb[0].mxu0
      %v3437 = vpop.f32.mrb[0].mxu0
      %v3438 = vadd.f32 0.0, %v3437
      %v3439 = vpop.f32.mrb[0].mxu0
      %3440 = vmatprep.mubr.bf16.mxu0 0
      %3441 = vmatmul.mubr.bf16.gmra.mrb[0].mxu0 %v3343
      %v3442 = vpop.f32.mrb[0].mxu0
      %v3443 = vadd.f32 0.0, %v3442
      %v3444 = vpop.f32.mrb[0].mxu0
      %v3445 = vpop.f32.mrb[0].mxu0
      %v3446 = vadd.f32 0.0, %v3445
      %v3447 = vpop.f32.mrb[0].mxu0
      %3448 = vmatprep.mubr.bf16.mxu0 0
      %3449 = vmatmul.mubr.bf16.gmra.mrb[0].mxu0 %v3346
      %v3450 = vpop.f32.mrb[0].mxu0
      %v3451 = vadd.f32 0.0, %v3450
      %v3452 = vpop.f32.mrb[0].mxu0
      %v3453 = vpop.f32.mrb[0].mxu0
      %v3454 = vadd.f32 0.0, %v3453
      %v3455 = vpop.f32.mrb[0].mxu0
      %3456 = vmatprep.mubr.bf16.mxu0 0
      %3457 = vmatmul.mubr.bf16.gmra.mrb[0].mxu0 %v3349
      %v3458 = vpop.f32.mrb[0].mxu0
      %v3459 = vadd.f32 0.0, %v3458
      %v3460 = vpop.f32.mrb[0].mxu0
      %v3461 = vpop.f32.mrb[0].mxu0
      %v3462 = vadd.f32 0.0, %v3461
      %v3463 = vpop.f32.mrb[0].mxu0
      %3464 = vmatprep.mubr.bf16.mxu0 0
      %3465 = vmatmul.mubr.bf16.gmra.mrb[0].mxu0 %v3352
      %v3466 = vpop.f32.mrb[0].mxu0
      %v3467 = vadd.f32 0.0, %v3466
      %v3468 = vpop.f32.mrb[0].mxu0
      %v3469 = vpop.f32.mrb[0].mxu0
      %v3470 = vadd.f32 0.0, %v3469
      %v3471 = vpop.f32.mrb[0].mxu0
      %3472 = vmatprep.mubr.bf16.mxu0 0
      %3473 = vmatmul.mubr.bf16.gmra.mrb[0].mxu0 %v3355
      %v3474 = vpop.f32.mrb[0].mxu0
      %v3475 = vadd.f32 0.0, %v3474
      %v3476 = vpop.f32.mrb[0].mxu0
      %v3477 = vpop.f32.mrb[0].mxu0
      %v3478 = vadd.f32 0.0, %v3477
      %v3479 = vpop.f32.mrb[0].mxu0
      %3480 = vmatprep.mubr.bf16.mxu0 0
      %3481 = vmatmul.mubr.bf16.gmra.mrb[0].mxu0 %v3358
      %v3482 = vpop.f32.mrb[0].mxu0
      %v3483 = vadd.f32 0.0, %v3482
      %v3484 = vpop.f32.mrb[0].mxu0
      %v3485 = vpop.f32.mrb[0].mxu0
      %v3486 = vadd.f32 0.0, %v3485
      %v3487 = vpop.f32.mrb[0].mxu0
      %3488 = vmatprep.mubr.bf16.mxu0 0
      %3489 = vmatmul.mubr.bf16.gmra.mrb[0].mxu0 %v3361
      %v3490 = vpop.f32.mrb[0].mxu0
      %v3491 = vadd.f32 0.0, %v3490
      %v3492 = vpop.f32.mrb[0].mxu0
      %v3493 = vpop.f32.mrb[0].mxu0
      %v3494 = vadd.f32 0.0, %v3493
      %v3495 = vpop.f32.mrb[0].mxu0
      %3496 = vmatprep.mubr.bf16.mxu0 0
      %3497 = vmatmul.mubr.bf16.gmra.mrb[0].mxu0 %v3364
      %v3498 = vpop.f32.mrb[0].mxu0
      %v3499 = vadd.f32 0.0, %v3498
      %v3500 = vpop.f32.mrb[0].mxu0
      %v3501 = vpop.f32.mrb[0].mxu0
      %v3502 = vadd.f32 0.0, %v3501
      %v3503 = vpop.f32.mrb[0].mxu0
      %3504 = vmatprep.mubr.bf16.mxu0 0
      %3505 = vmatmul.mubr.bf16.gmra.mrb[0].mxu0 %v3367
      %v3506 = vpop.f32.mrb[0].mxu0
      %v3507 = vadd.f32 0.0, %v3506
      %v3508 = vpop.f32.mrb[0].mxu0
      %v3509 = vpop.f32.mrb[0].mxu0
      %v3510 = vadd.f32 0.0, %v3509
      %v3511 = vpop.f32.mrb[0].mxu0
      %3512 = vmatprep.mubr.bf16.mxu0 0
      %3513 = vmatmul.mubr.bf16.gmra.mrb[0].mxu0 %v3370
      %v3514 = vpop.f32.mrb[0].mxu0
      %v3515 = vadd.f32 0.0, %v3514
      %v3516 = vpop.f32.mrb[0].mxu0
      %v3517 = vpop.f32.mrb[0].mxu0
      %v3518 = vadd.f32 0.0, %v3517
      %v3519 = vpop.f32.mrb[0].mxu0
      %3520 = vmatprep.mubr.bf16.mxu0 0
      %3521 = vmatmul.mubr.bf16.gmra.mrb[0].mxu0 %v3373
      %v3522 = vpop.f32.mrb[0].mxu0
      %v3523 = vadd.f32 0.0, %v3522
      %v3524 = vpop.f32.mrb[0].mxu0
      %v3525 = vpop.f32.mrb[0].mxu0
      %v3526 = vadd.f32 0.0, %v3525
      %v3527 = vpop.f32.mrb[0].mxu0
      %3528 = vmatprep.mubr.bf16.mxu0 0
      %3529 = vmatmul.mubr.bf16.gmra.mrb[0].mxu0 %v3376
      %v3530 = vpop.f32.mrb[0].mxu0
      %v3531 = vadd.f32 0.0, %v3530
      %v3532 = vpop.f32.mrb[0].mxu0
      %v3533 = vpop.f32.mrb[0].mxu0
      %v3534 = vadd.f32 0.0, %v3533
      %v3535 = vpop.f32.mrb[0].mxu0
      %3536 = vmatprep.mubr.bf16.mxu0 0
      %3537 = vmatmul.mubr.bf16.gmra.mrb[0].mxu0 %v3379
      %v3538 = vpop.f32.mrb[0].mxu0
      %v3539 = vadd.f32 0.0, %v3538
      %v3540 = vpop.f32.mrb[0].mxu0
      %v3541 = vpop.f32.mrb[0].mxu0
      %v3542 = vadd.f32 0.0, %v3541
      %v3543 = vpop.f32.mrb[0].mxu0
      %3544 = vdwg.mxu0
      %v3545 = vadd.f32 %v2473, %v3419
      %v3546 = vadd.f32 %v2476, %v3422
      %v3547 = vadd.f32 %v2481, %v3427
      %v3548 = vadd.f32 %v2484, %v3430
      %v3549 = vadd.f32 %v2489, %v3435
      %v3550 = vadd.f32 %v2492, %v3438
      %v3551 = vadd.f32 %v2497, %v3443
      %v3552 = vadd.f32 %v2500, %v3446
      %v3553 = vadd.f32 %v2505, %v3451
      %v3554 = vadd.f32 %v2508, %v3454
      %v3555 = vadd.f32 %v2513, %v3459
      %v3556 = vadd.f32 %v2516, %v3462
      %v3557 = vadd.f32 %v2521, %v3467
      %v3558 = vadd.f32 %v2524, %v3470
      %v3559 = vadd.f32 %v2529, %v3475
      %v3560 = vadd.f32 %v2532, %v3478
      %v3561 = vadd.f32 %v2537, %v3483
      %v3562 = vadd.f32 %v2540, %v3486
      %v3563 = vadd.f32 %v2545, %v3491
      %v3564 = vadd.f32 %v2548, %v3494
      %v3565 = vadd.f32 %v2553, %v3499
      %v3566 = vadd.f32 %v2556, %v3502
      %v3567 = vadd.f32 %v2561, %v3507
      %v3568 = vadd.f32 %v2564, %v3510
      %v3569 = vadd.f32 %v2569, %v3515
      %v3570 = vadd.f32 %v2572, %v3518
      %v3571 = vadd.f32 %v2577, %v3523
      %v3572 = vadd.f32 %v2580, %v3526
      %v3573 = vadd.f32 %v2585, %v3531
      %v3574 = vadd.f32 %v2588, %v3534
      %v3575 = vadd.f32 %v2593, %v3539
      %v3576 = vadd.f32 %v2596, %v3542
      %v3577 = vld [vmem:[#allocation2 + $0xc] sm:$0x8]
      %v3578 = vld [vmem:[#allocation2 + $0x10] sm:$0xf]
      %v3579 = vld [vmem:[#allocation2 + $0x14] sm:$0xf]
      %v3580 = vld [vmem:[#allocation2 + $0x18] sm:$0xf]
      %v3581 = vld [vmem:[#allocation2 + $0x1c] sm:$0xf]
      %v3582 = vld [vmem:[#allocation2 + $0x20] sm:$0xf]
      %v3583 = vld [vmem:[#allocation2 + $0x24] sm:$0xf]
      %v3584 = vld [vmem:[#allocation2 + $0x28] sm:$0xf]
      %v3585 = vld [vmem:[#allocation2 + $0x2c] sm:$0xf]
      %v3586 = vld [vmem:[#allocation2 + $0x30] sm:$0xf]
      %v3587 = vld [vmem:[#allocation2 + $0x34] sm:$0xf]
      %v3588 = vld [vmem:[#allocation2 + $0x38] sm:$0xf]
      %v3589 = vld [vmem:[#allocation2 + $0x3c] sm:$0xf]
      %v3590 = vld [vmem:[#allocation2 + $0x40] sm:$0xf]
      %v3591 = vld [vmem:[#allocation2 + $0x44] sm:$0xf]
      %v3592 = vld [vmem:[#allocation2 + $0x48] sm:$0xf]
      %v3593 = vld [vmem:[#allocation2 + $0x4c] sm:$0xf]
      %v3594 = vld [vmem:[#allocation2 + $0x50] sm:$0xf]
      %v3595 = vld [vmem:[#allocation2 + $0x54] sm:$0xf]
      %v3596 = vld [vmem:[#allocation2 + $0x58] sm:$0xf]
      %v3597 = vld [vmem:[#allocation2 + $0x5c] sm:$0xf]
      %v3598 = vld [vmem:[#allocation2 + $0x60] sm:$0xf]
      %v3599 = vld [vmem:[#allocation2 + $0x64] sm:$0xf]
      %v3600 = vld [vmem:[#allocation2 + $0x68] sm:$0xf]
      %v3601 = vld [vmem:[#allocation2 + $0x6c] sm:$0xf]
      %v3602 = vld [vmem:[#allocation2 + $0x70] sm:$0xf]
      %v3603 = vld [vmem:[#allocation2 + $0x74] sm:$0xf]
      %v3604 = vld [vmem:[#allocation2 + $0x78] sm:$0xf]
      %v3605 = vld [vmem:[#allocation2 + $0x7c] sm:$0xf]
      %v3606 = vld [vmem:[#allocation2 + $0x80] sm:$0xf]
      %v3607 = vld [vmem:[#allocation2 + $0x84] sm:$0xf]
      %v3608 = vld [vmem:[#allocation2 + $0x88] sm:$0xf]
      %v3609 = vld [vmem:[#allocation2 + $0x8c] sm:$0xf]
      %v3610 = vsel %vm1788, %v3577, 0
      %v3611 = vsel %vm1789, %v3578, 0
      %v3612 = vsel %vm1790, %v3579, 0
      %v3613 = vsel %vm1791, %v3580, 0
      %v3614 = vsel %vm1792, %v3581, 0
      %v3615 = vsel %vm1793, %v3582, 0
      %v3616 = vsel %vm1794, %v3583, 0
      %v3617 = vsel %vm1795, %v3584, 0
      %v3618 = vsel %vm1796, %v3585, 0
      %v3619 = vsel %vm1797, %v3586, 0
      %v3620 = vsel %vm1798, %v3587, 0
      %v3621 = vsel %vm1799, %v3588, 0
      %v3622 = vsel %vm1800, %v3589, 0
      %v3623 = vsel %vm1801, %v3590, 0
      %v3624 = vsel %vm1802, %v3591, 0
      %v3625 = vsel %vm1803, %v3592, 0
      %v3626 = vsel %vm1804, %v3593, 0
      %v3627 = vsel %vm1805, %v3594, 0
      %v3628 = vsel %vm1806, %v3595, 0
      %v3629 = vsel %vm1807, %v3596, 0
      %v3630 = vsel %vm1808, %v3597, 0
      %v3631 = vsel %vm1809, %v3598, 0
      %v3632 = vsel %vm1810, %v3599, 0
      %v3633 = vsel %vm1811, %v3600, 0
      %v3634 = vsel %vm1812, %v3601, 0
      %v3635 = vsel %vm1813, %v3602, 0
      %v3636 = vsel %vm1814, %v3603, 0
      %v3637 = vsel %vm1815, %v3604, 0
      %v3638 = vsel %vm1816, %v3605, 0
      %v3639 = vsel %vm1817, %v3606, 0
      %v3640 = vsel %vm1818, %v3607, 0
      %v3641 = vsel %vm1819, %v3608, 0
      %v3642 = vsel %vm1820, %v3609, 0
      %s3643 = scalar_lea.vmem %s3, 6
      %v3644 = vld [vmem:[%s3643] sm:$0x3]
      %v3678 = vunpack.c.l.b16 %v3610
      %v3679 = vunpack.c.l.b16 %v3611
      %v3680 = vunpack.c.l.b16 %v3612
      %v3681 = vunpack.c.l.b16 %v3613
      %v3682 = vunpack.c.l.b16 %v3614
      %v3683 = vunpack.c.l.b16 %v3615
      %v3684 = vunpack.c.l.b16 %v3616
      %v3685 = vunpack.c.l.b16 %v3617
      %v3686 = vunpack.c.l.b16 %v3618
      %v3687 = vunpack.c.l.b16 %v3619
      %v3688 = vunpack.c.l.b16 %v3620
      %v3689 = vunpack.c.l.b16 %v3621
      %v3690 = vunpack.c.l.b16 %v3622
      %v3691 = vunpack.c.l.b16 %v3623
      %v3692 = vunpack.c.l.b16 %v3624
      %v3693 = vunpack.c.l.b16 %v3625
      %v3694 = vunpack.c.l.b16 %v3626
      %v3695 = vunpack.c.l.b16 %v3627
      %v3696 = vunpack.c.l.b16 %v3628
      %v3697 = vunpack.c.l.b16 %v3629
      %v3698 = vunpack.c.l.b16 %v3630
      %v3699 = vunpack.c.l.b16 %v3631
      %v3700 = vunpack.c.l.b16 %v3632
      %v3701 = vunpack.c.l.b16 %v3633
      %v3702 = vunpack.c.l.b16 %v3634
      %v3703 = vunpack.c.l.b16 %v3635
      %v3704 = vunpack.c.l.b16 %v3636
      %v3705 = vunpack.c.l.b16 %v3637
      %v3706 = vunpack.c.l.b16 %v3638
      %v3707 = vunpack.c.l.b16 %v3639
      %v3708 = vunpack.c.l.b16 %v3640
      %v3709 = vunpack.c.l.b16 %v3641
      %v3710 = vunpack.c.l.b16 %v3642
      %v3711 = vpack.c.b16 %v3679, %v3678
      %v3712 = vpack.c.b16 %v3681, %v3680
      %v3713 = vpack.c.b16 %v3683, %v3682
      %v3714 = vpack.c.b16 %v3685, %v3684
      %v3715 = vpack.c.b16 %v3687, %v3686
      %v3716 = vpack.c.b16 %v3689, %v3688
      %v3717 = vpack.c.b16 %v3691, %v3690
      %v3718 = vpack.c.b16 %v3693, %v3692
      %v3719 = vpack.c.b16 %v3695, %v3694
      %v3720 = vpack.c.b16 %v3697, %v3696
      %v3721 = vpack.c.b16 %v3699, %v3698
      %v3722 = vpack.c.b16 %v3701, %v3700
      %v3723 = vpack.c.b16 %v3703, %v3702
      %v3724 = vpack.c.b16 %v3705, %v3704
      %v3725 = vpack.c.b16 %v3707, %v3706
      %v3726 = vpack.c.b16 %v3709, %v3708
      %v3727 = vpack.c.b16 %v3710, %v3710
      %v3729 = vshrl.u32 %v3711, 16
      %v3731 = vrot.slane %v3729, 3
      %v3732 = vshll.u32 %v3711, 16
      %v3734 = vrot.slane %v3732, 4
      %v3735 = vor.u32 %v3731, %v3734
      %v3737 = vshrl.u32 %v3712, 16
      %v3739 = vrot.slane %v3737, 3
      %v3740 = vshll.u32 %v3712, 16
      %v3742 = vrot.slane %v3740, 4
      %v3743 = vor.u32 %v3739, %v3742
      %v3744 = vsel %vm2234, %v3735, %v3743
      %v3746 = vshrl.u32 %v3713, 16
      %v3748 = vrot.slane %v3746, 3
      %v3749 = vshll.u32 %v3713, 16
      %v3751 = vrot.slane %v3749, 4
      %v3752 = vor.u32 %v3748, %v3751
      %v3753 = vsel %vm2234, %v3743, %v3752
      %v3755 = vshrl.u32 %v3714, 16
      %v3757 = vrot.slane %v3755, 3
      %v3758 = vshll.u32 %v3714, 16
      %v3760 = vrot.slane %v3758, 4
      %v3761 = vor.u32 %v3757, %v3760
      %v3762 = vsel %vm2234, %v3752, %v3761
      %v3764 = vshrl.u32 %v3715, 16
      %v3766 = vrot.slane %v3764, 3
      %v3767 = vshll.u32 %v3715, 16
      %v3769 = vrot.slane %v3767, 4
      %v3770 = vor.u32 %v3766, %v3769
      %v3771 = vsel %vm2234, %v3761, %v3770
      %v3773 = vshrl.u32 %v3716, 16
      %v3775 = vrot.slane %v3773, 3
      %v3776 = vshll.u32 %v3716, 16
      %v3778 = vrot.slane %v3776, 4
      %v3779 = vor.u32 %v3775, %v3778
      %v3780 = vsel %vm2234, %v3770, %v3779
      %v3782 = vshrl.u32 %v3717, 16
      %v3784 = vrot.slane %v3782, 3
      %v3785 = vshll.u32 %v3717, 16
      %v3787 = vrot.slane %v3785, 4
      %v3788 = vor.u32 %v3784, %v3787
      %v3789 = vsel %vm2234, %v3779, %v3788
      %v3791 = vshrl.u32 %v3718, 16
      %v3793 = vrot.slane %v3791, 3
      %v3794 = vshll.u32 %v3718, 16
      %v3796 = vrot.slane %v3794, 4
      %v3797 = vor.u32 %v3793, %v3796
      %v3798 = vsel %vm2234, %v3788, %v3797
      %v3800 = vshrl.u32 %v3719, 16
      %v3802 = vrot.slane %v3800, 3
      %v3803 = vshll.u32 %v3719, 16
      %v3805 = vrot.slane %v3803, 4
      %v3806 = vor.u32 %v3802, %v3805
      %v3807 = vsel %vm2234, %v3797, %v3806
      %v3809 = vshrl.u32 %v3720, 16
      %v3811 = vrot.slane %v3809, 3
      %v3812 = vshll.u32 %v3720, 16
      %v3814 = vrot.slane %v3812, 4
      %v3815 = vor.u32 %v3811, %v3814
      %v3816 = vsel %vm2234, %v3806, %v3815
      %v3818 = vshrl.u32 %v3721, 16
      %v3820 = vrot.slane %v3818, 3
      %v3821 = vshll.u32 %v3721, 16
      %v3823 = vrot.slane %v3821, 4
      %v3824 = vor.u32 %v3820, %v3823
      %v3825 = vsel %vm2234, %v3815, %v3824
      %v3827 = vshrl.u32 %v3722, 16
      %v3829 = vrot.slane %v3827, 3
      %v3830 = vshll.u32 %v3722, 16
      %v3832 = vrot.slane %v3830, 4
      %v3833 = vor.u32 %v3829, %v3832
      %v3834 = vsel %vm2234, %v3824, %v3833
      %v3836 = vshrl.u32 %v3723, 16
      %v3838 = vrot.slane %v3836, 3
      %v3839 = vshll.u32 %v3723, 16
      %v3841 = vrot.slane %v3839, 4
      %v3842 = vor.u32 %v3838, %v3841
      %v3843 = vsel %vm2234, %v3833, %v3842
      %v3845 = vshrl.u32 %v3724, 16
      %v3847 = vrot.slane %v3845, 3
      %v3848 = vshll.u32 %v3724, 16
      %v3850 = vrot.slane %v3848, 4
      %v3851 = vor.u32 %v3847, %v3850
      %v3852 = vsel %vm2234, %v3842, %v3851
      %v3854 = vshrl.u32 %v3725, 16
      %v3856 = vrot.slane %v3854, 3
      %v3857 = vshll.u32 %v3725, 16
      %v3859 = vrot.slane %v3857, 4
      %v3860 = vor.u32 %v3856, %v3859
      %v3861 = vsel %vm2234, %v3851, %v3860
      %v3863 = vshrl.u32 %v3726, 16
      %v3865 = vrot.slane %v3863, 3
      %v3866 = vshll.u32 %v3726, 16
      %v3868 = vrot.slane %v3866, 4
      %v3869 = vor.u32 %v3865, %v3868
      %v3870 = vsel %vm2234, %v3860, %v3869
      %v3872 = vshrl.u32 %v3727, 16
      %v3874 = vrot.slane %v3872, 3
      %v3875 = vshll.u32 %v3727, 16
      %v3877 = vrot.slane %v3875, 4
      %v3878 = vor.u32 %v3874, %v3877
      %v3879 = vsel %vm2234, %v3869, %v3878
      %v3881 = vsel %vm1937, %v3744, 0
      %v3884 = vsel %vm1937, %v3753, 0
      %v3887 = vsel %vm1937, %v3762, 0
      %v3890 = vsel %vm1937, %v3771, 0
      %v3893 = vsel %vm1937, %v3780, 0
      %v3896 = vsel %vm1937, %v3789, 0
      %v3899 = vsel %vm1937, %v3798, 0
      %v3902 = vsel %vm1937, %v3807, 0
      %v3905 = vsel %vm1937, %v3816, 0
      %v3908 = vsel %vm1937, %v3825, 0
      %v3911 = vsel %vm1937, %v3834, 0
      %v3914 = vsel %vm1937, %v3843, 0
      %v3917 = vsel %vm1937, %v3852, 0
      %v3920 = vsel %vm1937, %v3861, 0
      %v3923 = vsel %vm1937, %v3870, 0
      %v3926 = vsel %vm1937, %v3879, 0
      %v3929 = vsel %vm1986, %v3644, 0
      %3931 = vmatprep.subr.bf16.mxu0 0
      %3932 = vmatpush1.bf16.msra.mxu0 %v3929
      %3933 = vmatprep.subr.bf16.mxu0 0
      %3934 = vmatpush1.bf16.msra.mxu0 0
      %3935 = vmatprep.subr.bf16.mxu0 0
      %3936 = vmatpush1.bf16.msra.mxu0 0
      %3937 = vmatprep.subr.bf16.mxu0 0
      %3938 = vmatpush1.bf16.msra.mxu0 0
      %3939 = vmatprep.subr.bf16.mxu0 0
      %3940 = vmatpush1.bf16.msra.mxu0 0
      %3941 = vmatprep.subr.bf16.mxu0 0
      %3942 = vmatpush1.bf16.msra.mxu0 0
      %3943 = vmatprep.subr.bf16.mxu0 0
      %3944 = vmatpush1.bf16.msra.mxu0 0
      %3945 = vmatprep.subr.bf16.mxu0 0
      %3946 = vmatpush1.bf16.msra.mxu0 0
      %3947 = vmatprep.subr.bf16.mxu0 0
      %3948 = vmatpush1.bf16.msra.mxu0 0
      %3949 = vmatprep.subr.bf16.mxu0 0
      %3950 = vmatpush1.bf16.msra.mxu0 0
      %3951 = vmatprep.subr.bf16.mxu0 0
      %3952 = vmatpush1.bf16.msra.mxu0 0
      %3953 = vmatprep.subr.bf16.mxu0 0
      %3954 = vmatpush1.bf16.msra.mxu0 0
      %3955 = vmatprep.subr.bf16.mxu0 0
      %3956 = vmatpush1.bf16.msra.mxu0 0
      %3957 = vmatprep.subr.bf16.mxu0 0
      %3958 = vmatpush1.bf16.msra.mxu0 0
      %3959 = vmatprep.subr.bf16.mxu0 0
      %3960 = vmatpush1.bf16.msra.mxu0 0
      %3961 = vmatprep.subr.bf16.mxu0 0
      %3962 = vmatpush1.bf16.msra.mxu0 0
      %3963 = vmatprep.mubr.bf16.mxu0 0
      %3964 = vmatmul.mubr.bf16.gmra.mrb[0].mxu0 %v3881
      %v3965 = vpop.f32.mrb[0].mxu0
      %v3966 = vadd.f32 0.0, %v3965
      %v3967 = vpop.f32.mrb[0].mxu0
      %v3968 = vpop.f32.mrb[0].mxu0
      %v3969 = vadd.f32 0.0, %v3968
      %v3970 = vpop.f32.mrb[0].mxu0
      %3971 = vmatprep.mubr.bf16.mxu0 0
      %3972 = vmatmul.mubr.bf16.gmra.mrb[0].mxu0 %v3884
      %v3973 = vpop.f32.mrb[0].mxu0
      %v3974 = vadd.f32 0.0, %v3973
      %v3975 = vpop.f32.mrb[0].mxu0
      %v3976 = vpop.f32.mrb[0].mxu0
      %v3977 = vadd.f32 0.0, %v3976
      %v3978 = vpop.f32.mrb[0].mxu0
      %3979 = vmatprep.mubr.bf16.mxu0 0
      %3980 = vmatmul.mubr.bf16.gmra.mrb[0].mxu0 %v3887
      %v3981 = vpop.f32.mrb[0].mxu0
      %v3982 = vadd.f32 0.0, %v3981
      %v3983 = vpop.f32.mrb[0].mxu0
      %v3984 = vpop.f32.mrb[0].mxu0
      %v3985 = vadd.f32 0.0, %v3984
      %v3986 = vpop.f32.mrb[0].mxu0
      %3987 = vmatprep.mubr.bf16.mxu0 0
      %3988 = vmatmul.mubr.bf16.gmra.mrb[0].mxu0 %v3890
      %v3989 = vpop.f32.mrb[0].mxu0
      %v3990 = vadd.f32 0.0, %v3989
      %v3991 = vpop.f32.mrb[0].mxu0
      %v3992 = vpop.f32.mrb[0].mxu0
      %v3993 = vadd.f32 0.0, %v3992
      %v3994 = vpop.f32.mrb[0].mxu0
      %3995 = vmatprep.mubr.bf16.mxu0 0
      %3996 = vmatmul.mubr.bf16.gmra.mrb[0].mxu0 %v3893
      %v3997 = vpop.f32.mrb[0].mxu0
      %v3998 = vadd.f32 0.0, %v3997
      %v3999 = vpop.f32.mrb[0].mxu0
      %v4000 = vpop.f32.mrb[0].mxu0
      %v4001 = vadd.f32 0.0, %v4000
      %v4002 = vpop.f32.mrb[0].mxu0
      %4003 = vmatprep.mubr.bf16.mxu0 0
      %4004 = vmatmul.mubr.bf16.gmra.mrb[0].mxu0 %v3896
      %v4005 = vpop.f32.mrb[0].mxu0
      %v4006 = vadd.f32 0.0, %v4005
      %v4007 = vpop.f32.mrb[0].mxu0
      %v4008 = vpop.f32.mrb[0].mxu0
      %v4009 = vadd.f32 0.0, %v4008
      %v4010 = vpop.f32.mrb[0].mxu0
      %4011 = vmatprep.mubr.bf16.mxu0 0
      %4012 = vmatmul.mubr.bf16.gmra.mrb[0].mxu0 %v3899
      %v4013 = vpop.f32.mrb[0].mxu0
      %v4014 = vadd.f32 0.0, %v4013
      %v4015 = vpop.f32.mrb[0].mxu0
      %v4016 = vpop.f32.mrb[0].mxu0
      %v4017 = vadd.f32 0.0, %v4016
      %v4018 = vpop.f32.mrb[0].mxu0
      %4019 = vmatprep.mubr.bf16.mxu0 0
      %4020 = vmatmul.mubr.bf16.gmra.mrb[0].mxu0 %v3902
      %v4021 = vpop.f32.mrb[0].mxu0
      %v4022 = vadd.f32 0.0, %v4021
      %v4023 = vpop.f32.mrb[0].mxu0
      %v4024 = vpop.f32.mrb[0].mxu0
      %v4025 = vadd.f32 0.0, %v4024
      %v4026 = vpop.f32.mrb[0].mxu0
      %4027 = vmatprep.mubr.bf16.mxu0 0
      %4028 = vmatmul.mubr.bf16.gmra.mrb[0].mxu0 %v3905
      %v4029 = vpop.f32.mrb[0].mxu0
      %v4030 = vadd.f32 0.0, %v4029
      %v4031 = vpop.f32.mrb[0].mxu0
      %v4032 = vpop.f32.mrb[0].mxu0
      %v4033 = vadd.f32 0.0, %v4032
      %v4034 = vpop.f32.mrb[0].mxu0
      %4035 = vmatprep.mubr.bf16.mxu0 0
      %4036 = vmatmul.mubr.bf16.gmra.mrb[0].mxu0 %v3908
      %v4037 = vpop.f32.mrb[0].mxu0
      %v4038 = vadd.f32 0.0, %v4037
      %v4039 = vpop.f32.mrb[0].mxu0
      %v4040 = vpop.f32.mrb[0].mxu0
      %v4041 = vadd.f32 0.0, %v4040
      %v4042 = vpop.f32.mrb[0].mxu0
      %4043 = vmatprep.mubr.bf16.mxu0 0
      %4044 = vmatmul.mubr.bf16.gmra.mrb[0].mxu0 %v3911
      %v4045 = vpop.f32.mrb[0].mxu0
      %v4046 = vadd.f32 0.0, %v4045
      %v4047 = vpop.f32.mrb[0].mxu0
      %v4048 = vpop.f32.mrb[0].mxu0
      %v4049 = vadd.f32 0.0, %v4048
      %v4050 = vpop.f32.mrb[0].mxu0
      %4051 = vmatprep.mubr.bf16.mxu0 0
      %4052 = vmatmul.mubr.bf16.gmra.mrb[0].mxu0 %v3914
      %v4053 = vpop.f32.mrb[0].mxu0
      %v4054 = vadd.f32 0.0, %v4053
      %v4055 = vpop.f32.mrb[0].mxu0
      %v4056 = vpop.f32.mrb[0].mxu0
      %v4057 = vadd.f32 0.0, %v4056
      %v4058 = vpop.f32.mrb[0].mxu0
      %4059 = vmatprep.mubr.bf16.mxu0 0
      %4060 = vmatmul.mubr.bf16.gmra.mrb[0].mxu0 %v3917
      %v4061 = vpop.f32.mrb[0].mxu0
      %v4062 = vadd.f32 0.0, %v4061
      %v4063 = vpop.f32.mrb[0].mxu0
      %v4064 = vpop.f32.mrb[0].mxu0
      %v4065 = vadd.f32 0.0, %v4064
      %v4066 = vpop.f32.mrb[0].mxu0
      %4067 = vmatprep.mubr.bf16.mxu0 0
      %4068 = vmatmul.mubr.bf16.gmra.mrb[0].mxu0 %v3920
      %v4069 = vpop.f32.mrb[0].mxu0
      %v4070 = vadd.f32 0.0, %v4069
      %v4071 = vpop.f32.mrb[0].mxu0
      %v4072 = vpop.f32.mrb[0].mxu0
      %v4073 = vadd.f32 0.0, %v4072
      %v4074 = vpop.f32.mrb[0].mxu0
      %4075 = vmatprep.mubr.bf16.mxu0 0
      %4076 = vmatmul.mubr.bf16.gmra.mrb[0].mxu0 %v3923
      %v4077 = vpop.f32.mrb[0].mxu0
      %v4078 = vadd.f32 0.0, %v4077
      %v4079 = vpop.f32.mrb[0].mxu0
      %v4080 = vpop.f32.mrb[0].mxu0
      %v4081 = vadd.f32 0.0, %v4080
      %v4082 = vpop.f32.mrb[0].mxu0
      %4083 = vmatprep.mubr.bf16.mxu0 0
      %4084 = vmatmul.mubr.bf16.gmra.mrb[0].mxu0 %v3926
      %v4085 = vpop.f32.mrb[0].mxu0
      %v4086 = vadd.f32 0.0, %v4085
      %v4087 = vpop.f32.mrb[0].mxu0
      %v4088 = vpop.f32.mrb[0].mxu0
      %v4089 = vadd.f32 0.0, %v4088
      %v4090 = vpop.f32.mrb[0].mxu0
      %4091 = vdwg.mxu0
      %v4092 = vadd.f32 %v3545, %v3966
      %v4093 = vadd.f32 %v3546, %v3969
      %v4094 = vadd.f32 %v3547, %v3974
      %v4095 = vadd.f32 %v3548, %v3977
      %v4096 = vadd.f32 %v3549, %v3982
      %v4097 = vadd.f32 %v3550, %v3985
      %v4098 = vadd.f32 %v3551, %v3990
      %v4099 = vadd.f32 %v3552, %v3993
      %v4100 = vadd.f32 %v3553, %v3998
      %v4101 = vadd.f32 %v3554, %v4001
      %v4102 = vadd.f32 %v3555, %v4006
      %v4103 = vadd.f32 %v3556, %v4009
      %v4104 = vadd.f32 %v3557, %v4014
      %v4105 = vadd.f32 %v3558, %v4017
      %v4106 = vadd.f32 %v3559, %v4022
      %v4107 = vadd.f32 %v3560, %v4025
      %v4108 = vadd.f32 %v3561, %v4030
      %v4109 = vadd.f32 %v3562, %v4033
      %v4110 = vadd.f32 %v3563, %v4038
      %v4111 = vadd.f32 %v3564, %v4041
      %v4112 = vadd.f32 %v3565, %v4046
      %v4113 = vadd.f32 %v3566, %v4049
      %v4114 = vadd.f32 %v3567, %v4054
      %v4115 = vadd.f32 %v3568, %v4057
      %v4116 = vadd.f32 %v3569, %v4062
      %v4117 = vadd.f32 %v3570, %v4065
      %v4118 = vadd.f32 %v3571, %v4070
      %v4119 = vadd.f32 %v3572, %v4073
      %v4120 = vadd.f32 %v3573, %v4078
      %v4121 = vadd.f32 %v3574, %v4081
      %v4122 = vadd.f32 %v3575, %v4086
      %v4123 = vadd.f32 %v3576, %v4089
      %s4124 = scalar_lea.vmem %s3, 8
      %v4125 = vld [vmem:[%s4124] sm:$0x3]
      %v4158 = vunpack.c.l.b16 %v3578
      %v4159 = vunpack.c.l.b16 %v3579
      %v4160 = vunpack.c.l.b16 %v3580
      %v4161 = vunpack.c.l.b16 %v3581
      %v4162 = vunpack.c.l.b16 %v3582
      %v4163 = vunpack.c.l.b16 %v3583
      %v4164 = vunpack.c.l.b16 %v3584
      %v4165 = vunpack.c.l.b16 %v3585
      %v4166 = vunpack.c.l.b16 %v3586
      %v4167 = vunpack.c.l.b16 %v3587
      %v4168 = vunpack.c.l.b16 %v3588
      %v4169 = vunpack.c.l.b16 %v3589
      %v4170 = vunpack.c.l.b16 %v3590
      %v4171 = vunpack.c.l.b16 %v3591
      %v4172 = vunpack.c.l.b16 %v3592
      %v4173 = vunpack.c.l.b16 %v3593
      %v4174 = vunpack.c.l.b16 %v3594
      %v4175 = vunpack.c.l.b16 %v3595
      %v4176 = vunpack.c.l.b16 %v3596
      %v4177 = vunpack.c.l.b16 %v3597
      %v4178 = vunpack.c.l.b16 %v3598
      %v4179 = vunpack.c.l.b16 %v3599
      %v4180 = vunpack.c.l.b16 %v3600
      %v4181 = vunpack.c.l.b16 %v3601
      %v4182 = vunpack.c.l.b16 %v3602
      %v4183 = vunpack.c.l.b16 %v3603
      %v4184 = vunpack.c.l.b16 %v3604
      %v4185 = vunpack.c.l.b16 %v3605
      %v4186 = vunpack.c.l.b16 %v3606
      %v4187 = vunpack.c.l.b16 %v3607
      %v4188 = vunpack.c.l.b16 %v3608
      %v4189 = vunpack.c.l.b16 %v3609
      %v4190 = vpack.c.b16 %v4159, %v4158
      %v4191 = vpack.c.b16 %v4161, %v4160
      %v4192 = vpack.c.b16 %v4163, %v4162
      %v4193 = vpack.c.b16 %v4165, %v4164
      %v4194 = vpack.c.b16 %v4167, %v4166
      %v4195 = vpack.c.b16 %v4169, %v4168
      %v4196 = vpack.c.b16 %v4171, %v4170
      %v4197 = vpack.c.b16 %v4173, %v4172
      %v4198 = vpack.c.b16 %v4175, %v4174
      %v4199 = vpack.c.b16 %v4177, %v4176
      %v4200 = vpack.c.b16 %v4179, %v4178
      %v4201 = vpack.c.b16 %v4181, %v4180
      %v4202 = vpack.c.b16 %v4183, %v4182
      %v4203 = vpack.c.b16 %v4185, %v4184
      %v4204 = vpack.c.b16 %v4187, %v4186
      %v4205 = vpack.c.b16 %v4189, %v4188
      %v4207 = vsel %vm1937, %v4190, 0
      %v4210 = vsel %vm1937, %v4191, 0
      %v4213 = vsel %vm1937, %v4192, 0
      %v4216 = vsel %vm1937, %v4193, 0
      %v4219 = vsel %vm1937, %v4194, 0
      %v4222 = vsel %vm1937, %v4195, 0
      %v4225 = vsel %vm1937, %v4196, 0
      %v4228 = vsel %vm1937, %v4197, 0
      %v4231 = vsel %vm1937, %v4198, 0
      %v4234 = vsel %vm1937, %v4199, 0
      %v4237 = vsel %vm1937, %v4200, 0
      %v4240 = vsel %vm1937, %v4201, 0
      %v4243 = vsel %vm1937, %v4202, 0
      %v4246 = vsel %vm1937, %v4203, 0
      %v4249 = vsel %vm1937, %v4204, 0
      %v4252 = vsel %vm1937, %v4205, 0
      %v4255 = vsel %vm1986, %v4125, 0
      %4257 = vmatprep.subr.bf16.mxu0 0
      %4258 = vmatpush1.bf16.msra.mxu0 %v4255
      %4259 = vmatprep.subr.bf16.mxu0 0
      %4260 = vmatpush1.bf16.msra.mxu0 0
      %4261 = vmatprep.subr.bf16.mxu0 0
      %4262 = vmatpush1.bf16.msra.mxu0 0
      %4263 = vmatprep.subr.bf16.mxu0 0
      %4264 = vmatpush1.bf16.msra.mxu0 0
      %4265 = vmatprep.subr.bf16.mxu0 0
      %4266 = vmatpush1.bf16.msra.mxu0 0
      %4267 = vmatprep.subr.bf16.mxu0 0
      %4268 = vmatpush1.bf16.msra.mxu0 0
      %4269 = vmatprep.subr.bf16.mxu0 0
      %4270 = vmatpush1.bf16.msra.mxu0 0
      %4271 = vmatprep.subr.bf16.mxu0 0
      %4272 = vmatpush1.bf16.msra.mxu0 0
      %4273 = vmatprep.subr.bf16.mxu0 0
      %4274 = vmatpush1.bf16.msra.mxu0 0
      %4275 = vmatprep.subr.bf16.mxu0 0
      %4276 = vmatpush1.bf16.msra.mxu0 0
      %4277 = vmatprep.subr.bf16.mxu0 0
      %4278 = vmatpush1.bf16.msra.mxu0 0
      %4279 = vmatprep.subr.bf16.mxu0 0
      %4280 = vmatpush1.bf16.msra.mxu0 0
      %4281 = vmatprep.subr.bf16.mxu0 0
      %4282 = vmatpush1.bf16.msra.mxu0 0
      %4283 = vmatprep.subr.bf16.mxu0 0
      %4284 = vmatpush1.bf16.msra.mxu0 0
      %4285 = vmatprep.subr.bf16.mxu0 0
      %4286 = vmatpush1.bf16.msra.mxu0 0
      %4287 = vmatprep.subr.bf16.mxu0 0
      %4288 = vmatpush1.bf16.msra.mxu0 0
      %4289 = vmatprep.mubr.bf16.mxu0 0
      %4290 = vmatmul.mubr.bf16.gmra.mrb[0].mxu0 %v4207
      %v4291 = vpop.f32.mrb[0].mxu0
      %v4292 = vadd.f32 0.0, %v4291
      %v4293 = vpop.f32.mrb[0].mxu0
      %v4294 = vpop.f32.mrb[0].mxu0
      %v4295 = vadd.f32 0.0, %v4294
      %v4296 = vpop.f32.mrb[0].mxu0
      %4297 = vmatprep.mubr.bf16.mxu0 0
      %4298 = vmatmul.mubr.bf16.gmra.mrb[0].mxu0 %v4210
      %v4299 = vpop.f32.mrb[0].mxu0
      %v4300 = vadd.f32 0.0, %v4299
      %v4301 = vpop.f32.mrb[0].mxu0
      %v4302 = vpop.f32.mrb[0].mxu0
      %v4303 = vadd.f32 0.0, %v4302
      %v4304 = vpop.f32.mrb[0].mxu0
      %4305 = vmatprep.mubr.bf16.mxu0 0
      %4306 = vmatmul.mubr.bf16.gmra.mrb[0].mxu0 %v4213
      %v4307 = vpop.f32.mrb[0].mxu0
      %v4308 = vadd.f32 0.0, %v4307
      %v4309 = vpop.f32.mrb[0].mxu0
      %v4310 = vpop.f32.mrb[0].mxu0
      %v4311 = vadd.f32 0.0, %v4310
      %v4312 = vpop.f32.mrb[0].mxu0
      %4313 = vmatprep.mubr.bf16.mxu0 0
      %4314 = vmatmul.mubr.bf16.gmra.mrb[0].mxu0 %v4216
      %v4315 = vpop.f32.mrb[0].mxu0
      %v4316 = vadd.f32 0.0, %v4315
      %v4317 = vpop.f32.mrb[0].mxu0
      %v4318 = vpop.f32.mrb[0].mxu0
      %v4319 = vadd.f32 0.0, %v4318
      %v4320 = vpop.f32.mrb[0].mxu0
      %4321 = vmatprep.mubr.bf16.mxu0 0
      %4322 = vmatmul.mubr.bf16.gmra.mrb[0].mxu0 %v4219
      %v4323 = vpop.f32.mrb[0].mxu0
      %v4324 = vadd.f32 0.0, %v4323
      %v4325 = vpop.f32.mrb[0].mxu0
      %v4326 = vpop.f32.mrb[0].mxu0
      %v4327 = vadd.f32 0.0, %v4326
      %v4328 = vpop.f32.mrb[0].mxu0
      %4329 = vmatprep.mubr.bf16.mxu0 0
      %4330 = vmatmul.mubr.bf16.gmra.mrb[0].mxu0 %v4222
      %v4331 = vpop.f32.mrb[0].mxu0
      %v4332 = vadd.f32 0.0, %v4331
      %v4333 = vpop.f32.mrb[0].mxu0
      %v4334 = vpop.f32.mrb[0].mxu0
      %v4335 = vadd.f32 0.0, %v4334
      %v4336 = vpop.f32.mrb[0].mxu0
      %4337 = vmatprep.mubr.bf16.mxu0 0
      %4338 = vmatmul.mubr.bf16.gmra.mrb[0].mxu0 %v4225
      %v4339 = vpop.f32.mrb[0].mxu0
      %v4340 = vadd.f32 0.0, %v4339
      %v4341 = vpop.f32.mrb[0].mxu0
      %v4342 = vpop.f32.mrb[0].mxu0
      %v4343 = vadd.f32 0.0, %v4342
      %v4344 = vpop.f32.mrb[0].mxu0
      %4345 = vmatprep.mubr.bf16.mxu0 0
      %4346 = vmatmul.mubr.bf16.gmra.mrb[0].mxu0 %v4228
      %v4347 = vpop.f32.mrb[0].mxu0
      %v4348 = vadd.f32 0.0, %v4347
      %v4349 = vpop.f32.mrb[0].mxu0
      %v4350 = vpop.f32.mrb[0].mxu0
      %v4351 = vadd.f32 0.0, %v4350
      %v4352 = vpop.f32.mrb[0].mxu0
      %4353 = vmatprep.mubr.bf16.mxu0 0
      %4354 = vmatmul.mubr.bf16.gmra.mrb[0].mxu0 %v4231
      %v4355 = vpop.f32.mrb[0].mxu0
      %v4356 = vadd.f32 0.0, %v4355
      %v4357 = vpop.f32.mrb[0].mxu0
      %v4358 = vpop.f32.mrb[0].mxu0
      %v4359 = vadd.f32 0.0, %v4358
      %v4360 = vpop.f32.mrb[0].mxu0
      %4361 = vmatprep.mubr.bf16.mxu0 0
      %4362 = vmatmul.mubr.bf16.gmra.mrb[0].mxu0 %v4234
      %v4363 = vpop.f32.mrb[0].mxu0
      %v4364 = vadd.f32 0.0, %v4363
      %v4365 = vpop.f32.mrb[0].mxu0
      %v4366 = vpop.f32.mrb[0].mxu0
      %v4367 = vadd.f32 0.0, %v4366
      %v4368 = vpop.f32.mrb[0].mxu0
      %4369 = vmatprep.mubr.bf16.mxu0 0
      %4370 = vmatmul.mubr.bf16.gmra.mrb[0].mxu0 %v4237
      %v4371 = vpop.f32.mrb[0].mxu0
      %v4372 = vadd.f32 0.0, %v4371
      %v4373 = vpop.f32.mrb[0].mxu0
      %v4374 = vpop.f32.mrb[0].mxu0
      %v4375 = vadd.f32 0.0, %v4374
      %v4376 = vpop.f32.mrb[0].mxu0
      %4377 = vmatprep.mubr.bf16.mxu0 0
      %4378 = vmatmul.mubr.bf16.gmra.mrb[0].mxu0 %v4240
      %v4379 = vpop.f32.mrb[0].mxu0
      %v4380 = vadd.f32 0.0, %v4379
      %v4381 = vpop.f32.mrb[0].mxu0
      %v4382 = vpop.f32.mrb[0].mxu0
      %v4383 = vadd.f32 0.0, %v4382
      %v4384 = vpop.f32.mrb[0].mxu0
      %4385 = vmatprep.mubr.bf16.mxu0 0
      %4386 = vmatmul.mubr.bf16.gmra.mrb[0].mxu0 %v4243
      %v4387 = vpop.f32.mrb[0].mxu0
      %v4388 = vadd.f32 0.0, %v4387
      %v4389 = vpop.f32.mrb[0].mxu0
      %v4390 = vpop.f32.mrb[0].mxu0
      %v4391 = vadd.f32 0.0, %v4390
      %v4392 = vpop.f32.mrb[0].mxu0
      %4393 = vmatprep.mubr.bf16.mxu0 0
      %4394 = vmatmul.mubr.bf16.gmra.mrb[0].mxu0 %v4246
      %v4395 = vpop.f32.mrb[0].mxu0
      %v4396 = vadd.f32 0.0, %v4395
      %v4397 = vpop.f32.mrb[0].mxu0
      %v4398 = vpop.f32.mrb[0].mxu0
      %v4399 = vadd.f32 0.0, %v4398
      %v4400 = vpop.f32.mrb[0].mxu0
      %4401 = vmatprep.mubr.bf16.mxu0 0
      %4402 = vmatmul.mubr.bf16.gmra.mrb[0].mxu0 %v4249
      %v4403 = vpop.f32.mrb[0].mxu0
      %v4404 = vadd.f32 0.0, %v4403
      %v4405 = vpop.f32.mrb[0].mxu0
      %v4406 = vpop.f32.mrb[0].mxu0
      %v4407 = vadd.f32 0.0, %v4406
      %v4408 = vpop.f32.mrb[0].mxu0
      %4409 = vmatprep.mubr.bf16.mxu0 0
      %4410 = vmatmul.mubr.bf16.gmra.mrb[0].mxu0 %v4252
      %v4411 = vpop.f32.mrb[0].mxu0
      %v4412 = vadd.f32 0.0, %v4411
      %v4413 = vpop.f32.mrb[0].mxu0
      %v4414 = vpop.f32.mrb[0].mxu0
      %v4415 = vadd.f32 0.0, %v4414
      %v4416 = vpop.f32.mrb[0].mxu0
      %4417 = vdwg.mxu0
      %v4418 = vadd.f32 %v4092, %v4292
      %v4419 = vadd.f32 %v4093, %v4295
      %v4420 = vadd.f32 %v4094, %v4300
      %v4421 = vadd.f32 %v4095, %v4303
      %v4422 = vadd.f32 %v4096, %v4308
      %v4423 = vadd.f32 %v4097, %v4311
      %v4424 = vadd.f32 %v4098, %v4316
      %v4425 = vadd.f32 %v4099, %v4319
      %v4426 = vadd.f32 %v4100, %v4324
      %v4427 = vadd.f32 %v4101, %v4327
      %v4428 = vadd.f32 %v4102, %v4332
      %v4429 = vadd.f32 %v4103, %v4335
      %v4430 = vadd.f32 %v4104, %v4340
      %v4431 = vadd.f32 %v4105, %v4343
      %v4432 = vadd.f32 %v4106, %v4348
      %v4433 = vadd.f32 %v4107, %v4351
      %v4434 = vadd.f32 %v4108, %v4356
      %v4435 = vadd.f32 %v4109, %v4359
      %v4436 = vadd.f32 %v4110, %v4364
      %v4437 = vadd.f32 %v4111, %v4367
      %v4438 = vadd.f32 %v4112, %v4372
      %v4439 = vadd.f32 %v4113, %v4375
      %v4440 = vadd.f32 %v4114, %v4380
      %v4441 = vadd.f32 %v4115, %v4383
      %v4442 = vadd.f32 %v4116, %v4388
      %v4443 = vadd.f32 %v4117, %v4391
      %v4444 = vadd.f32 %v4118, %v4396
      %v4445 = vadd.f32 %v4119, %v4399
      %v4446 = vadd.f32 %v4120, %v4404
      %v4447 = vadd.f32 %v4121, %v4407
      %v4448 = vadd.f32 %v4122, %v4412
      %v4449 = vadd.f32 %v4123, %v4415
      %v4450 = vld [vmem:[#allocation2 + $0x10] sm:$0xf]
      %v4451 = vld [vmem:[#allocation2 + $0x14] sm:$0xf]
      %v4452 = vld [vmem:[#allocation2 + $0x18] sm:$0xf]
      %v4453 = vld [vmem:[#allocation2 + $0x1c] sm:$0xf]
      %v4454 = vld [vmem:[#allocation2 + $0x20] sm:$0xf]
      %v4455 = vld [vmem:[#allocation2 + $0x24] sm:$0xf]
      %v4456 = vld [vmem:[#allocation2 + $0x28] sm:$0xf]
      %v4457 = vld [vmem:[#allocation2 + $0x2c] sm:$0xf]
      %v4458 = vld [vmem:[#allocation2 + $0x30] sm:$0xf]
      %v4459 = vld [vmem:[#allocation2 + $0x34] sm:$0xf]
      %v4460 = vld [vmem:[#allocation2 + $0x38] sm:$0xf]
      %v4461 = vld [vmem:[#allocation2 + $0x3c] sm:$0xf]
      %v4462 = vld [vmem:[#allocation2 + $0x40] sm:$0xf]
      %v4463 = vld [vmem:[#allocation2 + $0x44] sm:$0xf]
      %v4464 = vld [vmem:[#allocation2 + $0x48] sm:$0xf]
      %v4465 = vld [vmem:[#allocation2 + $0x4c] sm:$0xf]
      %v4466 = vld [vmem:[#allocation2 + $0x50] sm:$0xf]
      %v4467 = vld [vmem:[#allocation2 + $0x54] sm:$0xf]
      %v4468 = vld [vmem:[#allocation2 + $0x58] sm:$0xf]
      %v4469 = vld [vmem:[#allocation2 + $0x5c] sm:$0xf]
      %v4470 = vld [vmem:[#allocation2 + $0x60] sm:$0xf]
      %v4471 = vld [vmem:[#allocation2 + $0x64] sm:$0xf]
      %v4472 = vld [vmem:[#allocation2 + $0x68] sm:$0xf]
      %v4473 = vld [vmem:[#allocation2 + $0x6c] sm:$0xf]
      %v4474 = vld [vmem:[#allocation2 + $0x70] sm:$0xf]
      %v4475 = vld [vmem:[#allocation2 + $0x74] sm:$0xf]
      %v4476 = vld [vmem:[#allocation2 + $0x78] sm:$0xf]
      %v4477 = vld [vmem:[#allocation2 + $0x7c] sm:$0xf]
      %v4478 = vld [vmem:[#allocation2 + $0x80] sm:$0xf]
      %v4479 = vld [vmem:[#allocation2 + $0x84] sm:$0xf]
      %v4480 = vld [vmem:[#allocation2 + $0x88] sm:$0xf]
      %v4481 = vld [vmem:[#allocation2 + $0x8c] sm:$0xf]
      %v4482 = vld [vmem:[#allocation2 + $0x90] sm:$0x1]
      %v4483 = vsel %vm3049, %v4450, 0
      %v4484 = vsel %vm3050, %v4451, 0
      %v4485 = vsel %vm3051, %v4452, 0
      %v4486 = vsel %vm3052, %v4453, 0
      %v4487 = vsel %vm3053, %v4454, 0
      %v4488 = vsel %vm3054, %v4455, 0
      %v4489 = vsel %vm3055, %v4456, 0
      %v4490 = vsel %vm3056, %v4457, 0
      %v4491 = vsel %vm3057, %v4458, 0
      %v4492 = vsel %vm3058, %v4459, 0
      %v4493 = vsel %vm3059, %v4460, 0
      %v4494 = vsel %vm3060, %v4461, 0
      %v4495 = vsel %vm3061, %v4462, 0
      %v4496 = vsel %vm3062, %v4463, 0
      %v4497 = vsel %vm3063, %v4464, 0
      %v4498 = vsel %vm3064, %v4465, 0
      %v4499 = vsel %vm3065, %v4466, 0
      %v4500 = vsel %vm3066, %v4467, 0
      %v4501 = vsel %vm3067, %v4468, 0
      %v4502 = vsel %vm3068, %v4469, 0
      %v4503 = vsel %vm3069, %v4470, 0
      %v4504 = vsel %vm3070, %v4471, 0
      %v4505 = vsel %vm3071, %v4472, 0
      %v4506 = vsel %vm3072, %v4473, 0
      %v4507 = vsel %vm3073, %v4474, 0
      %v4508 = vsel %vm3074, %v4475, 0
      %v4509 = vsel %vm3075, %v4476, 0
      %v4510 = vsel %vm3076, %v4477, 0
      %v4511 = vsel %vm3077, %v4478, 0
      %v4512 = vsel %vm3078, %v4479, 0
      %v4513 = vsel %vm3079, %v4480, 0
      %v4514 = vsel %vm3080, %v4481, 0
      %v4515 = vsel %vm3081, %v4482, 0
      %s4516 = scalar_lea.vmem %s3, 10
      %v4517 = vld [vmem:[%s4516] sm:$0x3]
      %v4551 = vunpack.c.l.b16 %v4483
      %v4552 = vunpack.c.l.b16 %v4484
      %v4553 = vunpack.c.l.b16 %v4485
      %v4554 = vunpack.c.l.b16 %v4486
      %v4555 = vunpack.c.l.b16 %v4487
      %v4556 = vunpack.c.l.b16 %v4488
      %v4557 = vunpack.c.l.b16 %v4489
      %v4558 = vunpack.c.l.b16 %v4490
      %v4559 = vunpack.c.l.b16 %v4491
      %v4560 = vunpack.c.l.b16 %v4492
      %v4561 = vunpack.c.l.b16 %v4493
      %v4562 = vunpack.c.l.b16 %v4494
      %v4563 = vunpack.c.l.b16 %v4495
      %v4564 = vunpack.c.l.b16 %v4496
      %v4565 = vunpack.c.l.b16 %v4497
      %v4566 = vunpack.c.l.b16 %v4498
      %v4567 = vunpack.c.l.b16 %v4499
      %v4568 = vunpack.c.l.b16 %v4500
      %v4569 = vunpack.c.l.b16 %v4501
      %v4570 = vunpack.c.l.b16 %v4502
      %v4571 = vunpack.c.l.b16 %v4503
      %v4572 = vunpack.c.l.b16 %v4504
      %v4573 = vunpack.c.l.b16 %v4505
      %v4574 = vunpack.c.l.b16 %v4506
      %v4575 = vunpack.c.l.b16 %v4507
      %v4576 = vunpack.c.l.b16 %v4508
      %v4577 = vunpack.c.l.b16 %v4509
      %v4578 = vunpack.c.l.b16 %v4510
      %v4579 = vunpack.c.l.b16 %v4511
      %v4580 = vunpack.c.l.b16 %v4512
      %v4581 = vunpack.c.l.b16 %v4513
      %v4582 = vunpack.c.l.b16 %v4514
      %v4583 = vunpack.c.l.b16 %v4515
      %v4584 = vpack.c.b16 %v4552, %v4551
      %v4585 = vpack.c.b16 %v4554, %v4553
      %v4586 = vpack.c.b16 %v4556, %v4555
      %v4587 = vpack.c.b16 %v4558, %v4557
      %v4588 = vpack.c.b16 %v4560, %v4559
      %v4589 = vpack.c.b16 %v4562, %v4561
      %v4590 = vpack.c.b16 %v4564, %v4563
      %v4591 = vpack.c.b16 %v4566, %v4565
      %v4592 = vpack.c.b16 %v4568, %v4567
      %v4593 = vpack.c.b16 %v4570, %v4569
      %v4594 = vpack.c.b16 %v4572, %v4571
      %v4595 = vpack.c.b16 %v4574, %v4573
      %v4596 = vpack.c.b16 %v4576, %v4575
      %v4597 = vpack.c.b16 %v4578, %v4577
      %v4598 = vpack.c.b16 %v4580, %v4579
      %v4599 = vpack.c.b16 %v4582, %v4581
      %v4600 = vpack.c.b16 %v4583, %v4583
      %v4602 = vshrl.u32 %v4584, 16
      %v4604 = vshll.u32 %v4584, 16
      %v4606 = vrot.slane %v4604, 1
      %v4607 = vor.u32 %v4602, %v4606
      %v4609 = vshll.u32 %v4585, 16
      %v4611 = vrot.slane %v4609, 1
      %v4612 = vsel %vm3200, %v4607, %v4611
      %v4613 = vshrl.u32 %v4585, 16
      %v4615 = vor.u32 %v4613, %v4611
      %v4617 = vshll.u32 %v4586, 16
      %v4619 = vrot.slane %v4617, 1
      %v4620 = vsel %vm3200, %v4615, %v4619
      %v4621 = vshrl.u32 %v4586, 16
      %v4623 = vor.u32 %v4621, %v4619
      %v4625 = vshll.u32 %v4587, 16
      %v4627 = vrot.slane %v4625, 1
      %v4628 = vsel %vm3200, %v4623, %v4627
      %v4629 = vshrl.u32 %v4587, 16
      %v4631 = vor.u32 %v4629, %v4627
      %v4633 = vshll.u32 %v4588, 16
      %v4635 = vrot.slane %v4633, 1
      %v4636 = vsel %vm3200, %v4631, %v4635
      %v4637 = vshrl.u32 %v4588, 16
      %v4639 = vor.u32 %v4637, %v4635
      %v4641 = vshll.u32 %v4589, 16
      %v4643 = vrot.slane %v4641, 1
      %v4644 = vsel %vm3200, %v4639, %v4643
      %v4645 = vshrl.u32 %v4589, 16
      %v4647 = vor.u32 %v4645, %v4643
      %v4649 = vshll.u32 %v4590, 16
      %v4651 = vrot.slane %v4649, 1
      %v4652 = vsel %vm3200, %v4647, %v4651
      %v4653 = vshrl.u32 %v4590, 16
      %v4655 = vor.u32 %v4653, %v4651
      %v4657 = vshll.u32 %v4591, 16
      %v4659 = vrot.slane %v4657, 1
      %v4660 = vsel %vm3200, %v4655, %v4659
      %v4661 = vshrl.u32 %v4591, 16
      %v4663 = vor.u32 %v4661, %v4659
      %v4665 = vshll.u32 %v4592, 16
      %v4667 = vrot.slane %v4665, 1
      %v4668 = vsel %vm3200, %v4663, %v4667
      %v4669 = vshrl.u32 %v4592, 16
      %v4671 = vor.u32 %v4669, %v4667
      %v4673 = vshll.u32 %v4593, 16
      %v4675 = vrot.slane %v4673, 1
      %v4676 = vsel %vm3200, %v4671, %v4675
      %v4677 = vshrl.u32 %v4593, 16
      %v4679 = vor.u32 %v4677, %v4675
      %v4681 = vshll.u32 %v4594, 16
      %v4683 = vrot.slane %v4681, 1
      %v4684 = vsel %vm3200, %v4679, %v4683
      %v4685 = vshrl.u32 %v4594, 16
      %v4687 = vor.u32 %v4685, %v4683
      %v4689 = vshll.u32 %v4595, 16
      %v4691 = vrot.slane %v4689, 1
      %v4692 = vsel %vm3200, %v4687, %v4691
      %v4693 = vshrl.u32 %v4595, 16
      %v4695 = vor.u32 %v4693, %v4691
      %v4697 = vshll.u32 %v4596, 16
      %v4699 = vrot.slane %v4697, 1
      %v4700 = vsel %vm3200, %v4695, %v4699
      %v4701 = vshrl.u32 %v4596, 16
      %v4703 = vor.u32 %v4701, %v4699
      %v4705 = vshll.u32 %v4597, 16
      %v4707 = vrot.slane %v4705, 1
      %v4708 = vsel %vm3200, %v4703, %v4707
      %v4709 = vshrl.u32 %v4597, 16
      %v4711 = vor.u32 %v4709, %v4707
      %v4713 = vshll.u32 %v4598, 16
      %v4715 = vrot.slane %v4713, 1
      %v4716 = vsel %vm3200, %v4711, %v4715
      %v4717 = vshrl.u32 %v4598, 16
      %v4719 = vor.u32 %v4717, %v4715
      %v4721 = vshll.u32 %v4599, 16
      %v4723 = vrot.slane %v4721, 1
      %v4724 = vsel %vm3200, %v4719, %v4723
      %v4725 = vshrl.u32 %v4599, 16
      %v4727 = vor.u32 %v4725, %v4723
      %v4729 = vshll.u32 %v4600, 16
      %v4731 = vrot.slane %v4729, 1
      %v4732 = vsel %vm3200, %v4727, %v4731
      %v4734 = vsel %vm1937, %v4612, 0
      %v4737 = vsel %vm1937, %v4620, 0
      %v4740 = vsel %vm1937, %v4628, 0
      %v4743 = vsel %vm1937, %v4636, 0
      %v4746 = vsel %vm1937, %v4644, 0
      %v4749 = vsel %vm1937, %v4652, 0
      %v4752 = vsel %vm1937, %v4660, 0
      %v4755 = vsel %vm1937, %v4668, 0
      %v4758 = vsel %vm1937, %v4676, 0
      %v4761 = vsel %vm1937, %v4684, 0
      %v4764 = vsel %vm1937, %v4692, 0
      %v4767 = vsel %vm1937, %v4700, 0
      %v4770 = vsel %vm1937, %v4708, 0
      %v4773 = vsel %vm1937, %v4716, 0
      %v4776 = vsel %vm1937, %v4724, 0
      %v4779 = vsel %vm1937, %v4732, 0
      %v4782 = vsel %vm1986, %v4517, 0
      %4784 = vmatprep.subr.bf16.mxu0 0
      %4785 = vmatpush1.bf16.msra.mxu0 %v4782
      %4786 = vmatprep.subr.bf16.mxu0 0
      %4787 = vmatpush1.bf16.msra.mxu0 0
      %4788 = vmatprep.subr.bf16.mxu0 0
      %4789 = vmatpush1.bf16.msra.mxu0 0
      %4790 = vmatprep.subr.bf16.mxu0 0
      %4791 = vmatpush1.bf16.msra.mxu0 0
      %4792 = vmatprep.subr.bf16.mxu0 0
      %4793 = vmatpush1.bf16.msra.mxu0 0
      %4794 = vmatprep.subr.bf16.mxu0 0
      %4795 = vmatpush1.bf16.msra.mxu0 0
      %4796 = vmatprep.subr.bf16.mxu0 0
      %4797 = vmatpush1.bf16.msra.mxu0 0
      %4798 = vmatprep.subr.bf16.mxu0 0
      %4799 = vmatpush1.bf16.msra.mxu0 0
      %4800 = vmatprep.subr.bf16.mxu0 0
      %4801 = vmatpush1.bf16.msra.mxu0 0
      %4802 = vmatprep.subr.bf16.mxu0 0
      %4803 = vmatpush1.bf16.msra.mxu0 0
      %4804 = vmatprep.subr.bf16.mxu0 0
      %4805 = vmatpush1.bf16.msra.mxu0 0
      %4806 = vmatprep.subr.bf16.mxu0 0
      %4807 = vmatpush1.bf16.msra.mxu0 0
      %4808 = vmatprep.subr.bf16.mxu0 0
      %4809 = vmatpush1.bf16.msra.mxu0 0
      %4810 = vmatprep.subr.bf16.mxu0 0
      %4811 = vmatpush1.bf16.msra.mxu0 0
      %4812 = vmatprep.subr.bf16.mxu0 0
      %4813 = vmatpush1.bf16.msra.mxu0 0
      %4814 = vmatprep.subr.bf16.mxu0 0
      %4815 = vmatpush1.bf16.msra.mxu0 0
      %4816 = vmatprep.mubr.bf16.mxu0 0
      %4817 = vmatmul.mubr.bf16.gmra.mrb[0].mxu0 %v4734
      %v4818 = vpop.f32.mrb[0].mxu0
      %v4819 = vadd.f32 0.0, %v4818
      %v4820 = vpop.f32.mrb[0].mxu0
      %v4821 = vpop.f32.mrb[0].mxu0
      %v4822 = vadd.f32 0.0, %v4821
      %v4823 = vpop.f32.mrb[0].mxu0
      %4824 = vmatprep.mubr.bf16.mxu0 0
      %4825 = vmatmul.mubr.bf16.gmra.mrb[0].mxu0 %v4737
      %v4826 = vpop.f32.mrb[0].mxu0
      %v4827 = vadd.f32 0.0, %v4826
      %v4828 = vpop.f32.mrb[0].mxu0
      %v4829 = vpop.f32.mrb[0].mxu0
      %v4830 = vadd.f32 0.0, %v4829
      %v4831 = vpop.f32.mrb[0].mxu0
      %4832 = vmatprep.mubr.bf16.mxu0 0
      %4833 = vmatmul.mubr.bf16.gmra.mrb[0].mxu0 %v4740
      %v4834 = vpop.f32.mrb[0].mxu0
      %v4835 = vadd.f32 0.0, %v4834
      %v4836 = vpop.f32.mrb[0].mxu0
      %v4837 = vpop.f32.mrb[0].mxu0
      %v4838 = vadd.f32 0.0, %v4837
      %v4839 = vpop.f32.mrb[0].mxu0
      %4840 = vmatprep.mubr.bf16.mxu0 0
      %4841 = vmatmul.mubr.bf16.gmra.mrb[0].mxu0 %v4743
      %v4842 = vpop.f32.mrb[0].mxu0
      %v4843 = vadd.f32 0.0, %v4842
      %v4844 = vpop.f32.mrb[0].mxu0
      %v4845 = vpop.f32.mrb[0].mxu0
      %v4846 = vadd.f32 0.0, %v4845
      %v4847 = vpop.f32.mrb[0].mxu0
      %4848 = vmatprep.mubr.bf16.mxu0 0
      %4849 = vmatmul.mubr.bf16.gmra.mrb[0].mxu0 %v4746
      %v4850 = vpop.f32.mrb[0].mxu0
      %v4851 = vadd.f32 0.0, %v4850
      %v4852 = vpop.f32.mrb[0].mxu0
      %v4853 = vpop.f32.mrb[0].mxu0
      %v4854 = vadd.f32 0.0, %v4853
      %v4855 = vpop.f32.mrb[0].mxu0
      %4856 = vmatprep.mubr.bf16.mxu0 0
      %4857 = vmatmul.mubr.bf16.gmra.mrb[0].mxu0 %v4749
      %v4858 = vpop.f32.mrb[0].mxu0
      %v4859 = vadd.f32 0.0, %v4858
      %v4860 = vpop.f32.mrb[0].mxu0
      %v4861 = vpop.f32.mrb[0].mxu0
      %v4862 = vadd.f32 0.0, %v4861
      %v4863 = vpop.f32.mrb[0].mxu0
      %4864 = vmatprep.mubr.bf16.mxu0 0
      %4865 = vmatmul.mubr.bf16.gmra.mrb[0].mxu0 %v4752
      %v4866 = vpop.f32.mrb[0].mxu0
      %v4867 = vadd.f32 0.0, %v4866
      %v4868 = vpop.f32.mrb[0].mxu0
      %v4869 = vpop.f32.mrb[0].mxu0
      %v4870 = vadd.f32 0.0, %v4869
      %v4871 = vpop.f32.mrb[0].mxu0
      %4872 = vmatprep.mubr.bf16.mxu0 0
      %4873 = vmatmul.mubr.bf16.gmra.mrb[0].mxu0 %v4755
      %v4874 = vpop.f32.mrb[0].mxu0
      %v4875 = vadd.f32 0.0, %v4874
      %v4876 = vpop.f32.mrb[0].mxu0
      %v4877 = vpop.f32.mrb[0].mxu0
      %v4878 = vadd.f32 0.0, %v4877
      %v4879 = vpop.f32.mrb[0].mxu0
      %4880 = vmatprep.mubr.bf16.mxu0 0
      %4881 = vmatmul.mubr.bf16.gmra.mrb[0].mxu0 %v4758
      %v4882 = vpop.f32.mrb[0].mxu0
      %v4883 = vadd.f32 0.0, %v4882
      %v4884 = vpop.f32.mrb[0].mxu0
      %v4885 = vpop.f32.mrb[0].mxu0
      %v4886 = vadd.f32 0.0, %v4885
      %v4887 = vpop.f32.mrb[0].mxu0
      %4888 = vmatprep.mubr.bf16.mxu0 0
      %4889 = vmatmul.mubr.bf16.gmra.mrb[0].mxu0 %v4761
      %v4890 = vpop.f32.mrb[0].mxu0
      %v4891 = vadd.f32 0.0, %v4890
      %v4892 = vpop.f32.mrb[0].mxu0
      %v4893 = vpop.f32.mrb[0].mxu0
      %v4894 = vadd.f32 0.0, %v4893
      %v4895 = vpop.f32.mrb[0].mxu0
      %4896 = vmatprep.mubr.bf16.mxu0 0
      %4897 = vmatmul.mubr.bf16.gmra.mrb[0].mxu0 %v4764
      %v4898 = vpop.f32.mrb[0].mxu0
      %v4899 = vadd.f32 0.0, %v4898
      %v4900 = vpop.f32.mrb[0].mxu0
      %v4901 = vpop.f32.mrb[0].mxu0
      %v4902 = vadd.f32 0.0, %v4901
      %v4903 = vpop.f32.mrb[0].mxu0
      %4904 = vmatprep.mubr.bf16.mxu0 0
      %4905 = vmatmul.mubr.bf16.gmra.mrb[0].mxu0 %v4767
      %v4906 = vpop.f32.mrb[0].mxu0
      %v4907 = vadd.f32 0.0, %v4906
      %v4908 = vpop.f32.mrb[0].mxu0
      %v4909 = vpop.f32.mrb[0].mxu0
      %v4910 = vadd.f32 0.0, %v4909
      %v4911 = vpop.f32.mrb[0].mxu0
      %4912 = vmatprep.mubr.bf16.mxu0 0
      %4913 = vmatmul.mubr.bf16.gmra.mrb[0].mxu0 %v4770
      %v4914 = vpop.f32.mrb[0].mxu0
      %v4915 = vadd.f32 0.0, %v4914
      %v4916 = vpop.f32.mrb[0].mxu0
      %v4917 = vpop.f32.mrb[0].mxu0
      %v4918 = vadd.f32 0.0, %v4917
      %v4919 = vpop.f32.mrb[0].mxu0
      %4920 = vmatprep.mubr.bf16.mxu0 0
      %4921 = vmatmul.mubr.bf16.gmra.mrb[0].mxu0 %v4773
      %v4922 = vpop.f32.mrb[0].mxu0
      %v4923 = vadd.f32 0.0, %v4922
      %v4924 = vpop.f32.mrb[0].mxu0
      %v4925 = vpop.f32.mrb[0].mxu0
      %v4926 = vadd.f32 0.0, %v4925
      %v4927 = vpop.f32.mrb[0].mxu0
      %4928 = vmatprep.mubr.bf16.mxu0 0
      %4929 = vmatmul.mubr.bf16.gmra.mrb[0].mxu0 %v4776
      %v4930 = vpop.f32.mrb[0].mxu0
      %v4931 = vadd.f32 0.0, %v4930
      %v4932 = vpop.f32.mrb[0].mxu0
      %v4933 = vpop.f32.mrb[0].mxu0
      %v4934 = vadd.f32 0.0, %v4933
      %v4935 = vpop.f32.mrb[0].mxu0
      %4936 = vmatprep.mubr.bf16.mxu0 0
      %4937 = vmatmul.mubr.bf16.gmra.mrb[0].mxu0 %v4779
      %v4938 = vpop.f32.mrb[0].mxu0
      %v4939 = vadd.f32 0.0, %v4938
      %v4940 = vpop.f32.mrb[0].mxu0
      %v4941 = vpop.f32.mrb[0].mxu0
      %v4942 = vadd.f32 0.0, %v4941
      %v4943 = vpop.f32.mrb[0].mxu0
      %4944 = vdwg.mxu0
      %v4945 = vadd.f32 %v4418, %v4819
      %v4946 = vadd.f32 %v4419, %v4822
      %v4947 = vadd.f32 %v4420, %v4827
      %v4948 = vadd.f32 %v4421, %v4830
      %v4949 = vadd.f32 %v4422, %v4835
      %v4950 = vadd.f32 %v4423, %v4838
      %v4951 = vadd.f32 %v4424, %v4843
      %v4952 = vadd.f32 %v4425, %v4846
      %v4953 = vadd.f32 %v4426, %v4851
      %v4954 = vadd.f32 %v4427, %v4854
      %v4955 = vadd.f32 %v4428, %v4859
      %v4956 = vadd.f32 %v4429, %v4862
      %v4957 = vadd.f32 %v4430, %v4867
      %v4958 = vadd.f32 %v4431, %v4870
      %v4959 = vadd.f32 %v4432, %v4875
      %v4960 = vadd.f32 %v4433, %v4878
      %v4961 = vadd.f32 %v4434, %v4883
      %v4962 = vadd.f32 %v4435, %v4886
      %v4963 = vadd.f32 %v4436, %v4891
      %v4964 = vadd.f32 %v4437, %v4894
      %v4965 = vadd.f32 %v4438, %v4899
      %v4966 = vadd.f32 %v4439, %v4902
      %v4967 = vadd.f32 %v4440, %v4907
      %v4968 = vadd.f32 %v4441, %v4910
      %v4969 = vadd.f32 %v4442, %v4915
      %v4970 = vadd.f32 %v4443, %v4918
      %v4971 = vadd.f32 %v4444, %v4923
      %v4972 = vadd.f32 %v4445, %v4926
      %v4973 = vadd.f32 %v4446, %v4931
      %v4974 = vadd.f32 %v4447, %v4934
      %v4975 = vadd.f32 %v4448, %v4939
      %v4976 = vadd.f32 %v4449, %v4942
      %v4977 = vld [vmem:[#allocation2 + $0x14] sm:$0x8]
      %v4978 = vld [vmem:[#allocation2 + $0x18] sm:$0xf]
      %v4979 = vld [vmem:[#allocation2 + $0x1c] sm:$0xf]
      %v4980 = vld [vmem:[#allocation2 + $0x20] sm:$0xf]
      %v4981 = vld [vmem:[#allocation2 + $0x24] sm:$0xf]
      %v4982 = vld [vmem:[#allocation2 + $0x28] sm:$0xf]
      %v4983 = vld [vmem:[#allocation2 + $0x2c] sm:$0xf]
      %v4984 = vld [vmem:[#allocation2 + $0x30] sm:$0xf]
      %v4985 = vld [vmem:[#allocation2 + $0x34] sm:$0xf]
      %v4986 = vld [vmem:[#allocation2 + $0x38] sm:$0xf]
      %v4987 = vld [vmem:[#allocation2 + $0x3c] sm:$0xf]
      %v4988 = vld [vmem:[#allocation2 + $0x40] sm:$0xf]
      %v4989 = vld [vmem:[#allocation2 + $0x44] sm:$0xf]
      %v4990 = vld [vmem:[#allocation2 + $0x48] sm:$0xf]
      %v4991 = vld [vmem:[#allocation2 + $0x4c] sm:$0xf]
      %v4992 = vld [vmem:[#allocation2 + $0x50] sm:$0xf]
      %v4993 = vld [vmem:[#allocation2 + $0x54] sm:$0xf]
      %v4994 = vld [vmem:[#allocation2 + $0x58] sm:$0xf]
      %v4995 = vld [vmem:[#allocation2 + $0x5c] sm:$0xf]
      %v4996 = vld [vmem:[#allocation2 + $0x60] sm:$0xf]
      %v4997 = vld [vmem:[#allocation2 + $0x64] sm:$0xf]
      %v4998 = vld [vmem:[#allocation2 + $0x68] sm:$0xf]
      %v4999 = vld [vmem:[#allocation2 + $0x6c] sm:$0xf]
      %v5000 = vld [vmem:[#allocation2 + $0x70] sm:$0xf]
      %v5001 = vld [vmem:[#allocation2 + $0x74] sm:$0xf]
      %v5002 = vld [vmem:[#allocation2 + $0x78] sm:$0xf]
      %v5003 = vld [vmem:[#allocation2 + $0x7c] sm:$0xf]
      %v5004 = vld [vmem:[#allocation2 + $0x80] sm:$0xf]
      %v5005 = vld [vmem:[#allocation2 + $0x84] sm:$0xf]
      %v5006 = vld [vmem:[#allocation2 + $0x88] sm:$0xf]
      %v5007 = vld [vmem:[#allocation2 + $0x8c] sm:$0xf]
      %v5008 = vld [vmem:[#allocation2 + $0x90] sm:$0xf]
      %v5009 = vld [vmem:[#allocation2 + $0x94] sm:$0xf]
      %v5010 = vsel %vm1788, %v4977, 0
      %v5011 = vsel %vm1789, %v4978, 0
      %v5012 = vsel %vm1790, %v4979, 0
      %v5013 = vsel %vm1791, %v4980, 0
      %v5014 = vsel %vm1792, %v4981, 0
      %v5015 = vsel %vm1793, %v4982, 0
      %v5016 = vsel %vm1794, %v4983, 0
      %v5017 = vsel %vm1795, %v4984, 0
      %v5018 = vsel %vm1796, %v4985, 0
      %v5019 = vsel %vm1797, %v4986, 0
      %v5020 = vsel %vm1798, %v4987, 0
      %v5021 = vsel %vm1799, %v4988, 0
      %v5022 = vsel %vm1800, %v4989, 0
      %v5023 = vsel %vm1801, %v4990, 0
      %v5024 = vsel %vm1802, %v4991, 0
      %v5025 = vsel %vm1803, %v4992, 0
      %v5026 = vsel %vm1804, %v4993, 0
      %v5027 = vsel %vm1805, %v4994, 0
      %v5028 = vsel %vm1806, %v4995, 0
      %v5029 = vsel %vm1807, %v4996, 0
      %v5030 = vsel %vm1808, %v4997, 0
      %v5031 = vsel %vm1809, %v4998, 0
      %v5032 = vsel %vm1810, %v4999, 0
      %v5033 = vsel %vm1811, %v5000, 0
      %v5034 = vsel %vm1812, %v5001, 0
      %v5035 = vsel %vm1813, %v5002, 0
      %v5036 = vsel %vm1814, %v5003, 0
      %v5037 = vsel %vm1815, %v5004, 0
      %v5038 = vsel %vm1816, %v5005, 0
      %v5039 = vsel %vm1817, %v5006, 0
      %v5040 = vsel %vm1818, %v5007, 0
      %v5041 = vsel %vm1819, %v5008, 0
      %v5042 = vsel %vm1820, %v5009, 0
      %s5043 = scalar_lea.vmem %s3, 12
      %v5044 = vld [vmem:[%s5043] sm:$0x3]
      %v5078 = vunpack.c.l.b16 %v5010
      %v5079 = vunpack.c.l.b16 %v5011
      %v5080 = vunpack.c.l.b16 %v5012
      %v5081 = vunpack.c.l.b16 %v5013
      %v5082 = vunpack.c.l.b16 %v5014
      %v5083 = vunpack.c.l.b16 %v5015
      %v5084 = vunpack.c.l.b16 %v5016
      %v5085 = vunpack.c.l.b16 %v5017
      %v5086 = vunpack.c.l.b16 %v5018
      %v5087 = vunpack.c.l.b16 %v5019
      %v5088 = vunpack.c.l.b16 %v5020
      %v5089 = vunpack.c.l.b16 %v5021
      %v5090 = vunpack.c.l.b16 %v5022
      %v5091 = vunpack.c.l.b16 %v5023
      %v5092 = vunpack.c.l.b16 %v5024
      %v5093 = vunpack.c.l.b16 %v5025
      %v5094 = vunpack.c.l.b16 %v5026
      %v5095 = vunpack.c.l.b16 %v5027
      %v5096 = vunpack.c.l.b16 %v5028
      %v5097 = vunpack.c.l.b16 %v5029
      %v5098 = vunpack.c.l.b16 %v5030
      %v5099 = vunpack.c.l.b16 %v5031
      %v5100 = vunpack.c.l.b16 %v5032
      %v5101 = vunpack.c.l.b16 %v5033
      %v5102 = vunpack.c.l.b16 %v5034
      %v5103 = vunpack.c.l.b16 %v5035
      %v5104 = vunpack.c.l.b16 %v5036
      %v5105 = vunpack.c.l.b16 %v5037
      %v5106 = vunpack.c.l.b16 %v5038
      %v5107 = vunpack.c.l.b16 %v5039
      %v5108 = vunpack.c.l.b16 %v5040
      %v5109 = vunpack.c.l.b16 %v5041
      %v5110 = vunpack.c.l.b16 %v5042
      %v5111 = vpack.c.b16 %v5079, %v5078
      %v5112 = vpack.c.b16 %v5081, %v5080
      %v5113 = vpack.c.b16 %v5083, %v5082
      %v5114 = vpack.c.b16 %v5085, %v5084
      %v5115 = vpack.c.b16 %v5087, %v5086
      %v5116 = vpack.c.b16 %v5089, %v5088
      %v5117 = vpack.c.b16 %v5091, %v5090
      %v5118 = vpack.c.b16 %v5093, %v5092
      %v5119 = vpack.c.b16 %v5095, %v5094
      %v5120 = vpack.c.b16 %v5097, %v5096
      %v5121 = vpack.c.b16 %v5099, %v5098
      %v5122 = vpack.c.b16 %v5101, %v5100
      %v5123 = vpack.c.b16 %v5103, %v5102
      %v5124 = vpack.c.b16 %v5105, %v5104
      %v5125 = vpack.c.b16 %v5107, %v5106
      %v5126 = vpack.c.b16 %v5109, %v5108
      %v5127 = vpack.c.b16 %v5110, %v5110
      %v5129 = vshrl.u32 %v5111, 16
      %v5131 = vrot.slane %v5129, 3
      %v5132 = vshll.u32 %v5111, 16
      %v5134 = vrot.slane %v5132, 4
      %v5135 = vor.u32 %v5131, %v5134
      %v5137 = vshrl.u32 %v5112, 16
      %v5139 = vrot.slane %v5137, 3
      %v5140 = vshll.u32 %v5112, 16
      %v5142 = vrot.slane %v5140, 4
      %v5143 = vor.u32 %v5139, %v5142
      %v5144 = vsel %vm2234, %v5135, %v5143
      %v5146 = vshrl.u32 %v5113, 16
      %v5148 = vrot.slane %v5146, 3
      %v5149 = vshll.u32 %v5113, 16
      %v5151 = vrot.slane %v5149, 4
      %v5152 = vor.u32 %v5148, %v5151
      %v5153 = vsel %vm2234, %v5143, %v5152
      %v5155 = vshrl.u32 %v5114, 16
      %v5157 = vrot.slane %v5155, 3
      %v5158 = vshll.u32 %v5114, 16
      %v5160 = vrot.slane %v5158, 4
      %v5161 = vor.u32 %v5157, %v5160
      %v5162 = vsel %vm2234, %v5152, %v5161
      %v5164 = vshrl.u32 %v5115, 16
      %v5166 = vrot.slane %v5164, 3
      %v5167 = vshll.u32 %v5115, 16
      %v5169 = vrot.slane %v5167, 4
      %v5170 = vor.u32 %v5166, %v5169
      %v5171 = vsel %vm2234, %v5161, %v5170
      %v5173 = vshrl.u32 %v5116, 16
      %v5175 = vrot.slane %v5173, 3
      %v5176 = vshll.u32 %v5116, 16
      %v5178 = vrot.slane %v5176, 4
      %v5179 = vor.u32 %v5175, %v5178
      %v5180 = vsel %vm2234, %v5170, %v5179
      %v5182 = vshrl.u32 %v5117, 16
      %v5184 = vrot.slane %v5182, 3
      %v5185 = vshll.u32 %v5117, 16
      %v5187 = vrot.slane %v5185, 4
      %v5188 = vor.u32 %v5184, %v5187
      %v5189 = vsel %vm2234, %v5179, %v5188
      %v5191 = vshrl.u32 %v5118, 16
      %v5193 = vrot.slane %v5191, 3
      %v5194 = vshll.u32 %v5118, 16
      %v5196 = vrot.slane %v5194, 4
      %v5197 = vor.u32 %v5193, %v5196
      %v5198 = vsel %vm2234, %v5188, %v5197
      %v5200 = vshrl.u32 %v5119, 16
      %v5202 = vrot.slane %v5200, 3
      %v5203 = vshll.u32 %v5119, 16
      %v5205 = vrot.slane %v5203, 4
      %v5206 = vor.u32 %v5202, %v5205
      %v5207 = vsel %vm2234, %v5197, %v5206
      %v5209 = vshrl.u32 %v5120, 16
      %v5211 = vrot.slane %v5209, 3
      %v5212 = vshll.u32 %v5120, 16
      %v5214 = vrot.slane %v5212, 4
      %v5215 = vor.u32 %v5211, %v5214
      %v5216 = vsel %vm2234, %v5206, %v5215
      %v5218 = vshrl.u32 %v5121, 16
      %v5220 = vrot.slane %v5218, 3
      %v5221 = vshll.u32 %v5121, 16
      %v5223 = vrot.slane %v5221, 4
      %v5224 = vor.u32 %v5220, %v5223
      %v5225 = vsel %vm2234, %v5215, %v5224
      %v5227 = vshrl.u32 %v5122, 16
      %v5229 = vrot.slane %v5227, 3
      %v5230 = vshll.u32 %v5122, 16
      %v5232 = vrot.slane %v5230, 4
      %v5233 = vor.u32 %v5229, %v5232
      %v5234 = vsel %vm2234, %v5224, %v5233
      %v5236 = vshrl.u32 %v5123, 16
      %v5238 = vrot.slane %v5236, 3
      %v5239 = vshll.u32 %v5123, 16
      %v5241 = vrot.slane %v5239, 4
      %v5242 = vor.u32 %v5238, %v5241
      %v5243 = vsel %vm2234, %v5233, %v5242
      %v5245 = vshrl.u32 %v5124, 16
      %v5247 = vrot.slane %v5245, 3
      %v5248 = vshll.u32 %v5124, 16
      %v5250 = vrot.slane %v5248, 4
      %v5251 = vor.u32 %v5247, %v5250
      %v5252 = vsel %vm2234, %v5242, %v5251
      %v5254 = vshrl.u32 %v5125, 16
      %v5256 = vrot.slane %v5254, 3
      %v5257 = vshll.u32 %v5125, 16
      %v5259 = vrot.slane %v5257, 4
      %v5260 = vor.u32 %v5256, %v5259
      %v5261 = vsel %vm2234, %v5251, %v5260
      %v5263 = vshrl.u32 %v5126, 16
      %v5265 = vrot.slane %v5263, 3
      %v5266 = vshll.u32 %v5126, 16
      %v5268 = vrot.slane %v5266, 4
      %v5269 = vor.u32 %v5265, %v5268
      %v5270 = vsel %vm2234, %v5260, %v5269
      %v5272 = vshrl.u32 %v5127, 16
      %v5274 = vrot.slane %v5272, 3
      %v5275 = vshll.u32 %v5127, 16
      %v5277 = vrot.slane %v5275, 4
      %v5278 = vor.u32 %v5274, %v5277
      %v5279 = vsel %vm2234, %v5269, %v5278
      %v5281 = vsel %vm1937, %v5144, 0
      %v5284 = vsel %vm1937, %v5153, 0
      %v5287 = vsel %vm1937, %v5162, 0
      %v5290 = vsel %vm1937, %v5171, 0
      %v5293 = vsel %vm1937, %v5180, 0
      %v5296 = vsel %vm1937, %v5189, 0
      %v5299 = vsel %vm1937, %v5198, 0
      %v5302 = vsel %vm1937, %v5207, 0
      %v5305 = vsel %vm1937, %v5216, 0
      %v5308 = vsel %vm1937, %v5225, 0
      %v5311 = vsel %vm1937, %v5234, 0
      %v5314 = vsel %vm1937, %v5243, 0
      %v5317 = vsel %vm1937, %v5252, 0
      %v5320 = vsel %vm1937, %v5261, 0
      %v5323 = vsel %vm1937, %v5270, 0
      %v5326 = vsel %vm1937, %v5279, 0
      %v5329 = vsel %vm1986, %v5044, 0
      %5331 = vmatprep.subr.bf16.mxu0 0
      %5332 = vmatpush1.bf16.msra.mxu0 %v5329
      %5333 = vmatprep.subr.bf16.mxu0 0
      %5334 = vmatpush1.bf16.msra.mxu0 0
      %5335 = vmatprep.subr.bf16.mxu0 0
      %5336 = vmatpush1.bf16.msra.mxu0 0
      %5337 = vmatprep.subr.bf16.mxu0 0
      %5338 = vmatpush1.bf16.msra.mxu0 0
      %5339 = vmatprep.subr.bf16.mxu0 0
      %5340 = vmatpush1.bf16.msra.mxu0 0
      %5341 = vmatprep.subr.bf16.mxu0 0
      %5342 = vmatpush1.bf16.msra.mxu0 0
      %5343 = vmatprep.subr.bf16.mxu0 0
      %5344 = vmatpush1.bf16.msra.mxu0 0
      %5345 = vmatprep.subr.bf16.mxu0 0
      %5346 = vmatpush1.bf16.msra.mxu0 0
      %5347 = vmatprep.subr.bf16.mxu0 0
      %5348 = vmatpush1.bf16.msra.mxu0 0
      %5349 = vmatprep.subr.bf16.mxu0 0
      %5350 = vmatpush1.bf16.msra.mxu0 0
      %5351 = vmatprep.subr.bf16.mxu0 0
      %5352 = vmatpush1.bf16.msra.mxu0 0
      %5353 = vmatprep.subr.bf16.mxu0 0
      %5354 = vmatpush1.bf16.msra.mxu0 0
      %5355 = vmatprep.subr.bf16.mxu0 0
      %5356 = vmatpush1.bf16.msra.mxu0 0
      %5357 = vmatprep.subr.bf16.mxu0 0
      %5358 = vmatpush1.bf16.msra.mxu0 0
      %5359 = vmatprep.subr.bf16.mxu0 0
      %5360 = vmatpush1.bf16.msra.mxu0 0
      %5361 = vmatprep.subr.bf16.mxu0 0
      %5362 = vmatpush1.bf16.msra.mxu0 0
      %5363 = vmatprep.mubr.bf16.mxu0 0
      %5364 = vmatmul.mubr.bf16.gmra.mrb[0].mxu0 %v5281
      %v5365 = vpop.f32.mrb[0].mxu0
      %v5366 = vadd.f32 0.0, %v5365
      %v5367 = vpop.f32.mrb[0].mxu0
      %v5368 = vpop.f32.mrb[0].mxu0
      %v5369 = vadd.f32 0.0, %v5368
      %v5370 = vpop.f32.mrb[0].mxu0
      %5371 = vmatprep.mubr.bf16.mxu0 0
      %5372 = vmatmul.mubr.bf16.gmra.mrb[0].mxu0 %v5284
      %v5373 = vpop.f32.mrb[0].mxu0
      %v5374 = vadd.f32 0.0, %v5373
      %v5375 = vpop.f32.mrb[0].mxu0
      %v5376 = vpop.f32.mrb[0].mxu0
      %v5377 = vadd.f32 0.0, %v5376
      %v5378 = vpop.f32.mrb[0].mxu0
      %5379 = vmatprep.mubr.bf16.mxu0 0
      %5380 = vmatmul.mubr.bf16.gmra.mrb[0].mxu0 %v5287
      %v5381 = vpop.f32.mrb[0].mxu0
      %v5382 = vadd.f32 0.0, %v5381
      %v5383 = vpop.f32.mrb[0].mxu0
      %v5384 = vpop.f32.mrb[0].mxu0
      %v5385 = vadd.f32 0.0, %v5384
      %v5386 = vpop.f32.mrb[0].mxu0
      %5387 = vmatprep.mubr.bf16.mxu0 0
      %5388 = vmatmul.mubr.bf16.gmra.mrb[0].mxu0 %v5290
      %v5389 = vpop.f32.mrb[0].mxu0
      %v5390 = vadd.f32 0.0, %v5389
      %v5391 = vpop.f32.mrb[0].mxu0
      %v5392 = vpop.f32.mrb[0].mxu0
      %v5393 = vadd.f32 0.0, %v5392
      %v5394 = vpop.f32.mrb[0].mxu0
      %5395 = vmatprep.mubr.bf16.mxu0 0
      %5396 = vmatmul.mubr.bf16.gmra.mrb[0].mxu0 %v5293
      %v5397 = vpop.f32.mrb[0].mxu0
      %v5398 = vadd.f32 0.0, %v5397
      %v5399 = vpop.f32.mrb[0].mxu0
      %v5400 = vpop.f32.mrb[0].mxu0
      %v5401 = vadd.f32 0.0, %v5400
      %v5402 = vpop.f32.mrb[0].mxu0
      %5403 = vmatprep.mubr.bf16.mxu0 0
      %5404 = vmatmul.mubr.bf16.gmra.mrb[0].mxu0 %v5296
      %v5405 = vpop.f32.mrb[0].mxu0
      %v5406 = vadd.f32 0.0, %v5405
      %v5407 = vpop.f32.mrb[0].mxu0
      %v5408 = vpop.f32.mrb[0].mxu0
      %v5409 = vadd.f32 0.0, %v5408
      %v5410 = vpop.f32.mrb[0].mxu0
      %5411 = vmatprep.mubr.bf16.mxu0 0
      %5412 = vmatmul.mubr.bf16.gmra.mrb[0].mxu0 %v5299
      %v5413 = vpop.f32.mrb[0].mxu0
      %v5414 = vadd.f32 0.0, %v5413
      %v5415 = vpop.f32.mrb[0].mxu0
      %v5416 = vpop.f32.mrb[0].mxu0
      %v5417 = vadd.f32 0.0, %v5416
      %v5418 = vpop.f32.mrb[0].mxu0
      %5419 = vmatprep.mubr.bf16.mxu0 0
      %5420 = vmatmul.mubr.bf16.gmra.mrb[0].mxu0 %v5302
      %v5421 = vpop.f32.mrb[0].mxu0
      %v5422 = vadd.f32 0.0, %v5421
      %v5423 = vpop.f32.mrb[0].mxu0
      %v5424 = vpop.f32.mrb[0].mxu0
      %v5425 = vadd.f32 0.0, %v5424
      %v5426 = vpop.f32.mrb[0].mxu0
      %5427 = vmatprep.mubr.bf16.mxu0 0
      %5428 = vmatmul.mubr.bf16.gmra.mrb[0].mxu0 %v5305
      %v5429 = vpop.f32.mrb[0].mxu0
      %v5430 = vadd.f32 0.0, %v5429
      %v5431 = vpop.f32.mrb[0].mxu0
      %v5432 = vpop.f32.mrb[0].mxu0
      %v5433 = vadd.f32 0.0, %v5432
      %v5434 = vpop.f32.mrb[0].mxu0
      %5435 = vmatprep.mubr.bf16.mxu0 0
      %5436 = vmatmul.mubr.bf16.gmra.mrb[0].mxu0 %v5308
      %v5437 = vpop.f32.mrb[0].mxu0
      %v5438 = vadd.f32 0.0, %v5437
      %v5439 = vpop.f32.mrb[0].mxu0
      %v5440 = vpop.f32.mrb[0].mxu0
      %v5441 = vadd.f32 0.0, %v5440
      %v5442 = vpop.f32.mrb[0].mxu0
      %5443 = vmatprep.mubr.bf16.mxu0 0
      %5444 = vmatmul.mubr.bf16.gmra.mrb[0].mxu0 %v5311
      %v5445 = vpop.f32.mrb[0].mxu0
      %v5446 = vadd.f32 0.0, %v5445
      %v5447 = vpop.f32.mrb[0].mxu0
      %v5448 = vpop.f32.mrb[0].mxu0
      %v5449 = vadd.f32 0.0, %v5448
      %v5450 = vpop.f32.mrb[0].mxu0
      %5451 = vmatprep.mubr.bf16.mxu0 0
      %5452 = vmatmul.mubr.bf16.gmra.mrb[0].mxu0 %v5314
      %v5453 = vpop.f32.mrb[0].mxu0
      %v5454 = vadd.f32 0.0, %v5453
      %v5455 = vpop.f32.mrb[0].mxu0
      %v5456 = vpop.f32.mrb[0].mxu0
      %v5457 = vadd.f32 0.0, %v5456
      %v5458 = vpop.f32.mrb[0].mxu0
      %5459 = vmatprep.mubr.bf16.mxu0 0
      %5460 = vmatmul.mubr.bf16.gmra.mrb[0].mxu0 %v5317
      %v5461 = vpop.f32.mrb[0].mxu0
      %v5462 = vadd.f32 0.0, %v5461
      %v5463 = vpop.f32.mrb[0].mxu0
      %v5464 = vpop.f32.mrb[0].mxu0
      %v5465 = vadd.f32 0.0, %v5464
      %v5466 = vpop.f32.mrb[0].mxu0
      %5467 = vmatprep.mubr.bf16.mxu0 0
      %5468 = vmatmul.mubr.bf16.gmra.mrb[0].mxu0 %v5320
      %v5469 = vpop.f32.mrb[0].mxu0
      %v5470 = vadd.f32 0.0, %v5469
      %v5471 = vpop.f32.mrb[0].mxu0
      %v5472 = vpop.f32.mrb[0].mxu0
      %v5473 = vadd.f32 0.0, %v5472
      %v5474 = vpop.f32.mrb[0].mxu0
      %5475 = vmatprep.mubr.bf16.mxu0 0
      %5476 = vmatmul.mubr.bf16.gmra.mrb[0].mxu0 %v5323
      %v5477 = vpop.f32.mrb[0].mxu0
      %v5478 = vadd.f32 0.0, %v5477
      %v5479 = vpop.f32.mrb[0].mxu0
      %v5480 = vpop.f32.mrb[0].mxu0
      %v5481 = vadd.f32 0.0, %v5480
      %v5482 = vpop.f32.mrb[0].mxu0
      %5483 = vmatprep.mubr.bf16.mxu0 0
      %5484 = vmatmul.mubr.bf16.gmra.mrb[0].mxu0 %v5326
      %v5485 = vpop.f32.mrb[0].mxu0
      %v5486 = vadd.f32 0.0, %v5485
      %v5487 = vpop.f32.mrb[0].mxu0
      %v5488 = vpop.f32.mrb[0].mxu0
      %v5489 = vadd.f32 0.0, %v5488
      %v5490 = vpop.f32.mrb[0].mxu0
      %5491 = vdwg.mxu0
      %v5492 = vadd.f32 %v4945, %v5366
      %v5493 = vadd.f32 %v4946, %v5369
      %v5494 = vadd.f32 %v4947, %v5374
      %v5495 = vadd.f32 %v4948, %v5377
      %v5496 = vadd.f32 %v4949, %v5382
      %v5497 = vadd.f32 %v4950, %v5385
      %v5498 = vadd.f32 %v4951, %v5390
      %v5499 = vadd.f32 %v4952, %v5393
      %v5500 = vadd.f32 %v4953, %v5398
      %v5501 = vadd.f32 %v4954, %v5401
      %v5502 = vadd.f32 %v4955, %v5406
      %v5503 = vadd.f32 %v4956, %v5409
      %v5504 = vadd.f32 %v4957, %v5414
      %v5505 = vadd.f32 %v4958, %v5417
      %v5506 = vadd.f32 %v4959, %v5422
      %v5507 = vadd.f32 %v4960, %v5425
      %v5508 = vadd.f32 %v4961, %v5430
      %v5509 = vadd.f32 %v4962, %v5433
      %v5510 = vadd.f32 %v4963, %v5438
      %v5511 = vadd.f32 %v4964, %v5441
      %v5512 = vadd.f32 %v4965, %v5446
      %v5513 = vadd.f32 %v4966, %v5449
      %v5514 = vadd.f32 %v4967, %v5454
      %v5515 = vadd.f32 %v4968, %v5457
      %v5516 = vadd.f32 %v4969, %v5462
      %v5517 = vadd.f32 %v4970, %v5465
      %v5518 = vadd.f32 %v4971, %v5470
      %v5519 = vadd.f32 %v4972, %v5473
      %v5520 = vadd.f32 %v4973, %v5478
      %v5521 = vadd.f32 %v4974, %v5481
      %v5522 = vadd.f32 %v4975, %v5486
      %v5523 = vadd.f32 %v4976, %v5489
      %s5524 = scalar_lea.vmem %s3, 14
      %v5525 = vld [vmem:[%s5524] sm:$0x3]
      %v5558 = vunpack.c.l.b16 %v4978
      %v5559 = vunpack.c.l.b16 %v4979
      %v5560 = vunpack.c.l.b16 %v4980
      %v5561 = vunpack.c.l.b16 %v4981
      %v5562 = vunpack.c.l.b16 %v4982
      %v5563 = vunpack.c.l.b16 %v4983
      %v5564 = vunpack.c.l.b16 %v4984
      %v5565 = vunpack.c.l.b16 %v4985
      %v5566 = vunpack.c.l.b16 %v4986
      %v5567 = vunpack.c.l.b16 %v4987
      %v5568 = vunpack.c.l.b16 %v4988
      %v5569 = vunpack.c.l.b16 %v4989
      %v5570 = vunpack.c.l.b16 %v4990
      %v5571 = vunpack.c.l.b16 %v4991
      %v5572 = vunpack.c.l.b16 %v4992
      %v5573 = vunpack.c.l.b16 %v4993
      %v5574 = vunpack.c.l.b16 %v4994
      %v5575 = vunpack.c.l.b16 %v4995
      %v5576 = vunpack.c.l.b16 %v4996
      %v5577 = vunpack.c.l.b16 %v4997
      %v5578 = vunpack.c.l.b16 %v4998
      %v5579 = vunpack.c.l.b16 %v4999
      %v5580 = vunpack.c.l.b16 %v5000
      %v5581 = vunpack.c.l.b16 %v5001
      %v5582 = vunpack.c.l.b16 %v5002
      %v5583 = vunpack.c.l.b16 %v5003
      %v5584 = vunpack.c.l.b16 %v5004
      %v5585 = vunpack.c.l.b16 %v5005
      %v5586 = vunpack.c.l.b16 %v5006
      %v5587 = vunpack.c.l.b16 %v5007
      %v5588 = vunpack.c.l.b16 %v5008
      %v5589 = vunpack.c.l.b16 %v5009
      %v5590 = vpack.c.b16 %v5559, %v5558
      %v5591 = vpack.c.b16 %v5561, %v5560
      %v5592 = vpack.c.b16 %v5563, %v5562
      %v5593 = vpack.c.b16 %v5565, %v5564
      %v5594 = vpack.c.b16 %v5567, %v5566
      %v5595 = vpack.c.b16 %v5569, %v5568
      %v5596 = vpack.c.b16 %v5571, %v5570
      %v5597 = vpack.c.b16 %v5573, %v5572
      %v5598 = vpack.c.b16 %v5575, %v5574
      %v5599 = vpack.c.b16 %v5577, %v5576
      %v5600 = vpack.c.b16 %v5579, %v5578
      %v5601 = vpack.c.b16 %v5581, %v5580
      %v5602 = vpack.c.b16 %v5583, %v5582
      %v5603 = vpack.c.b16 %v5585, %v5584
      %v5604 = vpack.c.b16 %v5587, %v5586
      %v5605 = vpack.c.b16 %v5589, %v5588
      %v5607 = vsel %vm1937, %v5590, 0
      %v5610 = vsel %vm1937, %v5591, 0
      %v5613 = vsel %vm1937, %v5592, 0
      %v5616 = vsel %vm1937, %v5593, 0
      %v5619 = vsel %vm1937, %v5594, 0
      %v5622 = vsel %vm1937, %v5595, 0
      %v5625 = vsel %vm1937, %v5596, 0
      %v5628 = vsel %vm1937, %v5597, 0
      %v5631 = vsel %vm1937, %v5598, 0
      %v5634 = vsel %vm1937, %v5599, 0
      %v5637 = vsel %vm1937, %v5600, 0
      %v5640 = vsel %vm1937, %v5601, 0
      %v5643 = vsel %vm1937, %v5602, 0
      %v5646 = vsel %vm1937, %v5603, 0
      %v5649 = vsel %vm1937, %v5604, 0
      %v5652 = vsel %vm1937, %v5605, 0
      %v5655 = vsel %vm1986, %v5525, 0
      %5657 = vmatprep.subr.bf16.mxu0 0
      %5658 = vmatpush1.bf16.msra.mxu0 %v5655
      %5659 = vmatprep.subr.bf16.mxu0 0
      %5660 = vmatpush1.bf16.msra.mxu0 0
      %5661 = vmatprep.subr.bf16.mxu0 0
      %5662 = vmatpush1.bf16.msra.mxu0 0
      %5663 = vmatprep.subr.bf16.mxu0 0
      %5664 = vmatpush1.bf16.msra.mxu0 0
      %5665 = vmatprep.subr.bf16.mxu0 0
      %5666 = vmatpush1.bf16.msra.mxu0 0
      %5667 = vmatprep.subr.bf16.mxu0 0
      %5668 = vmatpush1.bf16.msra.mxu0 0
      %5669 = vmatprep.subr.bf16.mxu0 0
      %5670 = vmatpush1.bf16.msra.mxu0 0
      %5671 = vmatprep.subr.bf16.mxu0 0
      %5672 = vmatpush1.bf16.msra.mxu0 0
      %5673 = vmatprep.subr.bf16.mxu0 0
      %5674 = vmatpush1.bf16.msra.mxu0 0
      %5675 = vmatprep.subr.bf16.mxu0 0
      %5676 = vmatpush1.bf16.msra.mxu0 0
      %5677 = vmatprep.subr.bf16.mxu0 0
      %5678 = vmatpush1.bf16.msra.mxu0 0
      %5679 = vmatprep.subr.bf16.mxu0 0
      %5680 = vmatpush1.bf16.msra.mxu0 0
      %5681 = vmatprep.subr.bf16.mxu0 0
      %5682 = vmatpush1.bf16.msra.mxu0 0
      %5683 = vmatprep.subr.bf16.mxu0 0
      %5684 = vmatpush1.bf16.msra.mxu0 0
      %5685 = vmatprep.subr.bf16.mxu0 0
      %5686 = vmatpush1.bf16.msra.mxu0 0
      %5687 = vmatprep.subr.bf16.mxu0 0
      %5688 = vmatpush1.bf16.msra.mxu0 0
      %5689 = vmatprep.mubr.bf16.mxu0 0
      %5690 = vmatmul.mubr.bf16.gmra.mrb[0].mxu0 %v5607
      %v5691 = vpop.f32.mrb[0].mxu0
      %v5692 = vadd.f32 0.0, %v5691
      %v5693 = vpop.f32.mrb[0].mxu0
      %v5694 = vpop.f32.mrb[0].mxu0
      %v5695 = vadd.f32 0.0, %v5694
      %v5696 = vpop.f32.mrb[0].mxu0
      %5697 = vmatprep.mubr.bf16.mxu0 0
      %5698 = vmatmul.mubr.bf16.gmra.mrb[0].mxu0 %v5610
      %v5699 = vpop.f32.mrb[0].mxu0
      %v5700 = vadd.f32 0.0, %v5699
      %v5701 = vpop.f32.mrb[0].mxu0
      %v5702 = vpop.f32.mrb[0].mxu0
      %v5703 = vadd.f32 0.0, %v5702
      %v5704 = vpop.f32.mrb[0].mxu0
      %5705 = vmatprep.mubr.bf16.mxu0 0
      %5706 = vmatmul.mubr.bf16.gmra.mrb[0].mxu0 %v5613
      %v5707 = vpop.f32.mrb[0].mxu0
      %v5708 = vadd.f32 0.0, %v5707
      %v5709 = vpop.f32.mrb[0].mxu0
      %v5710 = vpop.f32.mrb[0].mxu0
      %v5711 = vadd.f32 0.0, %v5710
      %v5712 = vpop.f32.mrb[0].mxu0
      %5713 = vmatprep.mubr.bf16.mxu0 0
      %5714 = vmatmul.mubr.bf16.gmra.mrb[0].mxu0 %v5616
      %v5715 = vpop.f32.mrb[0].mxu0
      %v5716 = vadd.f32 0.0, %v5715
      %v5717 = vpop.f32.mrb[0].mxu0
      %v5718 = vpop.f32.mrb[0].mxu0
      %v5719 = vadd.f32 0.0, %v5718
      %v5720 = vpop.f32.mrb[0].mxu0
      %5721 = vmatprep.mubr.bf16.mxu0 0
      %5722 = vmatmul.mubr.bf16.gmra.mrb[0].mxu0 %v5619
      %v5723 = vpop.f32.mrb[0].mxu0
      %v5724 = vadd.f32 0.0, %v5723
      %v5725 = vpop.f32.mrb[0].mxu0
      %v5726 = vpop.f32.mrb[0].mxu0
      %v5727 = vadd.f32 0.0, %v5726
      %v5728 = vpop.f32.mrb[0].mxu0
      %5729 = vmatprep.mubr.bf16.mxu0 0
      %5730 = vmatmul.mubr.bf16.gmra.mrb[0].mxu0 %v5622
      %v5731 = vpop.f32.mrb[0].mxu0
      %v5732 = vadd.f32 0.0, %v5731
      %v5733 = vpop.f32.mrb[0].mxu0
      %v5734 = vpop.f32.mrb[0].mxu0
      %v5735 = vadd.f32 0.0, %v5734
      %v5736 = vpop.f32.mrb[0].mxu0
      %5737 = vmatprep.mubr.bf16.mxu0 0
      %5738 = vmatmul.mubr.bf16.gmra.mrb[0].mxu0 %v5625
      %v5739 = vpop.f32.mrb[0].mxu0
      %v5740 = vadd.f32 0.0, %v5739
      %v5741 = vpop.f32.mrb[0].mxu0
      %v5742 = vpop.f32.mrb[0].mxu0
      %v5743 = vadd.f32 0.0, %v5742
      %v5744 = vpop.f32.mrb[0].mxu0
      %5745 = vmatprep.mubr.bf16.mxu0 0
      %5746 = vmatmul.mubr.bf16.gmra.mrb[0].mxu0 %v5628
      %v5747 = vpop.f32.mrb[0].mxu0
      %v5748 = vadd.f32 0.0, %v5747
      %v5749 = vpop.f32.mrb[0].mxu0
      %v5750 = vpop.f32.mrb[0].mxu0
      %v5751 = vadd.f32 0.0, %v5750
      %v5752 = vpop.f32.mrb[0].mxu0
      %5753 = vmatprep.mubr.bf16.mxu0 0
      %5754 = vmatmul.mubr.bf16.gmra.mrb[0].mxu0 %v5631
      %v5755 = vpop.f32.mrb[0].mxu0
      %v5756 = vadd.f32 0.0, %v5755
      %v5757 = vpop.f32.mrb[0].mxu0
      %v5758 = vpop.f32.mrb[0].mxu0
      %v5759 = vadd.f32 0.0, %v5758
      %v5760 = vpop.f32.mrb[0].mxu0
      %5761 = vmatprep.mubr.bf16.mxu0 0
      %5762 = vmatmul.mubr.bf16.gmra.mrb[0].mxu0 %v5634
      %v5763 = vpop.f32.mrb[0].mxu0
      %v5764 = vadd.f32 0.0, %v5763
      %v5765 = vpop.f32.mrb[0].mxu0
      %v5766 = vpop.f32.mrb[0].mxu0
      %v5767 = vadd.f32 0.0, %v5766
      %v5768 = vpop.f32.mrb[0].mxu0
      %5769 = vmatprep.mubr.bf16.mxu0 0
      %5770 = vmatmul.mubr.bf16.gmra.mrb[0].mxu0 %v5637
      %v5771 = vpop.f32.mrb[0].mxu0
      %v5772 = vadd.f32 0.0, %v5771
      %v5773 = vpop.f32.mrb[0].mxu0
      %v5774 = vpop.f32.mrb[0].mxu0
      %v5775 = vadd.f32 0.0, %v5774
      %v5776 = vpop.f32.mrb[0].mxu0
      %5777 = vmatprep.mubr.bf16.mxu0 0
      %5778 = vmatmul.mubr.bf16.gmra.mrb[0].mxu0 %v5640
      %v5779 = vpop.f32.mrb[0].mxu0
      %v5780 = vadd.f32 0.0, %v5779
      %v5781 = vpop.f32.mrb[0].mxu0
      %v5782 = vpop.f32.mrb[0].mxu0
      %v5783 = vadd.f32 0.0, %v5782
      %v5784 = vpop.f32.mrb[0].mxu0
      %5785 = vmatprep.mubr.bf16.mxu0 0
      %5786 = vmatmul.mubr.bf16.gmra.mrb[0].mxu0 %v5643
      %v5787 = vpop.f32.mrb[0].mxu0
      %v5788 = vadd.f32 0.0, %v5787
      %v5789 = vpop.f32.mrb[0].mxu0
      %v5790 = vpop.f32.mrb[0].mxu0
      %v5791 = vadd.f32 0.0, %v5790
      %v5792 = vpop.f32.mrb[0].mxu0
      %5793 = vmatprep.mubr.bf16.mxu0 0
      %5794 = vmatmul.mubr.bf16.gmra.mrb[0].mxu0 %v5646
      %v5795 = vpop.f32.mrb[0].mxu0
      %v5796 = vadd.f32 0.0, %v5795
      %v5797 = vpop.f32.mrb[0].mxu0
      %v5798 = vpop.f32.mrb[0].mxu0
      %v5799 = vadd.f32 0.0, %v5798
      %v5800 = vpop.f32.mrb[0].mxu0
      %5801 = vmatprep.mubr.bf16.mxu0 0
      %5802 = vmatmul.mubr.bf16.gmra.mrb[0].mxu0 %v5649
      %v5803 = vpop.f32.mrb[0].mxu0
      %v5804 = vadd.f32 0.0, %v5803
      %v5805 = vpop.f32.mrb[0].mxu0
      %v5806 = vpop.f32.mrb[0].mxu0
      %v5807 = vadd.f32 0.0, %v5806
      %v5808 = vpop.f32.mrb[0].mxu0
      %5809 = vmatprep.mubr.bf16.mxu0 0
      %5810 = vmatmul.mubr.bf16.gmra.mrb[0].mxu0 %v5652
      %v5811 = vpop.f32.mrb[0].mxu0
      %v5812 = vadd.f32 0.0, %v5811
      %v5813 = vpop.f32.mrb[0].mxu0
      %v5814 = vpop.f32.mrb[0].mxu0
      %v5815 = vadd.f32 0.0, %v5814
      %v5816 = vpop.f32.mrb[0].mxu0
      %5817 = vdwg.mxu0
      %v5818 = vadd.f32 %v5492, %v5692
      %v5819 = vadd.f32 %v5493, %v5695
      %v5820 = vadd.f32 %v5494, %v5700
      %v5821 = vadd.f32 %v5495, %v5703
      %v5822 = vadd.f32 %v5496, %v5708
      %v5823 = vadd.f32 %v5497, %v5711
      %v5824 = vadd.f32 %v5498, %v5716
      %v5825 = vadd.f32 %v5499, %v5719
      %v5826 = vadd.f32 %v5500, %v5724
      %v5827 = vadd.f32 %v5501, %v5727
      %v5828 = vadd.f32 %v5502, %v5732
      %v5829 = vadd.f32 %v5503, %v5735
      %v5830 = vadd.f32 %v5504, %v5740
      %v5831 = vadd.f32 %v5505, %v5743
      %v5832 = vadd.f32 %v5506, %v5748
      %v5833 = vadd.f32 %v5507, %v5751
      %v5834 = vadd.f32 %v5508, %v5756
      %v5835 = vadd.f32 %v5509, %v5759
      %v5836 = vadd.f32 %v5510, %v5764
      %v5837 = vadd.f32 %v5511, %v5767
      %v5838 = vadd.f32 %v5512, %v5772
      %v5839 = vadd.f32 %v5513, %v5775
      %v5840 = vadd.f32 %v5514, %v5780
      %v5841 = vadd.f32 %v5515, %v5783
      %v5842 = vadd.f32 %v5516, %v5788
      %v5843 = vadd.f32 %v5517, %v5791
      %v5844 = vadd.f32 %v5518, %v5796
      %v5845 = vadd.f32 %v5519, %v5799
      %v5846 = vadd.f32 %v5520, %v5804
      %v5847 = vadd.f32 %v5521, %v5807
      %v5848 = vadd.f32 %v5522, %v5812
      %v5849 = vadd.f32 %v5523, %v5815
      %v5850 = vld [vmem:[#allocation2 + $0x18] sm:$0xf]
      %v5851 = vld [vmem:[#allocation2 + $0x1c] sm:$0xf]
      %v5852 = vld [vmem:[#allocation2 + $0x20] sm:$0xf]
      %v5853 = vld [vmem:[#allocation2 + $0x24] sm:$0xf]
      %v5854 = vld [vmem:[#allocation2 + $0x28] sm:$0xf]
      %v5855 = vld [vmem:[#allocation2 + $0x2c] sm:$0xf]
      %v5856 = vld [vmem:[#allocation2 + $0x30] sm:$0xf]
      %v5857 = vld [vmem:[#allocation2 + $0x34] sm:$0xf]
      %v5858 = vld [vmem:[#allocation2 + $0x38] sm:$0xf]
      %v5859 = vld [vmem:[#allocation2 + $0x3c] sm:$0xf]
      %v5860 = vld [vmem:[#allocation2 + $0x40] sm:$0xf]
      %v5861 = vld [vmem:[#allocation2 + $0x44] sm:$0xf]
      %v5862 = vld [vmem:[#allocation2 + $0x48] sm:$0xf]
      %v5863 = vld [vmem:[#allocation2 + $0x4c] sm:$0xf]
      %v5864 = vld [vmem:[#allocation2 + $0x50] sm:$0xf]
      %v5865 = vld [vmem:[#allocation2 + $0x54] sm:$0xf]
      %v5866 = vld [vmem:[#allocation2 + $0x58] sm:$0xf]
      %v5867 = vld [vmem:[#allocation2 + $0x5c] sm:$0xf]
      %v5868 = vld [vmem:[#allocation2 + $0x60] sm:$0xf]
      %v5869 = vld [vmem:[#allocation2 + $0x64] sm:$0xf]
      %v5870 = vld [vmem:[#allocation2 + $0x68] sm:$0xf]
      %v5871 = vld [vmem:[#allocation2 + $0x6c] sm:$0xf]
      %v5872 = vld [vmem:[#allocation2 + $0x70] sm:$0xf]
      %v5873 = vld [vmem:[#allocation2 + $0x74] sm:$0xf]
      %v5874 = vld [vmem:[#allocation2 + $0x78] sm:$0xf]
      %v5875 = vld [vmem:[#allocation2 + $0x7c] sm:$0xf]
      %v5876 = vld [vmem:[#allocation2 + $0x80] sm:$0xf]
      %v5877 = vld [vmem:[#allocation2 + $0x84] sm:$0xf]
      %v5878 = vld [vmem:[#allocation2 + $0x88] sm:$0xf]
      %v5879 = vld [vmem:[#allocation2 + $0x8c] sm:$0xf]
      %v5880 = vld [vmem:[#allocation2 + $0x90] sm:$0xf]
      %v5881 = vld [vmem:[#allocation2 + $0x94] sm:$0xf]
      %v5882 = vld [vmem:[#allocation2 + $0x98] sm:$0x1]
      %v5883 = vsel %vm3049, %v5850, 0
      %v5884 = vsel %vm3050, %v5851, 0
      %v5885 = vsel %vm3051, %v5852, 0
      %v5886 = vsel %vm3052, %v5853, 0
      %v5887 = vsel %vm3053, %v5854, 0
      %v5888 = vsel %vm3054, %v5855, 0
      %v5889 = vsel %vm3055, %v5856, 0
      %v5890 = vsel %vm3056, %v5857, 0
      %v5891 = vsel %vm3057, %v5858, 0
      %v5892 = vsel %vm3058, %v5859, 0
      %v5893 = vsel %vm3059, %v5860, 0
      %v5894 = vsel %vm3060, %v5861, 0
      %v5895 = vsel %vm3061, %v5862, 0
      %v5896 = vsel %vm3062, %v5863, 0
      %v5897 = vsel %vm3063, %v5864, 0
      %v5898 = vsel %vm3064, %v5865, 0
      %v5899 = vsel %vm3065, %v5866, 0
      %v5900 = vsel %vm3066, %v5867, 0
      %v5901 = vsel %vm3067, %v5868, 0
      %v5902 = vsel %vm3068, %v5869, 0
      %v5903 = vsel %vm3069, %v5870, 0
      %v5904 = vsel %vm3070, %v5871, 0
      %v5905 = vsel %vm3071, %v5872, 0
      %v5906 = vsel %vm3072, %v5873, 0
      %v5907 = vsel %vm3073, %v5874, 0
      %v5908 = vsel %vm3074, %v5875, 0
      %v5909 = vsel %vm3075, %v5876, 0
      %v5910 = vsel %vm3076, %v5877, 0
      %v5911 = vsel %vm3077, %v5878, 0
      %v5912 = vsel %vm3078, %v5879, 0
      %v5913 = vsel %vm3079, %v5880, 0
      %v5914 = vsel %vm3080, %v5881, 0
      %v5915 = vsel %vm3081, %v5882, 0
      %s5916 = scalar_lea.vmem %s3, 16
      %v5917 = vld [vmem:[%s5916] sm:$0x3]
      %v5951 = vunpack.c.l.b16 %v5883
      %v5952 = vunpack.c.l.b16 %v5884
      %v5953 = vunpack.c.l.b16 %v5885
      %v5954 = vunpack.c.l.b16 %v5886
      %v5955 = vunpack.c.l.b16 %v5887
      %v5956 = vunpack.c.l.b16 %v5888
      %v5957 = vunpack.c.l.b16 %v5889
      %v5958 = vunpack.c.l.b16 %v5890
      %v5959 = vunpack.c.l.b16 %v5891
      %v5960 = vunpack.c.l.b16 %v5892
      %v5961 = vunpack.c.l.b16 %v5893
      %v5962 = vunpack.c.l.b16 %v5894
      %v5963 = vunpack.c.l.b16 %v5895
      %v5964 = vunpack.c.l.b16 %v5896
      %v5965 = vunpack.c.l.b16 %v5897
      %v5966 = vunpack.c.l.b16 %v5898
      %v5967 = vunpack.c.l.b16 %v5899
      %v5968 = vunpack.c.l.b16 %v5900
      %v5969 = vunpack.c.l.b16 %v5901
      %v5970 = vunpack.c.l.b16 %v5902
      %v5971 = vunpack.c.l.b16 %v5903
      %v5972 = vunpack.c.l.b16 %v5904
      %v5973 = vunpack.c.l.b16 %v5905
      %v5974 = vunpack.c.l.b16 %v5906
      %v5975 = vunpack.c.l.b16 %v5907
      %v5976 = vunpack.c.l.b16 %v5908
      %v5977 = vunpack.c.l.b16 %v5909
      %v5978 = vunpack.c.l.b16 %v5910
      %v5979 = vunpack.c.l.b16 %v5911
      %v5980 = vunpack.c.l.b16 %v5912
      %v5981 = vunpack.c.l.b16 %v5913
      %v5982 = vunpack.c.l.b16 %v5914
      %v5983 = vunpack.c.l.b16 %v5915
      %v5984 = vpack.c.b16 %v5952, %v5951
      %v5985 = vpack.c.b16 %v5954, %v5953
      %v5986 = vpack.c.b16 %v5956, %v5955
      %v5987 = vpack.c.b16 %v5958, %v5957
      %v5988 = vpack.c.b16 %v5960, %v5959
      %v5989 = vpack.c.b16 %v5962, %v5961
      %v5990 = vpack.c.b16 %v5964, %v5963
      %v5991 = vpack.c.b16 %v5966, %v5965
      %v5992 = vpack.c.b16 %v5968, %v5967
      %v5993 = vpack.c.b16 %v5970, %v5969
      %v5994 = vpack.c.b16 %v5972, %v5971
      %v5995 = vpack.c.b16 %v5974, %v5973
      %v5996 = vpack.c.b16 %v5976, %v5975
      %v5997 = vpack.c.b16 %v5978, %v5977
      %v5998 = vpack.c.b16 %v5980, %v5979
      %v5999 = vpack.c.b16 %v5982, %v5981
      %v6000 = vpack.c.b16 %v5983, %v5983
      %v6002 = vshrl.u32 %v5984, 16
      %v6004 = vshll.u32 %v5984, 16
      %v6006 = vrot.slane %v6004, 1
      %v6007 = vor.u32 %v6002, %v6006
      %v6009 = vshll.u32 %v5985, 16
      %v6011 = vrot.slane %v6009, 1
      %v6012 = vsel %vm3200, %v6007, %v6011
      %v6013 = vshrl.u32 %v5985, 16
      %v6015 = vor.u32 %v6013, %v6011
      %v6017 = vshll.u32 %v5986, 16
      %v6019 = vrot.slane %v6017, 1
      %v6020 = vsel %vm3200, %v6015, %v6019
      %v6021 = vshrl.u32 %v5986, 16
      %v6023 = vor.u32 %v6021, %v6019
      %v6025 = vshll.u32 %v5987, 16
      %v6027 = vrot.slane %v6025, 1
      %v6028 = vsel %vm3200, %v6023, %v6027
      %v6029 = vshrl.u32 %v5987, 16
      %v6031 = vor.u32 %v6029, %v6027
      %v6033 = vshll.u32 %v5988, 16
      %v6035 = vrot.slane %v6033, 1
      %v6036 = vsel %vm3200, %v6031, %v6035
      %v6037 = vshrl.u32 %v5988, 16
      %v6039 = vor.u32 %v6037, %v6035
      %v6041 = vshll.u32 %v5989, 16
      %v6043 = vrot.slane %v6041, 1
      %v6044 = vsel %vm3200, %v6039, %v6043
      %v6045 = vshrl.u32 %v5989, 16
      %v6047 = vor.u32 %v6045, %v6043
      %v6049 = vshll.u32 %v5990, 16
      %v6051 = vrot.slane %v6049, 1
      %v6052 = vsel %vm3200, %v6047, %v6051
      %v6053 = vshrl.u32 %v5990, 16
      %v6055 = vor.u32 %v6053, %v6051
      %v6057 = vshll.u32 %v5991, 16
      %v6059 = vrot.slane %v6057, 1
      %v6060 = vsel %vm3200, %v6055, %v6059
      %v6061 = vshrl.u32 %v5991, 16
      %v6063 = vor.u32 %v6061, %v6059
      %v6065 = vshll.u32 %v5992, 16
      %v6067 = vrot.slane %v6065, 1
      %v6068 = vsel %vm3200, %v6063, %v6067
      %v6069 = vshrl.u32 %v5992, 16
      %v6071 = vor.u32 %v6069, %v6067
      %v6073 = vshll.u32 %v5993, 16
      %v6075 = vrot.slane %v6073, 1
      %v6076 = vsel %vm3200, %v6071, %v6075
      %v6077 = vshrl.u32 %v5993, 16
      %v6079 = vor.u32 %v6077, %v6075
      %v6081 = vshll.u32 %v5994, 16
      %v6083 = vrot.slane %v6081, 1
      %v6084 = vsel %vm3200, %v6079, %v6083
      %v6085 = vshrl.u32 %v5994, 16
      %v6087 = vor.u32 %v6085, %v6083
      %v6089 = vshll.u32 %v5995, 16
      %v6091 = vrot.slane %v6089, 1
      %v6092 = vsel %vm3200, %v6087, %v6091
      %v6093 = vshrl.u32 %v5995, 16
      %v6095 = vor.u32 %v6093, %v6091
      %v6097 = vshll.u32 %v5996, 16
      %v6099 = vrot.slane %v6097, 1
      %v6100 = vsel %vm3200, %v6095, %v6099
      %v6101 = vshrl.u32 %v5996, 16
      %v6103 = vor.u32 %v6101, %v6099
      %v6105 = vshll.u32 %v5997, 16
      %v6107 = vrot.slane %v6105, 1
      %v6108 = vsel %vm3200, %v6103, %v6107
      %v6109 = vshrl.u32 %v5997, 16
      %v6111 = vor.u32 %v6109, %v6107
      %v6113 = vshll.u32 %v5998, 16
      %v6115 = vrot.slane %v6113, 1
      %v6116 = vsel %vm3200, %v6111, %v6115
      %v6117 = vshrl.u32 %v5998, 16
      %v6119 = vor.u32 %v6117, %v6115
      %v6121 = vshll.u32 %v5999, 16
      %v6123 = vrot.slane %v6121, 1
      %v6124 = vsel %vm3200, %v6119, %v6123
      %v6125 = vshrl.u32 %v5999, 16
      %v6127 = vor.u32 %v6125, %v6123
      %v6129 = vshll.u32 %v6000, 16
      %v6131 = vrot.slane %v6129, 1
      %v6132 = vsel %vm3200, %v6127, %v6131
      %v6134 = vsel %vm1937, %v6012, 0
      %v6137 = vsel %vm1937, %v6020, 0
      %v6140 = vsel %vm1937, %v6028, 0
      %v6143 = vsel %vm1937, %v6036, 0
      %v6146 = vsel %vm1937, %v6044, 0
      %v6149 = vsel %vm1937, %v6052, 0
      %v6152 = vsel %vm1937, %v6060, 0
      %v6155 = vsel %vm1937, %v6068, 0
      %v6158 = vsel %vm1937, %v6076, 0
      %v6161 = vsel %vm1937, %v6084, 0
      %v6164 = vsel %vm1937, %v6092, 0
      %v6167 = vsel %vm1937, %v6100, 0
      %v6170 = vsel %vm1937, %v6108, 0
      %v6173 = vsel %vm1937, %v6116, 0
      %v6176 = vsel %vm1937, %v6124, 0
      %v6179 = vsel %vm1937, %v6132, 0
      %v6182 = vsel %vm1986, %v5917, 0
      %6184 = vmatprep.subr.bf16.mxu0 0
      %6185 = vmatpush1.bf16.msra.mxu0 %v6182
      %6186 = vmatprep.subr.bf16.mxu0 0
      %6187 = vmatpush1.bf16.msra.mxu0 0
      %6188 = vmatprep.subr.bf16.mxu0 0
      %6189 = vmatpush1.bf16.msra.mxu0 0
      %6190 = vmatprep.subr.bf16.mxu0 0
      %6191 = vmatpush1.bf16.msra.mxu0 0
      %6192 = vmatprep.subr.bf16.mxu0 0
      %6193 = vmatpush1.bf16.msra.mxu0 0
      %6194 = vmatprep.subr.bf16.mxu0 0
      %6195 = vmatpush1.bf16.msra.mxu0 0
      %6196 = vmatprep.subr.bf16.mxu0 0
      %6197 = vmatpush1.bf16.msra.mxu0 0
      %6198 = vmatprep.subr.bf16.mxu0 0
      %6199 = vmatpush1.bf16.msra.mxu0 0
      %6200 = vmatprep.subr.bf16.mxu0 0
      %6201 = vmatpush1.bf16.msra.mxu0 0
      %6202 = vmatprep.subr.bf16.mxu0 0
      %6203 = vmatpush1.bf16.msra.mxu0 0
      %6204 = vmatprep.subr.bf16.mxu0 0
      %6205 = vmatpush1.bf16.msra.mxu0 0
      %6206 = vmatprep.subr.bf16.mxu0 0
      %6207 = vmatpush1.bf16.msra.mxu0 0
      %6208 = vmatprep.subr.bf16.mxu0 0
      %6209 = vmatpush1.bf16.msra.mxu0 0
      %6210 = vmatprep.subr.bf16.mxu0 0
      %6211 = vmatpush1.bf16.msra.mxu0 0
      %6212 = vmatprep.subr.bf16.mxu0 0
      %6213 = vmatpush1.bf16.msra.mxu0 0
      %6214 = vmatprep.subr.bf16.mxu0 0
      %6215 = vmatpush1.bf16.msra.mxu0 0
      %6216 = vmatprep.mubr.bf16.mxu0 0
      %6217 = vmatmul.mubr.bf16.gmra.mrb[0].mxu0 %v6134
      %v6218 = vpop.f32.mrb[0].mxu0
      %v6219 = vadd.f32 0.0, %v6218
      %v6220 = vpop.f32.mrb[0].mxu0
      %v6221 = vpop.f32.mrb[0].mxu0
      %v6222 = vadd.f32 0.0, %v6221
      %v6223 = vpop.f32.mrb[0].mxu0
      %6224 = vmatprep.mubr.bf16.mxu0 0
      %6225 = vmatmul.mubr.bf16.gmra.mrb[0].mxu0 %v6137
      %v6226 = vpop.f32.mrb[0].mxu0
      %v6227 = vadd.f32 0.0, %v6226
      %v6228 = vpop.f32.mrb[0].mxu0
      %v6229 = vpop.f32.mrb[0].mxu0
      %v6230 = vadd.f32 0.0, %v6229
      %v6231 = vpop.f32.mrb[0].mxu0
      %6232 = vmatprep.mubr.bf16.mxu0 0
      %6233 = vmatmul.mubr.bf16.gmra.mrb[0].mxu0 %v6140
      %v6234 = vpop.f32.mrb[0].mxu0
      %v6235 = vadd.f32 0.0, %v6234
      %v6236 = vpop.f32.mrb[0].mxu0
      %v6237 = vpop.f32.mrb[0].mxu0
      %v6238 = vadd.f32 0.0, %v6237
      %v6239 = vpop.f32.mrb[0].mxu0
      %6240 = vmatprep.mubr.bf16.mxu0 0
      %6241 = vmatmul.mubr.bf16.gmra.mrb[0].mxu0 %v6143
      %v6242 = vpop.f32.mrb[0].mxu0
      %v6243 = vadd.f32 0.0, %v6242
      %v6244 = vpop.f32.mrb[0].mxu0
      %v6245 = vpop.f32.mrb[0].mxu0
      %v6246 = vadd.f32 0.0, %v6245
      %v6247 = vpop.f32.mrb[0].mxu0
      %6248 = vmatprep.mubr.bf16.mxu0 0
      %6249 = vmatmul.mubr.bf16.gmra.mrb[0].mxu0 %v6146
      %v6250 = vpop.f32.mrb[0].mxu0
      %v6251 = vadd.f32 0.0, %v6250
      %v6252 = vpop.f32.mrb[0].mxu0
      %v6253 = vpop.f32.mrb[0].mxu0
      %v6254 = vadd.f32 0.0, %v6253
      %v6255 = vpop.f32.mrb[0].mxu0
      %6256 = vmatprep.mubr.bf16.mxu0 0
      %6257 = vmatmul.mubr.bf16.gmra.mrb[0].mxu0 %v6149
      %v6258 = vpop.f32.mrb[0].mxu0
      %v6259 = vadd.f32 0.0, %v6258
      %v6260 = vpop.f32.mrb[0].mxu0
      %v6261 = vpop.f32.mrb[0].mxu0
      %v6262 = vadd.f32 0.0, %v6261
      %v6263 = vpop.f32.mrb[0].mxu0
      %6264 = vmatprep.mubr.bf16.mxu0 0
      %6265 = vmatmul.mubr.bf16.gmra.mrb[0].mxu0 %v6152
      %v6266 = vpop.f32.mrb[0].mxu0
      %v6267 = vadd.f32 0.0, %v6266
      %v6268 = vpop.f32.mrb[0].mxu0
      %v6269 = vpop.f32.mrb[0].mxu0
      %v6270 = vadd.f32 0.0, %v6269
      %v6271 = vpop.f32.mrb[0].mxu0
      %6272 = vmatprep.mubr.bf16.mxu0 0
      %6273 = vmatmul.mubr.bf16.gmra.mrb[0].mxu0 %v6155
      %v6274 = vpop.f32.mrb[0].mxu0
      %v6275 = vadd.f32 0.0, %v6274
      %v6276 = vpop.f32.mrb[0].mxu0
      %v6277 = vpop.f32.mrb[0].mxu0
      %v6278 = vadd.f32 0.0, %v6277
      %v6279 = vpop.f32.mrb[0].mxu0
      %6280 = vmatprep.mubr.bf16.mxu0 0
      %6281 = vmatmul.mubr.bf16.gmra.mrb[0].mxu0 %v6158
      %v6282 = vpop.f32.mrb[0].mxu0
      %v6283 = vadd.f32 0.0, %v6282
      %v6284 = vpop.f32.mrb[0].mxu0
      %v6285 = vpop.f32.mrb[0].mxu0
      %v6286 = vadd.f32 0.0, %v6285
      %v6287 = vpop.f32.mrb[0].mxu0
      %6288 = vmatprep.mubr.bf16.mxu0 0
      %6289 = vmatmul.mubr.bf16.gmra.mrb[0].mxu0 %v6161
      %v6290 = vpop.f32.mrb[0].mxu0
      %v6291 = vadd.f32 0.0, %v6290
      %v6292 = vpop.f32.mrb[0].mxu0
      %v6293 = vpop.f32.mrb[0].mxu0
      %v6294 = vadd.f32 0.0, %v6293
      %v6295 = vpop.f32.mrb[0].mxu0
      %6296 = vmatprep.mubr.bf16.mxu0 0
      %6297 = vmatmul.mubr.bf16.gmra.mrb[0].mxu0 %v6164
      %v6298 = vpop.f32.mrb[0].mxu0
      %v6299 = vadd.f32 0.0, %v6298
      %v6300 = vpop.f32.mrb[0].mxu0
      %v6301 = vpop.f32.mrb[0].mxu0
      %v6302 = vadd.f32 0.0, %v6301
      %v6303 = vpop.f32.mrb[0].mxu0
      %6304 = vmatprep.mubr.bf16.mxu0 0
      %6305 = vmatmul.mubr.bf16.gmra.mrb[0].mxu0 %v6167
      %v6306 = vpop.f32.mrb[0].mxu0
      %v6307 = vadd.f32 0.0, %v6306
      %v6308 = vpop.f32.mrb[0].mxu0
      %v6309 = vpop.f32.mrb[0].mxu0
      %v6310 = vadd.f32 0.0, %v6309
      %v6311 = vpop.f32.mrb[0].mxu0
      %6312 = vmatprep.mubr.bf16.mxu0 0
      %6313 = vmatmul.mubr.bf16.gmra.mrb[0].mxu0 %v6170
      %v6314 = vpop.f32.mrb[0].mxu0
      %v6315 = vadd.f32 0.0, %v6314
      %v6316 = vpop.f32.mrb[0].mxu0
      %v6317 = vpop.f32.mrb[0].mxu0
      %v6318 = vadd.f32 0.0, %v6317
      %v6319 = vpop.f32.mrb[0].mxu0
      %6320 = vmatprep.mubr.bf16.mxu0 0
      %6321 = vmatmul.mubr.bf16.gmra.mrb[0].mxu0 %v6173
      %v6322 = vpop.f32.mrb[0].mxu0
      %v6323 = vadd.f32 0.0, %v6322
      %v6324 = vpop.f32.mrb[0].mxu0
      %v6325 = vpop.f32.mrb[0].mxu0
      %v6326 = vadd.f32 0.0, %v6325
      %v6327 = vpop.f32.mrb[0].mxu0
      %6328 = vmatprep.mubr.bf16.mxu0 0
      %6329 = vmatmul.mubr.bf16.gmra.mrb[0].mxu0 %v6176
      %v6330 = vpop.f32.mrb[0].mxu0
      %v6331 = vadd.f32 0.0, %v6330
      %v6332 = vpop.f32.mrb[0].mxu0
      %v6333 = vpop.f32.mrb[0].mxu0
      %v6334 = vadd.f32 0.0, %v6333
      %v6335 = vpop.f32.mrb[0].mxu0
      %6336 = vmatprep.mubr.bf16.mxu0 0
      %6337 = vmatmul.mubr.bf16.gmra.mrb[0].mxu0 %v6179
      %v6338 = vpop.f32.mrb[0].mxu0
      %v6339 = vadd.f32 0.0, %v6338
      %v6340 = vpop.f32.mrb[0].mxu0
      %v6341 = vpop.f32.mrb[0].mxu0
      %v6342 = vadd.f32 0.0, %v6341
      %v6343 = vpop.f32.mrb[0].mxu0
      %6344 = vdwg.mxu0
      %v6345 = vadd.f32 %v5818, %v6219
      %v6346 = vadd.f32 %v5819, %v6222
      %v6347 = vadd.f32 %v5820, %v6227
      %v6348 = vadd.f32 %v5821, %v6230
      %v6349 = vadd.f32 %v5822, %v6235
      %v6350 = vadd.f32 %v5823, %v6238
      %v6351 = vadd.f32 %v5824, %v6243
      %v6352 = vadd.f32 %v5825, %v6246
      %v6353 = vadd.f32 %v5826, %v6251
      %v6354 = vadd.f32 %v5827, %v6254
      %v6355 = vadd.f32 %v5828, %v6259
      %v6356 = vadd.f32 %v5829, %v6262
      %v6357 = vadd.f32 %v5830, %v6267
      %v6358 = vadd.f32 %v5831, %v6270
      %v6359 = vadd.f32 %v5832, %v6275
      %v6360 = vadd.f32 %v5833, %v6278
      %v6361 = vadd.f32 %v5834, %v6283
      %v6362 = vadd.f32 %v5835, %v6286
      %v6363 = vadd.f32 %v5836, %v6291
      %v6364 = vadd.f32 %v5837, %v6294
      %v6365 = vadd.f32 %v5838, %v6299
      %v6366 = vadd.f32 %v5839, %v6302
      %v6367 = vadd.f32 %v5840, %v6307
      %v6368 = vadd.f32 %v5841, %v6310
      %v6369 = vadd.f32 %v5842, %v6315
      %v6370 = vadd.f32 %v5843, %v6318
      %v6371 = vadd.f32 %v5844, %v6323
      %v6372 = vadd.f32 %v5845, %v6326
      %v6373 = vadd.f32 %v5846, %v6331
      %v6374 = vadd.f32 %v5847, %v6334
      %v6375 = vadd.f32 %v5848, %v6339
      %v6376 = vadd.f32 %v5849, %v6342
      %v6377 = vld [vmem:[%s4] sm:$0x1]
      %v6379 = vlaneseq
      %v6380 = vshrl.u32 %v6379, 7
      %v6381 = vsub.s32 0, %v6380
      %v6382 = vrot.slane %v6377, %v6381
      %v6384 = vadd.f32 %v6345, %v6382
      %v6385 = vadd.f32 %v6346, %v6382
      %v6386 = vadd.f32 %v6347, %v6382
      %v6387 = vadd.f32 %v6348, %v6382
      %v6388 = vadd.f32 %v6349, %v6382
      %v6389 = vadd.f32 %v6350, %v6382
      %v6390 = vadd.f32 %v6351, %v6382
      %v6391 = vadd.f32 %v6352, %v6382
      %v6392 = vadd.f32 %v6353, %v6382
      %v6393 = vadd.f32 %v6354, %v6382
      %v6394 = vadd.f32 %v6355, %v6382
      %v6395 = vadd.f32 %v6356, %v6382
      %v6396 = vadd.f32 %v6357, %v6382
      %v6397 = vadd.f32 %v6358, %v6382
      %v6398 = vadd.f32 %v6359, %v6382
      %v6399 = vadd.f32 %v6360, %v6382
      %v6400 = vadd.f32 %v6361, %v6382
      %v6401 = vadd.f32 %v6362, %v6382
      %v6402 = vadd.f32 %v6363, %v6382
      %v6403 = vadd.f32 %v6364, %v6382
      %v6404 = vadd.f32 %v6365, %v6382
      %v6405 = vadd.f32 %v6366, %v6382
      %v6406 = vadd.f32 %v6367, %v6382
      %v6407 = vadd.f32 %v6368, %v6382
      %v6408 = vadd.f32 %v6369, %v6382
      %v6409 = vadd.f32 %v6370, %v6382
      %v6410 = vadd.f32 %v6371, %v6382
      %v6411 = vadd.f32 %v6372, %v6382
      %v6412 = vadd.f32 %v6373, %v6382
      %v6413 = vadd.f32 %v6374, %v6382
      %v6414 = vadd.f32 %v6375, %v6382
      %v6415 = vadd.f32 %v6376, %v6382
      %v6416 = vmax.f32 %v6384, 0.0
      %v6417 = vmax.f32 %v6385, 0.0
      %v6418 = vmax.f32 %v6386, 0.0
      %v6419 = vmax.f32 %v6387, 0.0
      %v6420 = vmax.f32 %v6388, 0.0
      %v6421 = vmax.f32 %v6389, 0.0
      %v6422 = vmax.f32 %v6390, 0.0
      %v6423 = vmax.f32 %v6391, 0.0
      %v6424 = vmax.f32 %v6392, 0.0
      %v6425 = vmax.f32 %v6393, 0.0
      %v6426 = vmax.f32 %v6394, 0.0
      %v6427 = vmax.f32 %v6395, 0.0
      %v6428 = vmax.f32 %v6396, 0.0
      %v6429 = vmax.f32 %v6397, 0.0
      %v6430 = vmax.f32 %v6398, 0.0
      %v6431 = vmax.f32 %v6399, 0.0
      %v6432 = vmax.f32 %v6400, 0.0
      %v6433 = vmax.f32 %v6401, 0.0
      %v6434 = vmax.f32 %v6402, 0.0
      %v6435 = vmax.f32 %v6403, 0.0
      %v6436 = vmax.f32 %v6404, 0.0
      %v6437 = vmax.f32 %v6405, 0.0
      %v6438 = vmax.f32 %v6406, 0.0
      %v6439 = vmax.f32 %v6407, 0.0
      %v6440 = vmax.f32 %v6408, 0.0
      %v6441 = vmax.f32 %v6409, 0.0
      %v6442 = vmax.f32 %v6410, 0.0
      %v6443 = vmax.f32 %v6411, 0.0
      %v6444 = vmax.f32 %v6412, 0.0
      %v6445 = vmax.f32 %v6413, 0.0
      %v6446 = vmax.f32 %v6414, 0.0
      %v6447 = vmax.f32 %v6415, 0.0
      %v6448 = vpack.c.bf16 %v6417, %v6416
      %v6449 = vpack.c.bf16 %v6419, %v6418
      %v6450 = vpack.c.bf16 %v6421, %v6420
      %v6451 = vpack.c.bf16 %v6423, %v6422
      %v6452 = vpack.c.bf16 %v6425, %v6424
      %v6453 = vpack.c.bf16 %v6427, %v6426
      %v6454 = vpack.c.bf16 %v6429, %v6428
      %v6455 = vpack.c.bf16 %v6431, %v6430
      %v6456 = vpack.c.bf16 %v6433, %v6432
      %v6457 = vpack.c.bf16 %v6435, %v6434
      %v6458 = vpack.c.bf16 %v6437, %v6436
      %v6459 = vpack.c.bf16 %v6439, %v6438
      %v6460 = vpack.c.bf16 %v6441, %v6440
      %v6461 = vpack.c.bf16 %v6443, %v6442
      %v6462 = vpack.c.bf16 %v6445, %v6444
      %v6463 = vpack.c.bf16 %v6447, %v6446
      %v6464 = vld [vmem:[%s5] sm:$0x3]
      %v6465 = vld [vmem:[%s6] sm:$0x1]
      %v6467 = vlaneseq
      %v6468 = vshrl.u32 %v6467, 7
      %v6469 = vsub.s32 0, %v6468
      %v6470 = vrot.slane %v6465, %v6469
      %v6473 = vsel %vm1937, %v6448, 0
      %v6476 = vsel %vm1937, %v6449, 0
      %v6479 = vsel %vm1937, %v6450, 0
      %v6482 = vsel %vm1937, %v6451, 0
      %v6485 = vsel %vm1937, %v6452, 0
      %v6488 = vsel %vm1937, %v6453, 0
      %v6491 = vsel %vm1937, %v6454, 0
      %v6494 = vsel %vm1937, %v6455, 0
      %v6497 = vsel %vm1937, %v6456, 0
      %v6500 = vsel %vm1937, %v6457, 0
      %v6503 = vsel %vm1937, %v6458, 0
      %v6506 = vsel %vm1937, %v6459, 0
      %v6509 = vsel %vm1937, %v6460, 0
      %v6512 = vsel %vm1937, %v6461, 0
      %v6515 = vsel %vm1937, %v6462, 0
      %v6518 = vsel %vm1937, %v6463, 0
      %v6521 = vsel %vm1986, %v6464, 0
      %6523 = vmatprep.subr.bf16.mxu0 0
      %6524 = vmatpush1.bf16.msra.mxu0 %v6521
      %6525 = vmatprep.subr.bf16.mxu0 0
      %6526 = vmatpush1.bf16.msra.mxu0 0
      %6527 = vmatprep.subr.bf16.mxu0 0
      %6528 = vmatpush1.bf16.msra.mxu0 0
      %6529 = vmatprep.subr.bf16.mxu0 0
      %6530 = vmatpush1.bf16.msra.mxu0 0
      %6531 = vmatprep.subr.bf16.mxu0 0
      %6532 = vmatpush1.bf16.msra.mxu0 0
      %6533 = vmatprep.subr.bf16.mxu0 0
      %6534 = vmatpush1.bf16.msra.mxu0 0
      %6535 = vmatprep.subr.bf16.mxu0 0
      %6536 = vmatpush1.bf16.msra.mxu0 0
      %6537 = vmatprep.subr.bf16.mxu0 0
      %6538 = vmatpush1.bf16.msra.mxu0 0
      %6539 = vmatprep.subr.bf16.mxu0 0
      %6540 = vmatpush1.bf16.msra.mxu0 0
      %6541 = vmatprep.subr.bf16.mxu0 0
      %6542 = vmatpush1.bf16.msra.mxu0 0
      %6543 = vmatprep.subr.bf16.mxu0 0
      %6544 = vmatpush1.bf16.msra.mxu0 0
      %6545 = vmatprep.subr.bf16.mxu0 0
      %6546 = vmatpush1.bf16.msra.mxu0 0
      %6547 = vmatprep.subr.bf16.mxu0 0
      %6548 = vmatpush1.bf16.msra.mxu0 0
      %6549 = vmatprep.subr.bf16.mxu0 0
      %6550 = vmatpush1.bf16.msra.mxu0 0
      %6551 = vmatprep.subr.bf16.mxu0 0
      %6552 = vmatpush1.bf16.msra.mxu0 0
      %6553 = vmatprep.subr.bf16.mxu0 0
      %6554 = vmatpush1.bf16.msra.mxu0 0
      %6555 = vmatprep.mubr.bf16.mxu0 0
      %6556 = vmatmul.mubr.bf16.gmra.mrb[0].mxu0 %v6473
      %v6557 = vpop.f32.mrb[0].mxu0
      %v6558 = vadd.f32 %v6470, %v6557
      %v6559 = vpop.f32.mrb[0].mxu0
      %v6560 = vpop.f32.mrb[0].mxu0
      %v6561 = vadd.f32 %v6470, %v6560
      %v6562 = vpop.f32.mrb[0].mxu0
      %6563 = vmatprep.mubr.bf16.mxu0 0
      %6564 = vmatmul.mubr.bf16.gmra.mrb[0].mxu0 %v6476
      %v6565 = vpop.f32.mrb[0].mxu0
      %v6566 = vadd.f32 %v6470, %v6565
      %v6567 = vpop.f32.mrb[0].mxu0
      %v6568 = vpop.f32.mrb[0].mxu0
      %v6569 = vadd.f32 %v6470, %v6568
      %v6570 = vpop.f32.mrb[0].mxu0
      %6571 = vmatprep.mubr.bf16.mxu0 0
      %6572 = vmatmul.mubr.bf16.gmra.mrb[0].mxu0 %v6479
      %v6573 = vpop.f32.mrb[0].mxu0
      %v6574 = vadd.f32 %v6470, %v6573
      %v6575 = vpop.f32.mrb[0].mxu0
      %v6576 = vpop.f32.mrb[0].mxu0
      %v6577 = vadd.f32 %v6470, %v6576
      %v6578 = vpop.f32.mrb[0].mxu0
      %6579 = vmatprep.mubr.bf16.mxu0 0
      %6580 = vmatmul.mubr.bf16.gmra.mrb[0].mxu0 %v6482
      %v6581 = vpop.f32.mrb[0].mxu0
      %v6582 = vadd.f32 %v6470, %v6581
      %v6583 = vpop.f32.mrb[0].mxu0
      %v6584 = vpop.f32.mrb[0].mxu0
      %v6585 = vadd.f32 %v6470, %v6584
      %v6586 = vpop.f32.mrb[0].mxu0
      %6587 = vmatprep.mubr.bf16.mxu0 0
      %6588 = vmatmul.mubr.bf16.gmra.mrb[0].mxu0 %v6485
      %v6589 = vpop.f32.mrb[0].mxu0
      %v6590 = vadd.f32 %v6470, %v6589
      %v6591 = vpop.f32.mrb[0].mxu0
      %v6592 = vpop.f32.mrb[0].mxu0
      %v6593 = vadd.f32 %v6470, %v6592
      %v6594 = vpop.f32.mrb[0].mxu0
      %6595 = vmatprep.mubr.bf16.mxu0 0
      %6596 = vmatmul.mubr.bf16.gmra.mrb[0].mxu0 %v6488
      %v6597 = vpop.f32.mrb[0].mxu0
      %v6598 = vadd.f32 %v6470, %v6597
      %v6599 = vpop.f32.mrb[0].mxu0
      %v6600 = vpop.f32.mrb[0].mxu0
      %v6601 = vadd.f32 %v6470, %v6600
      %v6602 = vpop.f32.mrb[0].mxu0
      %6603 = vmatprep.mubr.bf16.mxu0 0
      %6604 = vmatmul.mubr.bf16.gmra.mrb[0].mxu0 %v6491
      %v6605 = vpop.f32.mrb[0].mxu0
      %v6606 = vadd.f32 %v6470, %v6605
      %v6607 = vpop.f32.mrb[0].mxu0
      %v6608 = vpop.f32.mrb[0].mxu0
      %v6609 = vadd.f32 %v6470, %v6608
      %v6610 = vpop.f32.mrb[0].mxu0
      %6611 = vmatprep.mubr.bf16.mxu0 0
      %6612 = vmatmul.mubr.bf16.gmra.mrb[0].mxu0 %v6494
      %v6613 = vpop.f32.mrb[0].mxu0
      %v6614 = vadd.f32 %v6470, %v6613
      %v6615 = vpop.f32.mrb[0].mxu0
      %v6616 = vpop.f32.mrb[0].mxu0
      %v6617 = vadd.f32 %v6470, %v6616
      %v6618 = vpop.f32.mrb[0].mxu0
      %6619 = vmatprep.mubr.bf16.mxu0 0
      %6620 = vmatmul.mubr.bf16.gmra.mrb[0].mxu0 %v6497
      %v6621 = vpop.f32.mrb[0].mxu0
      %v6622 = vadd.f32 %v6470, %v6621
      %v6623 = vpop.f32.mrb[0].mxu0
      %v6624 = vpop.f32.mrb[0].mxu0
      %v6625 = vadd.f32 %v6470, %v6624
      %v6626 = vpop.f32.mrb[0].mxu0
      %6627 = vmatprep.mubr.bf16.mxu0 0
      %6628 = vmatmul.mubr.bf16.gmra.mrb[0].mxu0 %v6500
      %v6629 = vpop.f32.mrb[0].mxu0
      %v6630 = vadd.f32 %v6470, %v6629
      %v6631 = vpop.f32.mrb[0].mxu0
      %v6632 = vpop.f32.mrb[0].mxu0
      %v6633 = vadd.f32 %v6470, %v6632
      %v6634 = vpop.f32.mrb[0].mxu0
      %6635 = vmatprep.mubr.bf16.mxu0 0
      %6636 = vmatmul.mubr.bf16.gmra.mrb[0].mxu0 %v6503
      %v6637 = vpop.f32.mrb[0].mxu0
      %v6638 = vadd.f32 %v6470, %v6637
      %v6639 = vpop.f32.mrb[0].mxu0
      %v6640 = vpop.f32.mrb[0].mxu0
      %v6641 = vadd.f32 %v6470, %v6640
      %v6642 = vpop.f32.mrb[0].mxu0
      %6643 = vmatprep.mubr.bf16.mxu0 0
      %6644 = vmatmul.mubr.bf16.gmra.mrb[0].mxu0 %v6506
      %v6645 = vpop.f32.mrb[0].mxu0
      %v6646 = vadd.f32 %v6470, %v6645
      %v6647 = vpop.f32.mrb[0].mxu0
      %v6648 = vpop.f32.mrb[0].mxu0
      %v6649 = vadd.f32 %v6470, %v6648
      %v6650 = vpop.f32.mrb[0].mxu0
      %6651 = vmatprep.mubr.bf16.mxu0 0
      %6652 = vmatmul.mubr.bf16.gmra.mrb[0].mxu0 %v6509
      %v6653 = vpop.f32.mrb[0].mxu0
      %v6654 = vadd.f32 %v6470, %v6653
      %v6655 = vpop.f32.mrb[0].mxu0
      %v6656 = vpop.f32.mrb[0].mxu0
      %v6657 = vadd.f32 %v6470, %v6656
      %v6658 = vpop.f32.mrb[0].mxu0
      %6659 = vmatprep.mubr.bf16.mxu0 0
      %6660 = vmatmul.mubr.bf16.gmra.mrb[0].mxu0 %v6512
      %v6661 = vpop.f32.mrb[0].mxu0
      %v6662 = vadd.f32 %v6470, %v6661
      %v6663 = vpop.f32.mrb[0].mxu0
      %v6664 = vpop.f32.mrb[0].mxu0
      %v6665 = vadd.f32 %v6470, %v6664
      %v6666 = vpop.f32.mrb[0].mxu0
      %6667 = vmatprep.mubr.bf16.mxu0 0
      %6668 = vmatmul.mubr.bf16.gmra.mrb[0].mxu0 %v6515
      %v6669 = vpop.f32.mrb[0].mxu0
      %v6670 = vadd.f32 %v6470, %v6669
      %v6671 = vpop.f32.mrb[0].mxu0
      %v6672 = vpop.f32.mrb[0].mxu0
      %v6673 = vadd.f32 %v6470, %v6672
      %v6674 = vpop.f32.mrb[0].mxu0
      %6675 = vmatprep.mubr.bf16.mxu0 0
      %6676 = vmatmul.mubr.bf16.gmra.mrb[0].mxu0 %v6518
      %v6677 = vpop.f32.mrb[0].mxu0
      %v6678 = vadd.f32 %v6470, %v6677
      %v6679 = vpop.f32.mrb[0].mxu0
      %v6680 = vpop.f32.mrb[0].mxu0
      %v6681 = vadd.f32 %v6470, %v6680
      %v6682 = vpop.f32.mrb[0].mxu0
      %6683 = vdwg.mxu0
      %v6684 = vld [vmem:[%s273] sm:$0xf]
      %v6685 = vld [vmem:[%s273 + $0x4] sm:$0xf]
      %v6686 = vld [vmem:[%s273 + $0x8] sm:$0xf]
      %v6687 = vld [vmem:[%s273 + $0xc] sm:$0xf]
      %v6688 = vld [vmem:[%s273 + $0x10] sm:$0xf]
      %v6689 = vld [vmem:[%s273 + $0x14] sm:$0xf]
      %v6690 = vld [vmem:[%s273 + $0x18] sm:$0xf]
      %v6691 = vld [vmem:[%s273 + $0x1c] sm:$0xf]
      %v6692 = vld [vmem:[%s273 + $0x20] sm:$0xf]
      %v6693 = vld [vmem:[%s273 + $0x24] sm:$0xf]
      %v6694 = vld [vmem:[%s273 + $0x28] sm:$0xf]
      %v6695 = vld [vmem:[%s273 + $0x2c] sm:$0xf]
      %v6696 = vld [vmem:[%s273 + $0x30] sm:$0xf]
      %v6697 = vld [vmem:[%s273 + $0x34] sm:$0xf]
      %v6698 = vld [vmem:[%s273 + $0x38] sm:$0xf]
      %v6699 = vld [vmem:[%s273 + $0x3c] sm:$0xf]
      %v6700 = vld [vmem:[%s273 + $0x40] sm:$0xf]
      %v6701 = vld [vmem:[%s273 + $0x44] sm:$0xf]
      %v6702 = vld [vmem:[%s273 + $0x48] sm:$0xf]
      %v6703 = vld [vmem:[%s273 + $0x4c] sm:$0xf]
      %v6704 = vld [vmem:[%s273 + $0x50] sm:$0xf]
      %v6705 = vld [vmem:[%s273 + $0x54] sm:$0xf]
      %v6706 = vld [vmem:[%s273 + $0x58] sm:$0xf]
      %v6707 = vld [vmem:[%s273 + $0x5c] sm:$0xf]
      %v6708 = vld [vmem:[%s273 + $0x60] sm:$0xf]
      %v6709 = vld [vmem:[%s273 + $0x64] sm:$0xf]
      %v6710 = vld [vmem:[%s273 + $0x68] sm:$0xf]
      %v6711 = vld [vmem:[%s273 + $0x6c] sm:$0xf]
      %v6712 = vld [vmem:[%s273 + $0x70] sm:$0xf]
      %v6713 = vld [vmem:[%s273 + $0x74] sm:$0xf]
      %v6714 = vld [vmem:[%s273 + $0x78] sm:$0xf]
      %v6715 = vld [vmem:[%s273 + $0x7c] sm:$0xf]
      %v6716 = vunpack.c.l.bf16 %v6684
      %v6717 = vunpack.c.l.bf16 %v6685
      %v6718 = vunpack.c.l.bf16 %v6686
      %v6719 = vunpack.c.l.bf16 %v6687
      %v6720 = vunpack.c.l.bf16 %v6688
      %v6721 = vunpack.c.l.bf16 %v6689
      %v6722 = vunpack.c.l.bf16 %v6690
      %v6723 = vunpack.c.l.bf16 %v6691
      %v6724 = vunpack.c.l.bf16 %v6692
      %v6725 = vunpack.c.l.bf16 %v6693
      %v6726 = vunpack.c.l.bf16 %v6694
      %v6727 = vunpack.c.l.bf16 %v6695
      %v6728 = vunpack.c.l.bf16 %v6696
      %v6729 = vunpack.c.l.bf16 %v6697
      %v6730 = vunpack.c.l.bf16 %v6698
      %v6731 = vunpack.c.l.bf16 %v6699
      %v6732 = vunpack.c.l.bf16 %v6700
      %v6733 = vunpack.c.l.bf16 %v6701
      %v6734 = vunpack.c.l.bf16 %v6702
      %v6735 = vunpack.c.l.bf16 %v6703
      %v6736 = vunpack.c.l.bf16 %v6704
      %v6737 = vunpack.c.l.bf16 %v6705
      %v6738 = vunpack.c.l.bf16 %v6706
      %v6739 = vunpack.c.l.bf16 %v6707
      %v6740 = vunpack.c.l.bf16 %v6708
      %v6741 = vunpack.c.l.bf16 %v6709
      %v6742 = vunpack.c.l.bf16 %v6710
      %v6743 = vunpack.c.l.bf16 %v6711
      %v6744 = vunpack.c.l.bf16 %v6712
      %v6745 = vunpack.c.l.bf16 %v6713
      %v6746 = vunpack.c.l.bf16 %v6714
      %v6747 = vunpack.c.l.bf16 %v6715
      %v6748 = vadd.f32 %v6558, %v6716
      %v6749 = vadd.f32 %v6561, %v6717
      %v6750 = vadd.f32 %v6566, %v6718
      %v6751 = vadd.f32 %v6569, %v6719
      %v6752 = vadd.f32 %v6574, %v6720
      %v6753 = vadd.f32 %v6577, %v6721
      %v6754 = vadd.f32 %v6582, %v6722
      %v6755 = vadd.f32 %v6585, %v6723
      %v6756 = vadd.f32 %v6590, %v6724
      %v6757 = vadd.f32 %v6593, %v6725
      %v6758 = vadd.f32 %v6598, %v6726
      %v6759 = vadd.f32 %v6601, %v6727
      %v6760 = vadd.f32 %v6606, %v6728
      %v6761 = vadd.f32 %v6609, %v6729
      %v6762 = vadd.f32 %v6614, %v6730
      %v6763 = vadd.f32 %v6617, %v6731
      %v6764 = vadd.f32 %v6622, %v6732
      %v6765 = vadd.f32 %v6625, %v6733
      %v6766 = vadd.f32 %v6630, %v6734
      %v6767 = vadd.f32 %v6633, %v6735
      %v6768 = vadd.f32 %v6638, %v6736
      %v6769 = vadd.f32 %v6641, %v6737
      %v6770 = vadd.f32 %v6646, %v6738
      %v6771 = vadd.f32 %v6649, %v6739
      %v6772 = vadd.f32 %v6654, %v6740
      %v6773 = vadd.f32 %v6657, %v6741
      %v6774 = vadd.f32 %v6662, %v6742
      %v6775 = vadd.f32 %v6665, %v6743
      %v6776 = vadd.f32 %v6670, %v6744
      %v6777 = vadd.f32 %v6673, %v6745
      %v6778 = vadd.f32 %v6678, %v6746
      %v6779 = vadd.f32 %v6681, %v6747
      %v6780 = vmax.f32 %v6748, 0.0
      %v6781 = vmax.f32 %v6749, 0.0
      %v6782 = vmax.f32 %v6750, 0.0
      %v6783 = vmax.f32 %v6751, 0.0
      %v6784 = vmax.f32 %v6752, 0.0
      %v6785 = vmax.f32 %v6753, 0.0
      %v6786 = vmax.f32 %v6754, 0.0
      %v6787 = vmax.f32 %v6755, 0.0
      %v6788 = vmax.f32 %v6756, 0.0
      %v6789 = vmax.f32 %v6757, 0.0
      %v6790 = vmax.f32 %v6758, 0.0
      %v6791 = vmax.f32 %v6759, 0.0
      %v6792 = vmax.f32 %v6760, 0.0
      %v6793 = vmax.f32 %v6761, 0.0
      %v6794 = vmax.f32 %v6762, 0.0
      %v6795 = vmax.f32 %v6763, 0.0
      %v6796 = vmax.f32 %v6764, 0.0
      %v6797 = vmax.f32 %v6765, 0.0
      %v6798 = vmax.f32 %v6766, 0.0
      %v6799 = vmax.f32 %v6767, 0.0
      %v6800 = vmax.f32 %v6768, 0.0
      %v6801 = vmax.f32 %v6769, 0.0
      %v6802 = vmax.f32 %v6770, 0.0
      %v6803 = vmax.f32 %v6771, 0.0
      %v6804 = vmax.f32 %v6772, 0.0
      %v6805 = vmax.f32 %v6773, 0.0
      %v6806 = vmax.f32 %v6774, 0.0
      %v6807 = vmax.f32 %v6775, 0.0
      %v6808 = vmax.f32 %v6776, 0.0
      %v6809 = vmax.f32 %v6777, 0.0
      %v6810 = vmax.f32 %v6778, 0.0
      %v6811 = vmax.f32 %v6779, 0.0
      %v6812 = vpack.c.bf16 %v6781, %v6780
      %v6813 = vpack.c.bf16 %v6783, %v6782
      %v6814 = vpack.c.bf16 %v6785, %v6784
      %v6815 = vpack.c.bf16 %v6787, %v6786
      %v6816 = vpack.c.bf16 %v6789, %v6788
      %v6817 = vpack.c.bf16 %v6791, %v6790
      %v6818 = vpack.c.bf16 %v6793, %v6792
      %v6819 = vpack.c.bf16 %v6795, %v6794
      %v6820 = vpack.c.bf16 %v6797, %v6796
      %v6821 = vpack.c.bf16 %v6799, %v6798
      %v6822 = vpack.c.bf16 %v6801, %v6800
      %v6823 = vpack.c.bf16 %v6803, %v6802
      %v6824 = vpack.c.bf16 %v6805, %v6804
      %v6825 = vpack.c.bf16 %v6807, %v6806
      %v6826 = vpack.c.bf16 %v6809, %v6808
      %v6827 = vpack.c.bf16 %v6811, %v6810
      %v6844 = vunpack.c.l.b16 %v6812
      %v6845 = vunpack.c.h.b16 %v6812
      %v6846 = vunpack.c.l.b16 %v6813
      %v6847 = vunpack.c.h.b16 %v6813
      %v6848 = vunpack.c.l.b16 %v6814
      %v6849 = vunpack.c.h.b16 %v6814
      %v6850 = vunpack.c.l.b16 %v6815
      %v6851 = vunpack.c.h.b16 %v6815
      %v6852 = vunpack.c.l.b16 %v6816
      %v6853 = vunpack.c.h.b16 %v6816
      %v6854 = vunpack.c.l.b16 %v6817
      %v6855 = vunpack.c.h.b16 %v6817
      %v6856 = vunpack.c.l.b16 %v6818
      %v6857 = vunpack.c.h.b16 %v6818
      %v6858 = vunpack.c.l.b16 %v6819
      %v6859 = vunpack.c.h.b16 %v6819
      %v6860 = vunpack.c.l.b16 %v6820
      %v6861 = vunpack.c.h.b16 %v6820
      %v6862 = vunpack.c.l.b16 %v6821
      %v6863 = vunpack.c.h.b16 %v6821
      %v6864 = vunpack.c.l.b16 %v6822
      %v6865 = vunpack.c.h.b16 %v6822
      %v6866 = vunpack.c.l.b16 %v6823
      %v6867 = vunpack.c.h.b16 %v6823
      %v6868 = vunpack.c.l.b16 %v6824
      %v6869 = vunpack.c.h.b16 %v6824
      %v6870 = vunpack.c.l.b16 %v6825
      %v6871 = vunpack.c.h.b16 %v6825
      %v6872 = vunpack.c.l.b16 %v6826
      %v6873 = vunpack.c.h.b16 %v6826
      %v6874 = vunpack.c.l.b16 %v6827
      %v6875 = vunpack.c.h.b16 %v6827
      %v6876 = vpack.c.b16 %v6844, %v6844
      %v6877 = vpack.c.b16 %v6845, %v6845
      %v6878 = vpack.c.b16 %v6846, %v6846
      %v6879 = vpack.c.b16 %v6847, %v6847
      %v6880 = vpack.c.b16 %v6848, %v6848
      %v6881 = vpack.c.b16 %v6849, %v6849
      %v6882 = vpack.c.b16 %v6850, %v6850
      %v6883 = vpack.c.b16 %v6851, %v6851
      %v6884 = vpack.c.b16 %v6852, %v6852
      %v6885 = vpack.c.b16 %v6853, %v6853
      %v6886 = vpack.c.b16 %v6854, %v6854
      %v6887 = vpack.c.b16 %v6855, %v6855
      %v6888 = vpack.c.b16 %v6856, %v6856
      %v6889 = vpack.c.b16 %v6857, %v6857
      %v6890 = vpack.c.b16 %v6858, %v6858
      %v6891 = vpack.c.b16 %v6859, %v6859
      %v6892 = vpack.c.b16 %v6860, %v6860
      %v6893 = vpack.c.b16 %v6861, %v6861
      %v6894 = vpack.c.b16 %v6862, %v6862
      %v6895 = vpack.c.b16 %v6863, %v6863
      %v6896 = vpack.c.b16 %v6864, %v6864
      %v6897 = vpack.c.b16 %v6865, %v6865
      %v6898 = vpack.c.b16 %v6866, %v6866
      %v6899 = vpack.c.b16 %v6867, %v6867
      %v6900 = vpack.c.b16 %v6868, %v6868
      %v6901 = vpack.c.b16 %v6869, %v6869
      %v6902 = vpack.c.b16 %v6870, %v6870
      %v6903 = vpack.c.b16 %v6871, %v6871
      %v6904 = vpack.c.b16 %v6872, %v6872
      %v6905 = vpack.c.b16 %v6873, %v6873
      %v6906 = vpack.c.b16 %v6874, %v6874
      %v6907 = vpack.c.b16 %v6875, %v6875
      %vm6940 = vcmask 125952
      %6941 = vst.msk [vmem:[%s278] sm:$0xf] %vm6940, %v6876
      %6942 = vst.msk [vmem:[%s278 + $0x4] sm:$0xf] %vm6940, %v6877
      %6943 = vst.msk [vmem:[%s278 + $0x8] sm:$0xf] %vm6940, %v6878
      %6944 = vst.msk [vmem:[%s278 + $0xc] sm:$0xf] %vm6940, %v6879
      %6945 = vst.msk [vmem:[%s278 + $0x10] sm:$0xf] %vm6940, %v6880
      %6946 = vst.msk [vmem:[%s278 + $0x14] sm:$0xf] %vm6940, %v6881
      %6947 = vst.msk [vmem:[%s278 + $0x18] sm:$0xf] %vm6940, %v6882
      %6948 = vst.msk [vmem:[%s278 + $0x1c] sm:$0xf] %vm6940, %v6883
      %6949 = vst.msk [vmem:[%s278 + $0x20] sm:$0xf] %vm6940, %v6884
      %6950 = vst.msk [vmem:[%s278 + $0x24] sm:$0xf] %vm6940, %v6885
      %6951 = vst.msk [vmem:[%s278 + $0x28] sm:$0xf] %vm6940, %v6886
      %6952 = vst.msk [vmem:[%s278 + $0x2c] sm:$0xf] %vm6940, %v6887
      %6953 = vst.msk [vmem:[%s278 + $0x30] sm:$0xf] %vm6940, %v6888
      %6954 = vst.msk [vmem:[%s278 + $0x34] sm:$0xf] %vm6940, %v6889
      %6955 = vst.msk [vmem:[%s278 + $0x38] sm:$0xf] %vm6940, %v6890
      %6956 = vst.msk [vmem:[%s278 + $0x3c] sm:$0xf] %vm6940, %v6891
      %6957 = vst.msk [vmem:[%s278 + $0x40] sm:$0xf] %vm6940, %v6892
      %6958 = vst.msk [vmem:[%s278 + $0x44] sm:$0xf] %vm6940, %v6893
      %6959 = vst.msk [vmem:[%s278 + $0x48] sm:$0xf] %vm6940, %v6894
      %6960 = vst.msk [vmem:[%s278 + $0x4c] sm:$0xf] %vm6940, %v6895
      %6961 = vst.msk [vmem:[%s278 + $0x50] sm:$0xf] %vm6940, %v6896
      %6962 = vst.msk [vmem:[%s278 + $0x54] sm:$0xf] %vm6940, %v6897
      %6963 = vst.msk [vmem:[%s278 + $0x58] sm:$0xf] %vm6940, %v6898
      %6964 = vst.msk [vmem:[%s278 + $0x5c] sm:$0xf] %vm6940, %v6899
      %6965 = vst.msk [vmem:[%s278 + $0x60] sm:$0xf] %vm6940, %v6900
      %6966 = vst.msk [vmem:[%s278 + $0x64] sm:$0xf] %vm6940, %v6901
      %6967 = vst.msk [vmem:[%s278 + $0x68] sm:$0xf] %vm6940, %v6902
      %6968 = vst.msk [vmem:[%s278 + $0x6c] sm:$0xf] %vm6940, %v6903
      %6969 = vst.msk [vmem:[%s278 + $0x70] sm:$0xf] %vm6940, %v6904
      %6970 = vst.msk [vmem:[%s278 + $0x74] sm:$0xf] %vm6940, %v6905
      %6971 = vst.msk [vmem:[%s278 + $0x78] sm:$0xf] %vm6940, %v6906
      %6972 = vst.msk [vmem:[%s278 + $0x7c] sm:$0xf] %vm6940, %v6907
      %p6973 = scmp.lt.s32.totalorder %s18, 1
      %s6974 = scalar_select %p6973, %s18, 1
      %s6975 = smul.addr %s6974, 32
      %s6976 = smul.addr %s6975, 4
      %s6977 = scalar_lea.vmem %s7, %s6976
      // Predicated region
      $region49: #{tpu_custom_call.1} parent=47 // pred_check
        %p6978 = pneg %p188
      $region50: #{tpu_custom_call.1} parent=47 // pred_check_branch
        %6980 = sbr.rel (%p6978) target = $region52
      $region51: #{tpu_custom_call.1} parent=47 // pred_region
        _
      $region52: #{tpu_custom_call.1} parent=47 // pred_fallthru
        _
    $region48: #{tpu_custom_call.1} parent=5 // pred_fallthru
      _
    %p6981 = scmp.le.s32.totalorder 2, %s13
    // Predicated region
    $region53: #{tpu_custom_call.1} parent=5 // pred_check
      %p6982 = pneg %p6981
    $region54: #{tpu_custom_call.1} parent=5 // pred_check_branch
      %6984 = sbr.rel (%p6982) target = $region56
    $region55: #{tpu_custom_call.1} parent=5 // pred_region
      %s6985 = ssub.s32 %s13, 2
      // Predicated region
      $region57: #{tpu_custom_call.1} parent=55 // pred_check
        %p6986 = pneg %p194
      $region58: #{tpu_custom_call.1} parent=55 // pred_check_branch
        %6988 = sbr.rel (%p6986) target = $region60
      $region59: #{tpu_custom_call.1} parent=55 // pred_region
        %p6989 = scmp.lt.s32.totalorder %s19, 1
        %s6990 = scalar_select %p6989, %s19, 1
        %s6991 = smul.addr %s6990, 32
        %s6992 = smul.addr %s6991, 4
        %s6993 = scalar_lea.vmem %s7, %s6992
      $region60: #{tpu_custom_call.1} parent=55 // pred_fallthru
        _
    $region56: #{tpu_custom_call.1} parent=5 // pred_fallthru
      _
  $region6: #{tpu_custom_call.1} parent=0 // loop_footer
    %s17 = sadd.s32 1, %s13
  $region7: #{tpu_custom_call.1} parent=0 // loop_footer_branch
    %12 = sbr.rel target = $region3
  $region8: #{tpu_custom_call.1} parent=0 // loop_exit
    _

</llo_original>
